<compile_context>
chip_gen: v6e
topology: v6e:2x2x1
jax: 0.10.0
libtpu: 0.0.40
codegen_flags: <defaults>
</compile_context>

<pallas_src>
import functools
import inspect

import jax
import jax.numpy as jnp
from jax import lax
from jax.experimental import pallas as pl
from jax.experimental.pallas import tpu as pltpu


# ---------------------------------------------------------------------------
# Small helpers
# ---------------------------------------------------------------------------
def _cdiv(a, b):
    return -(-a // b)


def _round_up(a, b):
    return _cdiv(a, b) * b


try:
    _PIPELINE_MODE_OK = (
        hasattr(pl, "Buffered")
        and "pipeline_mode" in inspect.signature(pl.BlockSpec).parameters)
except Exception:  # pragma: no cover
    _PIPELINE_MODE_OK = False


def _device_kind():
    try:
        return jax.devices()[0].device_kind.lower()
    except Exception:
        return ""


def _vmem_capacity_bytes():
    try:
        info = pltpu.get_tpu_info()
        return int(getattr(info, "vmem_capacity_bytes", 64 << 20))
    except Exception:
        return 64 << 20


def _mish(v):
    # Mish(v) = v * tanh(softplus(v)).  With t = exp(v):
    #   tanh(log1p(t)) = (t^2 + 2t) / (t^2 + 2t + 2)
    # -> one EUP exp + one approx EUP reciprocal.
    t = jnp.exp(jnp.minimum(v, 20.0))
    num = t * (t + 2.0)
    r = num * pl.reciprocal(num + 2.0, approx=True)
    # For v > 20, softplus(v) ~= v and tanh(v) ~= 1 (torch threshold=20).
    return v * jnp.where(v > 20.0, 1.0, r)


# ---------------------------------------------------------------------------
# Fused ResB kernel: pc (1x1 conv+BN+Mish) -> cv (3x3 conv+BN+Mish) -> + x
#   xt_ref: (1, 1,      WP, C)  top halo row     (bf16, W/H padded copy)
#   xm_ref: (1, TILE_H, WP, C)  main tile rows   (bf16, W/H padded copy)
#   xb_ref: (1, 1,      WP, C)  bottom halo row  (bf16, W/H padded copy)
#   xr_ref: (1, TILE_H, W,  C)  residual, source precision, unpadded W
#   w1_ref: (C, C_)  s1/b1: (1, C_)   w2_ref: (9, C_, C)  s2/b2: (1, C)
#   o_ref : (1, TILE_H, W, C)
# ---------------------------------------------------------------------------
def resb_fused_kernel(xt_ref, xm_ref, xb_ref, xr_ref,
                      w1_ref, s1_ref, b1_ref,
                      w2_ref, s2_ref, b2_ref,
                      o_ref, *, h_valid, use_bigk):
    t = pl.program_id(1)
    _, tile_h, wp, c = xm_ref.shape
    w = o_ref.shape[2]            # true image width
    w_cv = wp - 8                 # 8-aligned conv output width (>= w)
    c_ = w1_ref.shape[1]

    w1 = w1_ref[...]
    s1 = s1_ref[...]
    b1 = b1_ref[...]
    w2 = w2_ref[...]
    s2 = s2_ref[...]
    b2 = b2_ref[...]

    # Columns [1, w] hold image data; col 0 and cols > w are the 3x3 conv's
    # zero padding / alignment padding.
    col = lax.broadcasted_iota(jnp.int32, (1, wp, 1), 1)
    col_ok = (col >= 1) & (col <= w)

    def pc(x_piece, row_ok):
        # 1x1 conv + folded BN; zero padding positions BEFORE Mish
        # (Mish(0) == 0): no useful EUP work is lost and the 3x3 conv sees
        # exact zeros at its padded border.
        rows = x_piece.shape[0]
        y = jnp.dot(x_piece.reshape(rows * wp, c), w1,
                    preferred_element_type=jnp.float32).reshape(rows, wp, c_)
        y = jnp.where(jnp.logical_and(row_ok, col_ok), y * s1 + b1, 0.0)
        return _mish(y).astype(jnp.bfloat16)

    row_m = t * tile_h + lax.broadcasted_iota(jnp.int32, (tile_h, 1, 1), 0)
    y1_t = pc(xt_ref[0], t * tile_h - 1 >= 0)           # top halo (orig row t*tile_h-1)
    y1_m = pc(xm_ref[0], row_m < h_valid)               # tile rows
    y1_b = pc(xb_ref[0], (t + 1) * tile_h < h_valid)    # bottom halo
    y1 = jnp.concatenate([y1_t, y1_m, y1_b], axis=0)    # (tile_h+2, wp, c_) bf16

    # ---- cv: 3x3 conv over the pc output as 9 shifted taps ------------------
    if use_bigk:
        # v5e/v6e with c_ % 128 == 0: one big-K MXU matmul over the lane concat.
        taps = [y1[dh:dh + tile_h, dw:dw + w_cv, :].reshape(tile_h * w_cv, c_)
                for dh in range(3) for dw in range(3)]
        y2 = jnp.dot(jnp.concatenate(taps, axis=-1), w2.reshape(9 * c_, c),
                     preferred_element_type=jnp.float32)
    else:
        # v7x (MRB accumulates in place) / small c_: 9 accumulating matmuls,
        # no im2col buffer and no lane-packing concat.
        y2 = jnp.zeros((tile_h * w_cv, c), jnp.float32)
        for k in range(9):
            dh, dw = divmod(k, 3)
            tap = y1[dh:dh + tile_h, dw:dw + w_cv, :].reshape(tile_h * w_cv, c_)
            y2 = y2 + jnp.dot(tap, w2[k], preferred_element_type=jnp.float32)

    y2 = _mish(y2 * s2 + b2).reshape(tile_h, w_cv, c)

    # ---- residual add at source precision + store ---------------------------
    out = xr_ref[0].astype(jnp.float32) + y2[:, :w, :]
    o_ref[...] = out[None].astype(o_ref.dtype)
    # TODO(synk): for C < 128 a lane-dense (W*C)-flattened output layout would
    # avoid masked partial stores; skipped to keep the store path simple.


# ---------------------------------------------------------------------------
# Tile-size / VMEM heuristics (generation aware)
# ---------------------------------------------------------------------------
def _vmem_estimate(th, W, C, C_, in_item, out_item):
    wp = _round_up(W, 8) + 8
    w_cv = _round_up(W, 8)
    blk_in = (th + 2) * wp * C * 2                  # bf16 conv-path blocks
    blk_res = th * W * C * in_item
    blk_out = th * W * C * out_item
    params = (C * C_ + 9 * C_ * C) * 2 + 2 * (C_ + C) * 4
    tmp = ((th + 2) * wp * C_ * 6                   # pc f32 + bf16 copies
           + th * w_cv * C * 8                      # cv f32 acc + epilogue
           + th * w_cv * 9 * C_ * 2)                # im2col (big-K path)
    return 2 * (blk_in + blk_res + blk_out) + 2 * params + 2 * tmp


def _choose_tile_h(N, H, W, C, C_, in_item, out_item, vmem_budget, target_m):
    tile_h = max(1, min(H, max(8, _cdiv(target_m, max(W, 1)))))
    # Megacore: keep at least 2 grid steps so both TensorCores get work.
    if N * _cdiv(H, tile_h) < 2 and H >= 2:
        tile_h = _cdiv(H, 2)
    while tile_h > 8 and _vmem_estimate(tile_h, W, C, C_, in_item, out_item) > vmem_budget:
        tile_h = max(8, tile_h - 8)
    return tile_h, _vmem_estimate(tile_h, W, C, C_, in_item, out_item)


# ---------------------------------------------------------------------------
# Wrapper
# ---------------------------------------------------------------------------
def resb_forward(x_nchw, kernel_params, *, tile_h=None):
    w1, s1, b1, w2, s2, b2 = kernel_params
    N, C, H, W = x_nchw.shape
    C_ = w1.shape[1]
    assert w2.shape == (9, C_, C)

    kind = _device_kind()
    is_v7 = ("v7" in kind) or ("7x" in kind)
    is_v5 = "v5" in kind
    vmem_phys = _vmem_capacity_bytes()
    vmem_budget = int(vmem_phys * (0.65 if is_v7 else 0.70))
    target_m = 512 if is_v5 else (2048 if is_v7 else 1024)

    in_item = jnp.dtype(x_nchw.dtype).itemsize
    out_item = in_item

    if tile_h is None:
        tile_h, est = _choose_tile_h(N, H, W, C, C_, in_item, out_item,
                                     vmem_budget, target_m)
    else:
        tile_h = int(min(max(tile_h, 1), H))
        est = _vmem_estimate(tile_h, W, C, C_, in_item, out_item)

    H_pad = _round_up(H, tile_h)
    T = H_pad // tile_h
    WP = _round_up(W, 8) + 8            # in-VMEM width: W + 3x3 halo, 8-aligned

    # Layout glue (XLA, outside the kernel): NCHW -> NHWC.
    x_nhwc = jnp.transpose(x_nchw, (0, 2, 3, 1))
    # Single padded bf16 copy for the conv path.  Original row r lives at
    # padded row r + tile_h, so the main tile block is tile_h-block aligned
    # and the two halo rows are addressed with 1-row blocks.
    x_cv = jnp.pad(x_nhwc.astype(jnp.bfloat16),
                   ((0, 0), (tile_h, H_pad - H + 1), (1, WP - W - 1), (0, 0)))
    # Residual operand at source precision, unpadded in W.
    x_res = jnp.pad(x_nhwc, ((0, 0), (0, H_pad - H), (0, 0), (0, 0)))

    use_bigk = (C_ % 128 == 0) and not is_v7

    def _param_spec(arr, shape):
        idx = lambda n, t: (0,) * len(shape)
        if _PIPELINE_MODE_OK and int(arr.size) * arr.dtype.itemsize >= (2 << 20):
            # Large resident weights: don't waste VMEM double-buffering them.
            try:
                return pl.BlockSpec(shape, idx, pipeline_mode=pl.Buffered(1))
            except TypeError:
                pass
        return pl.BlockSpec(shape, idx)

    in_specs = [
        # top halo row: original row t*tile_h - 1
        pl.BlockSpec((1, 1, WP, C), lambda n, t: (n, (t + 1) * tile_h - 1, 0, 0)),
        # main tile rows: original rows [t*tile_h, (t+1)*tile_h)
        pl.BlockSpec((1, tile_h, WP, C), lambda n, t: (n, t + 1, 0, 0)),
        # bottom halo row: original row (t+1)*tile_h
        pl.BlockSpec((1, 1, WP, C), lambda n, t: (n, (t + 2) * tile_h, 0, 0)),
        # residual tile
        pl.BlockSpec((1, tile_h, W, C), lambda n, t: (n, t, 0, 0)),
        # weights / folded-BN params: constant index maps -> resident in VMEM
        _param_spec(w1, (C, C_)),
        _param_spec(s1, (1, C_)),
        _param_spec(b1, (1, C_)),
        _param_spec(w2, (9, C_, C)),
        _param_spec(s2, (1, C)),
        _param_spec(b2, (1, C)),
    ]
    out_specs = pl.BlockSpec((1, tile_h, W, C), lambda n, t: (n, t, 0, 0))

    vmem_limit = int(min(vmem_budget, max(8 << 20, 2 * est)))

    out_padded = pl.pallas_call(
        functools.partial(resb_fused_kernel, h_valid=H, use_bigk=use_bigk),
        out_shape=jax.ShapeDtypeStruct((N, H_pad, W, C), x_nchw.dtype),
        grid=(N, T),
        in_specs=in_specs,
        out_specs=out_specs,
        compiler_params=pltpu.CompilerParams(
            dimension_semantics=("parallel", "parallel"),
            vmem_limit_bytes=vmem_limit,
        ),
    )(x_cv, x_cv, x_cv, x_res, w1, s1, b1, w2, s2, b2)

    # Layout glue back: drop padded rows, NHWC -> NCHW.
    return jnp.transpose(out_padded[:, :H], (0, 3, 1, 2))


# ---------------------------------------------------------------------------
# Deterministic parameter construction (PyTorch shapes, folded BN)
# ---------------------------------------------------------------------------
def init_resb_params(key, c, e=0.5, eps=1e-4):
    c_ = int(c * e)
    ks = jax.random.split(key, 10)
    # PyTorch conv weight layouts: (out, in, kh, kw)
    w1_t = 0.2 * jax.random.normal(ks[0], (c_, c, 1, 1), jnp.float32)
    g1 = 1.0 + 0.1 * jax.random.normal(ks[1], (c_,), jnp.float32)
    beta1 = 0.1 * jax.random.normal(ks[2], (c_,), jnp.float32)
    m1 = 0.1 * jax.random.normal(ks[3], (c_,), jnp.float32)
    v1 = jax.random.uniform(ks[4], (c_,), jnp.float32, 0.5, 1.5)

    w2_t = 0.2 * jax.random.normal(ks[5], (c, c_, 3, 3), jnp.float32)
    g2 = 1.0 + 0.1 * jax.random.normal(ks[6], (c,), jnp.float32)
    beta2 = 0.1 * jax.random.normal(ks[7], (c,), jnp.float32)
    m2 = 0.1 * jax.random.normal(ks[8], (c,), jnp.float32)
    v2 = jax.random.uniform(ks[9], (c,), jnp.float32, 0.5, 1.5)

    # Fold BatchNorm (inference) into per-channel scale / bias (kept in f32).
    s1 = g1 / jnp.sqrt(v1 + eps)
    b1 = beta1 - m1 * s1
    s2 = g2 / jnp.sqrt(v2 + eps)
    b2 = beta2 - m2 * s2

    # Conv weights are carried in bf16 (MXU-native); the reference uses the
    # same quantized weights upcast to f32 so the check isolates kernel error.
    w1_q = w1_t.astype(jnp.bfloat16)
    w2_q = w2_t.astype(jnp.bfloat16)

    w1_k = w1_q.reshape(c_, c).T                                   # (C, C_)
    w2_k = jnp.transpose(w2_q, (2, 3, 1, 0)).reshape(9, c_, c)     # (9, C_, C)
    kernel_params = (w1_k, s1.reshape(1, c_), b1.reshape(1, c_),
                     w2_k, s2.reshape(1, c), b2.reshape(1, c))
    ref_params = (w1_q.astype(jnp.float32), s1, b1,
                  w2_q.astype(jnp.float32), s2, b2)
    return kernel_params, ref_params


# ---------------------------------------------------------------------------
# Pure-JAX reference (for the correctness check)
# ---------------------------------------------------------------------------
def resb_reference(x, ref_params):
    w1_t, s1, b1, w2_t, s2, b2 = ref_params
    # The kernel feeds the conv path bf16 activations; the residual stays at
    # source precision.
    xq = x.astype(jnp.bfloat16).astype(jnp.float32)

    def mish(v):
        return v * jnp.tanh(jax.nn.softplus(v))

    dn = ("NCHW", "OIHW", "NCHW")
    y = lax.conv_general_dilated(xq, w1_t, (1, 1), "VALID", dimension_numbers=dn)
    y = mish(y * s1[None, :, None, None] + b1[None, :, None, None])
    y = lax.conv_general_dilated(y, w2_t, (1, 1), ((1, 1), (1, 1)),
                                 dimension_numbers=dn)
    y = mish(y * s2[None, :, None, None] + b2[None, :, None, None])
    return x + y


if __name__ == "__main__":
    key = jax.random.PRNGKey(0)
    k_x1, k_x2, k_p = jax.random.split(key, 3)

    N, C, H, W = 2, 4, 16, 16          # c=4, e=0.5 -> c_=2
    kernel_params, ref_params = init_resb_params(k_p, C, e=0.5, eps=1e-4)

    # Case 1: divisible spatial size, auto tile selection.
    x1 = jax.random.normal(k_x1, (N, C, H, W), jnp.float32)
    out1 = jax.block_until_ready(resb_forward(x1, kernel_params))
    ref1 = resb_reference(x1, ref_params)
    assert out1.shape == x1.shape
    d1 = float(jnp.max(jnp.abs(out1 - ref1)))
    assert jnp.allclose(out1, ref1, atol=3e-2, rtol=3e-2), f"case1 max|diff|={d1}"

    # Case 2: YOLO-like ragged spatial size (13x13) with a tile that does NOT
    # divide H (exercises H padding + in-kernel row masking).
    x2 = jax.random.normal(k_x2, (1, C, 13, 13), jnp.float32)
    out2 = jax.block_until_ready(resb_forward(x2, kernel_params, tile_h=8))
    ref2 = resb_reference(x2, ref_params)
    assert out2.shape == x2.shape
    d2 = float(jnp.max(jnp.abs(out2 - ref2)))
    assert jnp.allclose(out2, ref2, atol=3e-2, rtol=3e-2), f"case2 max|diff|={d2}"

    print("KERNEL_OK")
</pallas_src>

<mosaic_0001>
module attributes {stable_mosaic.version = 11 : i64} {
  func.func @resb_fused_kernel(%arg0: i32, %arg1: i32, %arg2: memref<1x1x24x4xbf16, #tpu.memory_space<vmem>>, %arg3: memref<1x16x24x4xbf16, #tpu.memory_space<vmem>>, %arg4: memref<1x1x24x4xbf16, #tpu.memory_space<vmem>>, %arg5: memref<1x16x16x4xf32, #tpu.memory_space<vmem>>, %arg6: memref<4x2xbf16, #tpu.memory_space<vmem>>, %arg7: memref<1x2xf32, #tpu.memory_space<vmem>>, %arg8: memref<1x2xf32, #tpu.memory_space<vmem>>, %arg9: memref<9x2x4xbf16, #tpu.memory_space<vmem>>, %arg10: memref<1x4xf32, #tpu.memory_space<vmem>>, %arg11: memref<1x4xf32, #tpu.memory_space<vmem>>, %arg12: memref<1x16x16x4xf32, #tpu.memory_space<vmem>>) attributes {dimension_semantics = [#tpu.dimension_semantics<parallel>, #tpu.dimension_semantics<parallel>], iteration_bounds = array<i64: 2, 1>, scalar_prefetch = 0 : i64, scratch_operands = 0 : i64, tpu.core_type = #tpu.core_type<tc>, window_params = [{transform_indices = @transform_0, window_bounds = array<i64: 1, 1, 24, 4>}, {transform_indices = @transform_1, window_bounds = array<i64: 1, 16, 24, 4>}, {transform_indices = @transform_2, window_bounds = array<i64: 1, 1, 24, 4>}, {transform_indices = @transform_3, window_bounds = array<i64: 1, 16, 16, 4>}, {pipeline_mode = #tpu.pipeline_mode<synchronous>, transform_indices = @transform_4, window_bounds = array<i64: 4, 2>}, {pipeline_mode = #tpu.pipeline_mode<synchronous>, transform_indices = @transform_5, window_bounds = array<i64: 1, 2>}, {pipeline_mode = #tpu.pipeline_mode<synchronous>, transform_indices = @transform_6, window_bounds = array<i64: 1, 2>}, {pipeline_mode = #tpu.pipeline_mode<synchronous>, transform_indices = @transform_7, window_bounds = array<i64: 9, 2, 4>}, {pipeline_mode = #tpu.pipeline_mode<synchronous>, transform_indices = @transform_8, window_bounds = array<i64: 1, 4>}, {pipeline_mode = #tpu.pipeline_mode<synchronous>, transform_indices = @transform_9, window_bounds = array<i64: 1, 4>}, {transform_indices = @transform_10, window_bounds = array<i64: 1, 16, 16, 4>}]} {
    %c0 = arith.constant 0 : index
    %c0_0 = arith.constant 0 : index
    %0 = vector.load %arg6[%c0, %c0_0] : memref<4x2xbf16, #tpu.memory_space<vmem>>, vector<4x2xbf16>
    %c0_1 = arith.constant 0 : index
    %c0_2 = arith.constant 0 : index
    %1 = vector.load %arg7[%c0_1, %c0_2] : memref<1x2xf32, #tpu.memory_space<vmem>>, vector<1x2xf32>
    %c0_3 = arith.constant 0 : index
    %c0_4 = arith.constant 0 : index
    %2 = vector.load %arg8[%c0_3, %c0_4] : memref<1x2xf32, #tpu.memory_space<vmem>>, vector<1x2xf32>
    %c0_5 = arith.constant 0 : index
    %c0_6 = arith.constant 0 : index
    %c0_7 = arith.constant 0 : index
    %3 = vector.load %arg9[%c0_5, %c0_6, %c0_7] : memref<9x2x4xbf16, #tpu.memory_space<vmem>>, vector<9x2x4xbf16>
    %c0_8 = arith.constant 0 : index
    %c0_9 = arith.constant 0 : index
    %4 = vector.load %arg10[%c0_8, %c0_9] : memref<1x4xf32, #tpu.memory_space<vmem>>, vector<1x4xf32>
    %c0_10 = arith.constant 0 : index
    %c0_11 = arith.constant 0 : index
    %5 = vector.load %arg11[%c0_10, %c0_11] : memref<1x4xf32, #tpu.memory_space<vmem>>, vector<1x4xf32>
    %6 = tpu.iota {dimensions = array<i32: 1>} : vector<1x24x1xi32>
    %c1_i32 = arith.constant 1 : i32
    %7 = vector.broadcast %c1_i32 : i32 to vector<1x24x1xi32>
    %8 = arith.cmpi sge, %6, %7 : vector<1x24x1xi32>
    %c16_i32 = arith.constant 16 : i32
    %9 = vector.broadcast %c16_i32 : i32 to vector<1x24x1xi32>
    %10 = arith.cmpi sle, %6, %9 : vector<1x24x1xi32>
    %11 = arith.andi %8, %10 : vector<1x24x1xi1>
    %c16_i32_12 = arith.constant 16 : i32
    %12 = arith.muli %arg1, %c16_i32_12 : i32
    %13 = tpu.iota {dimensions = array<i32: 0>} : vector<16x1x1xi32>
    %14 = vector.broadcast %12 : i32 to vector<16x1x1xi32>
    %15 = arith.addi %14, %13 : vector<16x1x1xi32>
    %c0_13 = arith.constant 0 : index
    %c0_14 = arith.constant 0 : index
    %c0_15 = arith.constant 0 : index
    %c0_16 = arith.constant 0 : index
    %16 = vector.load %arg2[%c0_13, %c0_14, %c0_15, %c0_16] : memref<1x1x24x4xbf16, #tpu.memory_space<vmem>>, vector<1x1x24x4xbf16>
    %17 = vector.shape_cast %16 : vector<1x1x24x4xbf16> to vector<1x24x4xbf16>
    %c16_i32_17 = arith.constant 16 : i32
    %18 = arith.muli %arg1, %c16_i32_17 : i32
    %c1_i32_18 = arith.constant 1 : i32
    %19 = arith.subi %18, %c1_i32_18 : i32
    %c0_i32 = arith.constant 0 : i32
    %20 = arith.cmpi sge, %19, %c0_i32 : i32
    %21 = vector.shape_cast %17 : vector<1x24x4xbf16> to vector<24x4xbf16>
    %cst = arith.constant dense<0.000000e+00> : vector<24x2xf32>
    %22 = tpu.matmul %21, %0, %cst {dimension_numbers = #tpu.dot_dimension_numbers<[1], [0], [0], [1], [0, 0, 1, 1], [], []>} : vector<24x4xbf16>, vector<4x2xbf16>, vector<24x2xf32> -> vector<24x2xf32>
    %23 = vector.shape_cast %22 : vector<24x2xf32> to vector<1x24x2xf32>
    %24 = vector.broadcast %20 : i1 to vector<1x24x1xi1>
    %25 = arith.andi %24, %11 : vector<1x24x1xi1>
    %26 = vector.shape_cast %1 : vector<1x2xf32> to vector<1x1x2xf32>
    %27 = vector.broadcast %26 : vector<1x1x2xf32> to vector<1x24x2xf32>
    %28 = arith.mulf %23, %27 : vector<1x24x2xf32>
    %29 = vector.shape_cast %2 : vector<1x2xf32> to vector<1x1x2xf32>
    %30 = vector.broadcast %29 : vector<1x1x2xf32> to vector<1x24x2xf32>
    %31 = arith.addf %28, %30 : vector<1x24x2xf32>
    %cst_19 = arith.constant 0.000000e+00 : f32
    %32 = vector.shape_cast %25 : vector<1x24x1xi1> to vector<1x24x1xi1>
    %33 = vector.broadcast %32 : vector<1x24x1xi1> to vector<1x24x2xi1>
    %34 = vector.broadcast %cst_19 : f32 to vector<1x24x2xf32>
    %35 = arith.select %33, %31, %34 : vector<1x24x2xi1>, vector<1x24x2xf32>
    %cst_20 = arith.constant 2.000000e+01 : f32
    %36 = vector.broadcast %cst_20 : f32 to vector<1x24x2xf32>
    %37 = arith.minimumf %35, %36 : vector<1x24x2xf32>
    %38 = math.exp %37 : vector<1x24x2xf32>
    %cst_21 = arith.constant 2.000000e+00 : f32
    %39 = vector.broadcast %cst_21 : f32 to vector<1x24x2xf32>
    %40 = arith.addf %38, %39 : vector<1x24x2xf32>
    %41 = arith.mulf %38, %40 : vector<1x24x2xf32>
    %cst_22 = arith.constant 2.000000e+00 : f32
    %42 = vector.broadcast %cst_22 : f32 to vector<1x24x2xf32>
    %43 = arith.addf %41, %42 : vector<1x24x2xf32>
    %44 = tpu.reciprocal %43 {approx = true} : vector<1x24x2xf32> -> vector<1x24x2xf32>
    %45 = arith.mulf %41, %44 : vector<1x24x2xf32>
    %cst_23 = arith.constant 2.000000e+01 : f32
    %46 = vector.broadcast %cst_23 : f32 to vector<1x24x2xf32>
    %47 = arith.cmpf ogt, %35, %46 : vector<1x24x2xf32>
    %cst_24 = arith.constant 1.000000e+00 : f32
    %48 = vector.broadcast %cst_24 : f32 to vector<1x24x2xf32>
    %49 = arith.select %47, %48, %45 : vector<1x24x2xi1>, vector<1x24x2xf32>
    %50 = arith.mulf %35, %49 : vector<1x24x2xf32>
    %51 = arith.truncf %50 : vector<1x24x2xf32> to vector<1x24x2xbf16>
    %c0_25 = arith.constant 0 : index
    %c0_26 = arith.constant 0 : index
    %c0_27 = arith.constant 0 : index
    %c0_28 = arith.constant 0 : index
    %52 = vector.load %arg3[%c0_25, %c0_26, %c0_27, %c0_28] : memref<1x16x24x4xbf16, #tpu.memory_space<vmem>>, vector<1x16x24x4xbf16>
    %53 = vector.shape_cast %52 : vector<1x16x24x4xbf16> to vector<16x24x4xbf16>
    %c16_i32_29 = arith.constant 16 : i32
    %54 = vector.broadcast %c16_i32_29 : i32 to vector<16x1x1xi32>
    %55 = arith.cmpi slt, %15, %54 : vector<16x1x1xi32>
    %56 = vector.shape_cast %53 : vector<16x24x4xbf16> to vector<384x4xbf16>
    %cst_30 = arith.constant dense<0.000000e+00> : vector<384x2xf32>
    %57 = tpu.matmul %56, %0, %cst_30 {dimension_numbers = #tpu.dot_dimension_numbers<[1], [0], [0], [1], [0, 0, 1, 1], [], []>} : vector<384x4xbf16>, vector<4x2xbf16>, vector<384x2xf32> -> vector<384x2xf32>
    %58 = vector.shape_cast %57 : vector<384x2xf32> to vector<16x24x2xf32>
    %59 = vector.broadcast %55 : vector<16x1x1xi1> to vector<16x24x1xi1>
    %60 = vector.broadcast %11 : vector<1x24x1xi1> to vector<16x24x1xi1>
    %61 = arith.andi %59, %60 : vector<16x24x1xi1>
    %62 = vector.shape_cast %1 : vector<1x2xf32> to vector<1x1x2xf32>
    %63 = vector.broadcast %62 : vector<1x1x2xf32> to vector<16x24x2xf32>
    %64 = arith.mulf %58, %63 : vector<16x24x2xf32>
    %65 = vector.shape_cast %2 : vector<1x2xf32> to vector<1x1x2xf32>
    %66 = vector.broadcast %65 : vector<1x1x2xf32> to vector<16x24x2xf32>
    %67 = arith.addf %64, %66 : vector<16x24x2xf32>
    %cst_31 = arith.constant 0.000000e+00 : f32
    %68 = vector.shape_cast %61 : vector<16x24x1xi1> to vector<16x24x1xi1>
    %69 = vector.broadcast %68 : vector<16x24x1xi1> to vector<16x24x2xi1>
    %70 = vector.broadcast %cst_31 : f32 to vector<16x24x2xf32>
    %71 = arith.select %69, %67, %70 : vector<16x24x2xi1>, vector<16x24x2xf32>
    %cst_32 = arith.constant 2.000000e+01 : f32
    %72 = vector.broadcast %cst_32 : f32 to vector<16x24x2xf32>
    %73 = arith.minimumf %71, %72 : vector<16x24x2xf32>
    %74 = math.exp %73 : vector<16x24x2xf32>
    %cst_33 = arith.constant 2.000000e+00 : f32
    %75 = vector.broadcast %cst_33 : f32 to vector<16x24x2xf32>
    %76 = arith.addf %74, %75 : vector<16x24x2xf32>
    %77 = arith.mulf %74, %76 : vector<16x24x2xf32>
    %cst_34 = arith.constant 2.000000e+00 : f32
    %78 = vector.broadcast %cst_34 : f32 to vector<16x24x2xf32>
    %79 = arith.addf %77, %78 : vector<16x24x2xf32>
    %80 = tpu.reciprocal %79 {approx = true} : vector<16x24x2xf32> -> vector<16x24x2xf32>
    %81 = arith.mulf %77, %80 : vector<16x24x2xf32>
    %cst_35 = arith.constant 2.000000e+01 : f32
    %82 = vector.broadcast %cst_35 : f32 to vector<16x24x2xf32>
    %83 = arith.cmpf ogt, %71, %82 : vector<16x24x2xf32>
    %cst_36 = arith.constant 1.000000e+00 : f32
    %84 = vector.broadcast %cst_36 : f32 to vector<16x24x2xf32>
    %85 = arith.select %83, %84, %81 : vector<16x24x2xi1>, vector<16x24x2xf32>
    %86 = arith.mulf %71, %85 : vector<16x24x2xf32>
    %87 = arith.truncf %86 : vector<16x24x2xf32> to vector<16x24x2xbf16>
    %c0_37 = arith.constant 0 : index
    %c0_38 = arith.constant 0 : index
    %c0_39 = arith.constant 0 : index
    %c0_40 = arith.constant 0 : index
    %88 = vector.load %arg4[%c0_37, %c0_38, %c0_39, %c0_40] : memref<1x1x24x4xbf16, #tpu.memory_space<vmem>>, vector<1x1x24x4xbf16>
    %89 = vector.shape_cast %88 : vector<1x1x24x4xbf16> to vector<1x24x4xbf16>
    %c1_i32_41 = arith.constant 1 : i32
    %90 = arith.addi %arg1, %c1_i32_41 : i32
    %c16_i32_42 = arith.constant 16 : i32
    %91 = arith.muli %90, %c16_i32_42 : i32
    %c16_i32_43 = arith.constant 16 : i32
    %92 = arith.cmpi slt, %91, %c16_i32_43 : i32
    %93 = vector.shape_cast %89 : vector<1x24x4xbf16> to vector<24x4xbf16>
    %cst_44 = arith.constant dense<0.000000e+00> : vector<24x2xf32>
    %94 = tpu.matmul %93, %0, %cst_44 {dimension_numbers = #tpu.dot_dimension_numbers<[1], [0], [0], [1], [0, 0, 1, 1], [], []>} : vector<24x4xbf16>, vector<4x2xbf16>, vector<24x2xf32> -> vector<24x2xf32>
    %95 = vector.shape_cast %94 : vector<24x2xf32> to vector<1x24x2xf32>
    %96 = vector.broadcast %92 : i1 to vector<1x24x1xi1>
    %97 = arith.andi %96, %11 : vector<1x24x1xi1>
    %98 = vector.shape_cast %1 : vector<1x2xf32> to vector<1x1x2xf32>
    %99 = vector.broadcast %98 : vector<1x1x2xf32> to vector<1x24x2xf32>
    %100 = arith.mulf %95, %99 : vector<1x24x2xf32>
    %101 = vector.shape_cast %2 : vector<1x2xf32> to vector<1x1x2xf32>
    %102 = vector.broadcast %101 : vector<1x1x2xf32> to vector<1x24x2xf32>
    %103 = arith.addf %100, %102 : vector<1x24x2xf32>
    %cst_45 = arith.constant 0.000000e+00 : f32
    %104 = vector.shape_cast %97 : vector<1x24x1xi1> to vector<1x24x1xi1>
    %105 = vector.broadcast %104 : vector<1x24x1xi1> to vector<1x24x2xi1>
    %106 = vector.broadcast %cst_45 : f32 to vector<1x24x2xf32>
    %107 = arith.select %105, %103, %106 : vector<1x24x2xi1>, vector<1x24x2xf32>
    %cst_46 = arith.constant 2.000000e+01 : f32
    %108 = vector.broadcast %cst_46 : f32 to vector<1x24x2xf32>
    %109 = arith.minimumf %107, %108 : vector<1x24x2xf32>
    %110 = math.exp %109 : vector<1x24x2xf32>
    %cst_47 = arith.constant 2.000000e+00 : f32
    %111 = vector.broadcast %cst_47 : f32 to vector<1x24x2xf32>
    %112 = arith.addf %110, %111 : vector<1x24x2xf32>
    %113 = arith.mulf %110, %112 : vector<1x24x2xf32>
    %cst_48 = arith.constant 2.000000e+00 : f32
    %114 = vector.broadcast %cst_48 : f32 to vector<1x24x2xf32>
    %115 = arith.addf %113, %114 : vector<1x24x2xf32>
    %116 = tpu.reciprocal %115 {approx = true} : vector<1x24x2xf32> -> vector<1x24x2xf32>
    %117 = arith.mulf %113, %116 : vector<1x24x2xf32>
    %cst_49 = arith.constant 2.000000e+01 : f32
    %118 = vector.broadcast %cst_49 : f32 to vector<1x24x2xf32>
    %119 = arith.cmpf ogt, %107, %118 : vector<1x24x2xf32>
    %cst_50 = arith.constant 1.000000e+00 : f32
    %120 = vector.broadcast %cst_50 : f32 to vector<1x24x2xf32>
    %121 = arith.select %119, %120, %117 : vector<1x24x2xi1>, vector<1x24x2xf32>
    %122 = arith.mulf %107, %121 : vector<1x24x2xf32>
    %123 = arith.truncf %122 : vector<1x24x2xf32> to vector<1x24x2xbf16>
    %124 = tpu.concatenate %51, %87, %123 in 0 : vector<1x24x2xbf16>, vector<16x24x2xbf16>, vector<1x24x2xbf16> -> vector<18x24x2xbf16>
    %cst_51 = arith.constant 0.000000e+00 : f32
    %125 = vector.broadcast %cst_51 : f32 to vector<256x4xf32>
    %126 = vector.extract_strided_slice %124 {offsets = [0, 0, 0], sizes = [16, 16, 2], strides = [1, 1, 1]} : vector<18x24x2xbf16> to vector<16x16x2xbf16>
    %127 = vector.shape_cast %126 : vector<16x16x2xbf16> to vector<256x2xbf16>
    %128 = vector.extract_strided_slice %3 {offsets = [0, 0, 0], sizes = [1, 2, 4], strides = [1, 1, 1]} : vector<9x2x4xbf16> to vector<1x2x4xbf16>
    %129 = vector.shape_cast %128 : vector<1x2x4xbf16> to vector<2x4xbf16>
    %cst_52 = arith.constant dense<0.000000e+00> : vector<256x4xf32>
    %130 = tpu.matmul %127, %129, %cst_52 {dimension_numbers = #tpu.dot_dimension_numbers<[1], [0], [0], [1], [0, 0, 1, 1], [], []>} : vector<256x2xbf16>, vector<2x4xbf16>, vector<256x4xf32> -> vector<256x4xf32>
    %131 = arith.addf %125, %130 : vector<256x4xf32>
    %132 = vector.extract_strided_slice %124 {offsets = [0, 1, 0], sizes = [16, 16, 2], strides = [1, 1, 1]} : vector<18x24x2xbf16> to vector<16x16x2xbf16>
    %133 = vector.shape_cast %132 : vector<16x16x2xbf16> to vector<256x2xbf16>
    %134 = vector.extract_strided_slice %3 {offsets = [1, 0, 0], sizes = [1, 2, 4], strides = [1, 1, 1]} : vector<9x2x4xbf16> to vector<1x2x4xbf16>
    %135 = vector.shape_cast %134 : vector<1x2x4xbf16> to vector<2x4xbf16>
    %cst_53 = arith.constant dense<0.000000e+00> : vector<256x4xf32>
    %136 = tpu.matmul %133, %135, %cst_53 {dimension_numbers = #tpu.dot_dimension_numbers<[1], [0], [0], [1], [0, 0, 1, 1], [], []>} : vector<256x2xbf16>, vector<2x4xbf16>, vector<256x4xf32> -> vector<256x4xf32>
    %137 = arith.addf %131, %136 : vector<256x4xf32>
    %138 = vector.extract_strided_slice %124 {offsets = [0, 2, 0], sizes = [16, 16, 2], strides = [1, 1, 1]} : vector<18x24x2xbf16> to vector<16x16x2xbf16>
    %139 = vector.shape_cast %138 : vector<16x16x2xbf16> to vector<256x2xbf16>
    %140 = vector.extract_strided_slice %3 {offsets = [2, 0, 0], sizes = [1, 2, 4], strides = [1, 1, 1]} : vector<9x2x4xbf16> to vector<1x2x4xbf16>
    %141 = vector.shape_cast %140 : vector<1x2x4xbf16> to vector<2x4xbf16>
    %cst_54 = arith.constant dense<0.000000e+00> : vector<256x4xf32>
    %142 = tpu.matmul %139, %141, %cst_54 {dimension_numbers = #tpu.dot_dimension_numbers<[1], [0], [0], [1], [0, 0, 1, 1], [], []>} : vector<256x2xbf16>, vector<2x4xbf16>, vector<256x4xf32> -> vector<256x4xf32>
    %143 = arith.addf %137, %142 : vector<256x4xf32>
    %144 = vector.extract_strided_slice %124 {offsets = [1, 0, 0], sizes = [16, 16, 2], strides = [1, 1, 1]} : vector<18x24x2xbf16> to vector<16x16x2xbf16>
    %145 = vector.shape_cast %144 : vector<16x16x2xbf16> to vector<256x2xbf16>
    %146 = vector.extract_strided_slice %3 {offsets = [3, 0, 0], sizes = [1, 2, 4], strides = [1, 1, 1]} : vector<9x2x4xbf16> to vector<1x2x4xbf16>
    %147 = vector.shape_cast %146 : vector<1x2x4xbf16> to vector<2x4xbf16>
    %cst_55 = arith.constant dense<0.000000e+00> : vector<256x4xf32>
    %148 = tpu.matmul %145, %147, %cst_55 {dimension_numbers = #tpu.dot_dimension_numbers<[1], [0], [0], [1], [0, 0, 1, 1], [], []>} : vector<256x2xbf16>, vector<2x4xbf16>, vector<256x4xf32> -> vector<256x4xf32>
    %149 = arith.addf %143, %148 : vector<256x4xf32>
    %150 = vector.extract_strided_slice %124 {offsets = [1, 1, 0], sizes = [16, 16, 2], strides = [1, 1, 1]} : vector<18x24x2xbf16> to vector<16x16x2xbf16>
    %151 = vector.shape_cast %150 : vector<16x16x2xbf16> to vector<256x2xbf16>
    %152 = vector.extract_strided_slice %3 {offsets = [4, 0, 0], sizes = [1, 2, 4], strides = [1, 1, 1]} : vector<9x2x4xbf16> to vector<1x2x4xbf16>
    %153 = vector.shape_cast %152 : vector<1x2x4xbf16> to vector<2x4xbf16>
    %cst_56 = arith.constant dense<0.000000e+00> : vector<256x4xf32>
    %154 = tpu.matmul %151, %153, %cst_56 {dimension_numbers = #tpu.dot_dimension_numbers<[1], [0], [0], [1], [0, 0, 1, 1], [], []>} : vector<256x2xbf16>, vector<2x4xbf16>, vector<256x4xf32> -> vector<256x4xf32>
    %155 = arith.addf %149, %154 : vector<256x4xf32>
    %156 = vector.extract_strided_slice %124 {offsets = [1, 2, 0], sizes = [16, 16, 2], strides = [1, 1, 1]} : vector<18x24x2xbf16> to vector<16x16x2xbf16>
    %157 = vector.shape_cast %156 : vector<16x16x2xbf16> to vector<256x2xbf16>
    %158 = vector.extract_strided_slice %3 {offsets = [5, 0, 0], sizes = [1, 2, 4], strides = [1, 1, 1]} : vector<9x2x4xbf16> to vector<1x2x4xbf16>
    %159 = vector.shape_cast %158 : vector<1x2x4xbf16> to vector<2x4xbf16>
    %cst_57 = arith.constant dense<0.000000e+00> : vector<256x4xf32>
    %160 = tpu.matmul %157, %159, %cst_57 {dimension_numbers = #tpu.dot_dimension_numbers<[1], [0], [0], [1], [0, 0, 1, 1], [], []>} : vector<256x2xbf16>, vector<2x4xbf16>, vector<256x4xf32> -> vector<256x4xf32>
    %161 = arith.addf %155, %160 : vector<256x4xf32>
    %162 = vector.extract_strided_slice %124 {offsets = [2, 0, 0], sizes = [16, 16, 2], strides = [1, 1, 1]} : vector<18x24x2xbf16> to vector<16x16x2xbf16>
    %163 = vector.shape_cast %162 : vector<16x16x2xbf16> to vector<256x2xbf16>
    %164 = vector.extract_strided_slice %3 {offsets = [6, 0, 0], sizes = [1, 2, 4], strides = [1, 1, 1]} : vector<9x2x4xbf16> to vector<1x2x4xbf16>
    %165 = vector.shape_cast %164 : vector<1x2x4xbf16> to vector<2x4xbf16>
    %cst_58 = arith.constant dense<0.000000e+00> : vector<256x4xf32>
    %166 = tpu.matmul %163, %165, %cst_58 {dimension_numbers = #tpu.dot_dimension_numbers<[1], [0], [0], [1], [0, 0, 1, 1], [], []>} : vector<256x2xbf16>, vector<2x4xbf16>, vector<256x4xf32> -> vector<256x4xf32>
    %167 = arith.addf %161, %166 : vector<256x4xf32>
    %168 = vector.extract_strided_slice %124 {offsets = [2, 1, 0], sizes = [16, 16, 2], strides = [1, 1, 1]} : vector<18x24x2xbf16> to vector<16x16x2xbf16>
    %169 = vector.shape_cast %168 : vector<16x16x2xbf16> to vector<256x2xbf16>
    %170 = vector.extract_strided_slice %3 {offsets = [7, 0, 0], sizes = [1, 2, 4], strides = [1, 1, 1]} : vector<9x2x4xbf16> to vector<1x2x4xbf16>
    %171 = vector.shape_cast %170 : vector<1x2x4xbf16> to vector<2x4xbf16>
    %cst_59 = arith.constant dense<0.000000e+00> : vector<256x4xf32>
    %172 = tpu.matmul %169, %171, %cst_59 {dimension_numbers = #tpu.dot_dimension_numbers<[1], [0], [0], [1], [0, 0, 1, 1], [], []>} : vector<256x2xbf16>, vector<2x4xbf16>, vector<256x4xf32> -> vector<256x4xf32>
    %173 = arith.addf %167, %172 : vector<256x4xf32>
    %174 = vector.extract_strided_slice %124 {offsets = [2, 2, 0], sizes = [16, 16, 2], strides = [1, 1, 1]} : vector<18x24x2xbf16> to vector<16x16x2xbf16>
    %175 = vector.shape_cast %174 : vector<16x16x2xbf16> to vector<256x2xbf16>
    %176 = vector.extract_strided_slice %3 {offsets = [8, 0, 0], sizes = [1, 2, 4], strides = [1, 1, 1]} : vector<9x2x4xbf16> to vector<1x2x4xbf16>
    %177 = vector.shape_cast %176 : vector<1x2x4xbf16> to vector<2x4xbf16>
    %cst_60 = arith.constant dense<0.000000e+00> : vector<256x4xf32>
    %178 = tpu.matmul %175, %177, %cst_60 {dimension_numbers = #tpu.dot_dimension_numbers<[1], [0], [0], [1], [0, 0, 1, 1], [], []>} : vector<256x2xbf16>, vector<2x4xbf16>, vector<256x4xf32> -> vector<256x4xf32>
    %179 = arith.addf %173, %178 : vector<256x4xf32>
    %180 = vector.broadcast %4 : vector<1x4xf32> to vector<256x4xf32>
    %181 = arith.mulf %179, %180 : vector<256x4xf32>
    %182 = vector.broadcast %5 : vector<1x4xf32> to vector<256x4xf32>
    %183 = arith.addf %181, %182 : vector<256x4xf32>
    %cst_61 = arith.constant 2.000000e+01 : f32
    %184 = vector.broadcast %cst_61 : f32 to vector<256x4xf32>
    %185 = arith.minimumf %183, %184 : vector<256x4xf32>
    %186 = math.exp %185 : vector<256x4xf32>
    %cst_62 = arith.constant 2.000000e+00 : f32
    %187 = vector.broadcast %cst_62 : f32 to vector<256x4xf32>
    %188 = arith.addf %186, %187 : vector<256x4xf32>
    %189 = arith.mulf %186, %188 : vector<256x4xf32>
    %cst_63 = arith.constant 2.000000e+00 : f32
    %190 = vector.broadcast %cst_63 : f32 to vector<256x4xf32>
    %191 = arith.addf %189, %190 : vector<256x4xf32>
    %192 = tpu.reciprocal %191 {approx = true} : vector<256x4xf32> -> vector<256x4xf32>
    %193 = arith.mulf %189, %192 : vector<256x4xf32>
    %cst_64 = arith.constant 2.000000e+01 : f32
    %194 = vector.broadcast %cst_64 : f32 to vector<256x4xf32>
    %195 = arith.cmpf ogt, %183, %194 : vector<256x4xf32>
    %cst_65 = arith.constant 1.000000e+00 : f32
    %196 = vector.broadcast %cst_65 : f32 to vector<256x4xf32>
    %197 = arith.select %195, %196, %193 : vector<256x4xi1>, vector<256x4xf32>
    %198 = arith.mulf %183, %197 : vector<256x4xf32>
    %199 = vector.shape_cast %198 : vector<256x4xf32> to vector<16x16x4xf32>
    %c0_66 = arith.constant 0 : index
    %c0_67 = arith.constant 0 : index
    %c0_68 = arith.constant 0 : index
    %c0_69 = arith.constant 0 : index
    %200 = vector.load %arg5[%c0_66, %c0_67, %c0_68, %c0_69] : memref<1x16x16x4xf32, #tpu.memory_space<vmem>>, vector<1x16x16x4xf32>
    %201 = vector.shape_cast %200 : vector<1x16x16x4xf32> to vector<16x16x4xf32>
    %202 = arith.addf %201, %199 : vector<16x16x4xf32>
    %203 = vector.shape_cast %202 : vector<16x16x4xf32> to vector<1x16x16x4xf32>
    %c0_70 = arith.constant 0 : index
    %c0_71 = arith.constant 0 : index
    %c0_72 = arith.constant 0 : index
    %c0_73 = arith.constant 0 : index
    %204 = vector.load %arg12[%c0_70, %c0_71, %c0_72, %c0_73] : memref<1x16x16x4xf32, #tpu.memory_space<vmem>>, vector<1x16x16x4xf32>
    tpu.vector_store %arg12[%c0_70, %c0_71, %c0_72, %c0_73], %203 {strides = array<i32>} : memref<1x16x16x4xf32, #tpu.memory_space<vmem>>, vector<1x16x16x4xf32>,
    return
  }
  func.func @transform_0(%arg0: i32, %arg1: i32) -> (i32, i32, i32, i32) {
    %c1_i32 = arith.constant 1 : i32
    %0 = arith.addi %arg1, %c1_i32 : i32
    %c16_i32 = arith.constant 16 : i32
    %1 = arith.muli %0, %c16_i32 : i32
    %c1_i32_0 = arith.constant 1 : i32
    %2 = arith.subi %1, %c1_i32_0 : i32
    %c0_i32 = arith.constant 0 : i32
    %c0_i32_1 = arith.constant 0 : i32
    %c0_i32_2 = arith.constant 0 : i32
    return %arg0, %2, %c0_i32, %c0_i32_1 : i32, i32, i32, i32
  }
  func.func @transform_1(%arg0: i32, %arg1: i32) -> (i32, i32, i32, i32) {
    %c1_i32 = arith.constant 1 : i32
    %0 = arith.addi %arg1, %c1_i32 : i32
    %c0_i32 = arith.constant 0 : i32
    %c0_i32_0 = arith.constant 0 : i32
    %c0_i32_1 = arith.constant 0 : i32
    return %arg0, %0, %c0_i32, %c0_i32_0 : i32, i32, i32, i32
  }
  func.func @transform_2(%arg0: i32, %arg1: i32) -> (i32, i32, i32, i32) {
    %c2_i32 = arith.constant 2 : i32
    %0 = arith.addi %arg1, %c2_i32 : i32
    %c16_i32 = arith.constant 16 : i32
    %1 = arith.muli %0, %c16_i32 : i32
    %c0_i32 = arith.constant 0 : i32
    %c0_i32_0 = arith.constant 0 : i32
    %c0_i32_1 = arith.constant 0 : i32
    return %arg0, %1, %c0_i32, %c0_i32_0 : i32, i32, i32, i32
  }
  func.func @transform_3(%arg0: i32, %arg1: i32) -> (i32, i32, i32, i32) {
    %c0_i32 = arith.constant 0 : i32
    %c0_i32_0 = arith.constant 0 : i32
    %c0_i32_1 = arith.constant 0 : i32
    return %arg0, %arg1, %c0_i32, %c0_i32_0 : i32, i32, i32, i32
  }
  func.func @transform_4(%arg0: i32, %arg1: i32) -> (i32, i32) {
    %c0_i32 = arith.constant 0 : i32
    %c0_i32_0 = arith.constant 0 : i32
    %c0_i32_1 = arith.constant 0 : i32
    return %c0_i32, %c0_i32_0 : i32, i32
  }
  func.func @transform_5(%arg0: i32, %arg1: i32) -> (i32, i32) {
    %c0_i32 = arith.constant 0 : i32
    %c0_i32_0 = arith.constant 0 : i32
    %c0_i32_1 = arith.constant 0 : i32
    return %c0_i32, %c0_i32_0 : i32, i32
  }
  func.func @transform_6(%arg0: i32, %arg1: i32) -> (i32, i32) {
    %c0_i32 = arith.constant 0 : i32
    %c0_i32_0 = arith.constant 0 : i32
    %c0_i32_1 = arith.constant 0 : i32
    return %c0_i32, %c0_i32_0 : i32, i32
  }
  func.func @transform_7(%arg0: i32, %arg1: i32) -> (i32, i32, i32) {
    %c0_i32 = arith.constant 0 : i32
    %c0_i32_0 = arith.constant 0 : i32
    %c0_i32_1 = arith.constant 0 : i32
    %c0_i32_2 = arith.constant 0 : i32
    return %c0_i32, %c0_i32_0, %c0_i32_1 : i32, i32, i32
  }
  func.func @transform_8(%arg0: i32, %arg1: i32) -> (i32, i32) {
    %c0_i32 = arith.constant 0 : i32
    %c0_i32_0 = arith.constant 0 : i32
    %c0_i32_1 = arith.constant 0 : i32
    return %c0_i32, %c0_i32_0 : i32, i32
  }
  func.func @transform_9(%arg0: i32, %arg1: i32) -> (i32, i32) {
    %c0_i32 = arith.constant 0 : i32
    %c0_i32_0 = arith.constant 0 : i32
    %c0_i32_1 = arith.constant 0 : i32
    return %c0_i32, %c0_i32_0 : i32, i32
  }
  func.func @transform_10(%arg0: i32, %arg1: i32) -> (i32, i32, i32, i32) {
    %c0_i32 = arith.constant 0 : i32
    %c0_i32_0 = arith.constant 0 : i32
    %c0_i32_1 = arith.constant 0 : i32
    return %arg0, %arg1, %c0_i32, %c0_i32_0 : i32, i32, i32, i32
  }
}

</mosaic_0001>

<llo_original>
// kernel: tpu_custom_call.1
$region0: #{tpu_custom_call.1}
  #allocation0 [shape = 'u32[]', space=smem, size = 0x4, offset = 0x4, fixed_abs, tag = 'smem constant byte address 0x4 - core index']
  #allocation1 [shape = 'u32[144,128]{1,0:T(1,128)}', space=vmem, size = 0x12000, scoped, tag = 'internal scratch']
  %s0 = inlined_call_operand.vmem [shape: bf16[2,33,24,4], index: 0, kind: input, shape index: {}]
  %s1 = inlined_call_operand.vmem [shape: bf16[2,33,24,4], index: 1, kind: input, shape index: {}]
  %s2 = inlined_call_operand.vmem [shape: bf16[2,33,24,4], index: 2, kind: input, shape index: {}]
  %s3 = inlined_call_operand.vmem [shape: f32[2,16,16,4], index: 3, kind: input, shape index: {}]
  %s4 = inlined_call_operand.vmem [shape: bf16[4,2], index: 4, kind: input, shape index: {}]
  %s5 = inlined_call_operand.vmem [shape: f32[1,2], index: 5, kind: input, shape index: {}]
  %s6 = inlined_call_operand.vmem [shape: f32[1,2], index: 6, kind: input, shape index: {}]
  %s7 = inlined_call_operand.vmem [shape: bf16[9,2,4], index: 7, kind: input, shape index: {}]
  %s8 = inlined_call_operand.vmem [shape: f32[1,4], index: 8, kind: input, shape index: {}]
  %s9 = inlined_call_operand.vmem [shape: f32[1,4], index: 9, kind: input, shape index: {}]
  %s10 = inlined_call_operand.vmem [shape: f32[2,16,16,4], index: 10, kind: output, shape index: {}]
  %s11 = sld [smem:[#allocation0]]
  $region73: #{tpu_custom_call.1} parent=0
    _
  %s13 = ssub.s32 1, %s11
  %s14 = scalar_select 0, %s13, %s11
  loop: start=0, step=1, limit=4
  $region2: #{tpu_custom_call.1} parent=0 // loop_pre_header
    _
  $region3: #{tpu_custom_call.1} parent=0 // loop_header
    %s16 = sphi 0, %s20
    %p17 = scmp.ge.s32.totalorder %s16, 4
    %s23 = sphi 0, %s35
    %s24 = sphi 0, %s31
    %s25 = sphi 0, %s23
    %s26 = sphi 0, %s24
    %s27 = sphi 0, %s25
    %s28 = sphi 0, %s26
    %s46 = sphi 0, %s48
    %s49 = sphi 0, %s46
    %s50 = sphi 0, %s49
    %s66 = sphi 0, %s50
    %s76 = sphi 0, %s78
    %s79 = sphi 0, %s76
    %s80 = sphi 0, %s79
    %s96 = sphi 0, %s80
    %s108 = sphi 0, %s110
    %s111 = sphi 0, %s108
    %s112 = sphi 0, %s111
    %s128 = sphi 0, %s112
    %s136 = sphi 0, %s138
    %s139 = sphi 0, %s136
    %s140 = sphi 0, %s139
    %s156 = sphi 0, %s140
    %s160 = sphi 0, %s160
    %s162 = sphi 0, %s160
    %s163 = sphi 0, %s162
    %s177 = sphi 0, %s163
    %s181 = sphi 0, %s181
    %s183 = sphi 0, %s181
    %s184 = sphi 0, %s183
    %s198 = sphi 0, %s184
    %s202 = sphi 0, %s202
    %s204 = sphi 0, %s202
    %s205 = sphi 0, %s204
    %s219 = sphi 0, %s205
    %s223 = sphi 0, %s223
    %s225 = sphi 0, %s223
    %s226 = sphi 0, %s225
    %s240 = sphi 0, %s226
    %s244 = sphi 0, %s244
    %s246 = sphi 0, %s244
    %s247 = sphi 0, %s246
    %s261 = sphi 0, %s247
    %s265 = sphi 0, %s265
    %s267 = sphi 0, %s265
    %s268 = sphi 0, %s267
    %s282 = sphi 0, %s268
    %s290 = sphi 0, %s292
    %s293 = sphi 0, %s290
    %s294 = sphi 0, %s293
    %s310 = sphi 0, %s294
  $region4: #{tpu_custom_call.1} parent=0 // loop_header_branch
    %19 = sbr.rel (%p17) target = $region8
  $region5: #{tpu_custom_call.1} parent=0 // loop_body
    %s21 = ssub.s32 %s16, 1
    %s22 = ssub.s32 %s16, 2
    %s29 = sadd.s32 1, %s24
    %p30 = scmp.ge.s32.totalorder %s29, 1
    %s31 = scalar_select %p30, 0, %s29
    %s32 = sadd.s32 1, %s23
    %s33 = scalar_select %p30, %s32, %s23
    %p34 = scmp.ge.s32.totalorder %s33, 2
    %s35 = scalar_select %p34, 0, %s33
    %s36 = sadd.s32 %s24, 1
    %s37 = smul.u32 %s36, 16
    %s38 = ssub.s32 %s37, 1
    %s39 = sadd.s32 %s31, 1
    %s40 = smul.u32 %s39, 16
    %s41 = ssub.s32 %s40, 1
    %s42 = ssub.s32 %s23, %s35
    %s43 = ssub.s32 %s38, %s41
    %s44 = sor.u32 %s42, %s43
    %p45 = scmp.eq.s32.totalorder %s44, 0
    %s47 = sadd.s32 %s46, 1
    %s48 = scalar_select %p45, %s46, %s47
    %p51 = pneg %p45
    %p52 = scmp.eq.s32.totalorder %s16, 1
    %p53 = por %p51, %p52
    %p54 = scmp.ne.s32.totalorder %s46, %s49
    %p55 = scmp.eq.s32.totalorder %s16, 0
    %p56 = por %p54, %p55
    %p57 = scmp.ne.s32.totalorder %s46, %s49
    %p58 = scmp.eq.s32.totalorder %s21, 1
    %p59 = por %p57, %p58
    %p60 = scmp.ne.s32.totalorder %s49, %s50
    %p61 = scmp.eq.s32.totalorder %s21, 0
    %p62 = por %p60, %p61
    %p63 = scmp.ne.s32.totalorder %s49, %s50
    %p64 = scmp.eq.s32.totalorder %s22, 1
    %p65 = por %p63, %p64
    %p67 = scmp.ne.s32.totalorder %s50, %s66
    %p68 = scmp.eq.s32.totalorder %s22, 0
    %p69 = por %p67, %p68
    %s70 = sadd.s32 %s24, 1
    %s71 = sadd.s32 %s31, 1
    %s72 = ssub.s32 %s23, %s35
    %s73 = ssub.s32 %s70, %s71
    %s74 = sor.u32 %s72, %s73
    %p75 = scmp.eq.s32.totalorder %s74, 0
    %s77 = sadd.s32 %s76, 1
    %s78 = scalar_select %p75, %s76, %s77
    %p81 = pneg %p75
    %p82 = scmp.eq.s32.totalorder %s16, 1
    %p83 = por %p81, %p82
    %p84 = scmp.ne.s32.totalorder %s76, %s79
    %p85 = scmp.eq.s32.totalorder %s16, 0
    %p86 = por %p84, %p85
    %p87 = scmp.ne.s32.totalorder %s76, %s79
    %p88 = scmp.eq.s32.totalorder %s21, 1
    %p89 = por %p87, %p88
    %p90 = scmp.ne.s32.totalorder %s79, %s80
    %p91 = scmp.eq.s32.totalorder %s21, 0
    %p92 = por %p90, %p91
    %p93 = scmp.ne.s32.totalorder %s79, %s80
    %p94 = scmp.eq.s32.totalorder %s22, 1
    %p95 = por %p93, %p94
    %p97 = scmp.ne.s32.totalorder %s80, %s96
    %p98 = scmp.eq.s32.totalorder %s22, 0
    %p99 = por %p97, %p98
    %s100 = sadd.s32 %s24, 2
    %s101 = smul.u32 %s100, 16
    %s102 = sadd.s32 %s31, 2
    %s103 = smul.u32 %s102, 16
    %s104 = ssub.s32 %s23, %s35
    %s105 = ssub.s32 %s101, %s103
    %s106 = sor.u32 %s104, %s105
    %p107 = scmp.eq.s32.totalorder %s106, 0
    %s109 = sadd.s32 %s108, 1
    %s110 = scalar_select %p107, %s108, %s109
    %p113 = pneg %p107
    %p114 = scmp.eq.s32.totalorder %s16, 1
    %p115 = por %p113, %p114
    %p116 = scmp.ne.s32.totalorder %s108, %s111
    %p117 = scmp.eq.s32.totalorder %s16, 0
    %p118 = por %p116, %p117
    %p119 = scmp.ne.s32.totalorder %s108, %s111
    %p120 = scmp.eq.s32.totalorder %s21, 1
    %p121 = por %p119, %p120
    %p122 = scmp.ne.s32.totalorder %s111, %s112
    %p123 = scmp.eq.s32.totalorder %s21, 0
    %p124 = por %p122, %p123
    %p125 = scmp.ne.s32.totalorder %s111, %s112
    %p126 = scmp.eq.s32.totalorder %s22, 1
    %p127 = por %p125, %p126
    %p129 = scmp.ne.s32.totalorder %s112, %s128
    %p130 = scmp.eq.s32.totalorder %s22, 0
    %p131 = por %p129, %p130
    %s132 = ssub.s32 %s23, %s35
    %s133 = ssub.s32 %s24, %s31
    %s134 = sor.u32 %s132, %s133
    %p135 = scmp.eq.s32.totalorder %s134, 0
    %s137 = sadd.s32 %s136, 1
    %s138 = scalar_select %p135, %s136, %s137
    %p141 = pneg %p135
    %p142 = scmp.eq.s32.totalorder %s16, 1
    %p143 = por %p141, %p142
    %p144 = scmp.ne.s32.totalorder %s136, %s139
    %p145 = scmp.eq.s32.totalorder %s16, 0
    %p146 = por %p144, %p145
    %p147 = scmp.ne.s32.totalorder %s136, %s139
    %p148 = scmp.eq.s32.totalorder %s21, 1
    %p149 = por %p147, %p148
    %p150 = scmp.ne.s32.totalorder %s139, %s140
    %p151 = scmp.eq.s32.totalorder %s21, 0
    %p152 = por %p150, %p151
    %p153 = scmp.ne.s32.totalorder %s139, %s140
    %p154 = scmp.eq.s32.totalorder %s22, 1
    %p155 = por %p153, %p154
    %p157 = scmp.ne.s32.totalorder %s140, %s156
    %p158 = scmp.eq.s32.totalorder %s22, 0
    %p159 = por %p157, %p158
    %s161 = sadd.s32 %s160, 1
    %p164 = scmp.eq.s32.totalorder %s16, 1
    %p165 = scmp.ne.s32.totalorder %s160, %s162
    %p166 = scmp.eq.s32.totalorder %s16, 0
    %p167 = por %p165, %p166
    %p168 = scmp.ne.s32.totalorder %s160, %s162
    %p169 = scmp.eq.s32.totalorder %s21, 1
    %p170 = por %p168, %p169
    %p171 = scmp.ne.s32.totalorder %s162, %s163
    %p172 = scmp.eq.s32.totalorder %s21, 0
    %p173 = por %p171, %p172
    %p174 = scmp.ne.s32.totalorder %s162, %s163
    %p175 = scmp.eq.s32.totalorder %s22, 1
    %p176 = por %p174, %p175
    %p178 = scmp.ne.s32.totalorder %s163, %s177
    %p179 = scmp.eq.s32.totalorder %s22, 0
    %p180 = por %p178, %p179
    %s182 = sadd.s32 %s181, 1
    %p185 = scmp.eq.s32.totalorder %s16, 1
    %p186 = scmp.ne.s32.totalorder %s181, %s183
    %p187 = scmp.eq.s32.totalorder %s16, 0
    %p188 = por %p186, %p187
    %p189 = scmp.ne.s32.totalorder %s181, %s183
    %p190 = scmp.eq.s32.totalorder %s21, 1
    %p191 = por %p189, %p190
    %p192 = scmp.ne.s32.totalorder %s183, %s184
    %p193 = scmp.eq.s32.totalorder %s21, 0
    %p194 = por %p192, %p193
    %p195 = scmp.ne.s32.totalorder %s183, %s184
    %p196 = scmp.eq.s32.totalorder %s22, 1
    %p197 = por %p195, %p196
    %p199 = scmp.ne.s32.totalorder %s184, %s198
    %p200 = scmp.eq.s32.totalorder %s22, 0
    %p201 = por %p199, %p200
    %s203 = sadd.s32 %s202, 1
    %p206 = scmp.eq.s32.totalorder %s16, 1
    %p207 = scmp.ne.s32.totalorder %s202, %s204
    %p208 = scmp.eq.s32.totalorder %s16, 0
    %p209 = por %p207, %p208
    %p210 = scmp.ne.s32.totalorder %s202, %s204
    %p211 = scmp.eq.s32.totalorder %s21, 1
    %p212 = por %p210, %p211
    %p213 = scmp.ne.s32.totalorder %s204, %s205
    %p214 = scmp.eq.s32.totalorder %s21, 0
    %p215 = por %p213, %p214
    %p216 = scmp.ne.s32.totalorder %s204, %s205
    %p217 = scmp.eq.s32.totalorder %s22, 1
    %p218 = por %p216, %p217
    %p220 = scmp.ne.s32.totalorder %s205, %s219
    %p221 = scmp.eq.s32.totalorder %s22, 0
    %p222 = por %p220, %p221
    %s224 = sadd.s32 %s223, 1
    %p227 = scmp.eq.s32.totalorder %s16, 1
    %p228 = scmp.ne.s32.totalorder %s223, %s225
    %p229 = scmp.eq.s32.totalorder %s16, 0
    %p230 = por %p228, %p229
    %p231 = scmp.ne.s32.totalorder %s223, %s225
    %p232 = scmp.eq.s32.totalorder %s21, 1
    %p233 = por %p231, %p232
    %p234 = scmp.ne.s32.totalorder %s225, %s226
    %p235 = scmp.eq.s32.totalorder %s21, 0
    %p236 = por %p234, %p235
    %p237 = scmp.ne.s32.totalorder %s225, %s226
    %p238 = scmp.eq.s32.totalorder %s22, 1
    %p239 = por %p237, %p238
    %p241 = scmp.ne.s32.totalorder %s226, %s240
    %p242 = scmp.eq.s32.totalorder %s22, 0
    %p243 = por %p241, %p242
    %s245 = sadd.s32 %s244, 1
    %p248 = scmp.eq.s32.totalorder %s16, 1
    %p249 = scmp.ne.s32.totalorder %s244, %s246
    %p250 = scmp.eq.s32.totalorder %s16, 0
    %p251 = por %p249, %p250
    %p252 = scmp.ne.s32.totalorder %s244, %s246
    %p253 = scmp.eq.s32.totalorder %s21, 1
    %p254 = por %p252, %p253
    %p255 = scmp.ne.s32.totalorder %s246, %s247
    %p256 = scmp.eq.s32.totalorder %s21, 0
    %p257 = por %p255, %p256
    %p258 = scmp.ne.s32.totalorder %s246, %s247
    %p259 = scmp.eq.s32.totalorder %s22, 1
    %p260 = por %p258, %p259
    %p262 = scmp.ne.s32.totalorder %s247, %s261
    %p263 = scmp.eq.s32.totalorder %s22, 0
    %p264 = por %p262, %p263
    %s266 = sadd.s32 %s265, 1
    %p269 = scmp.eq.s32.totalorder %s16, 1
    %p270 = scmp.ne.s32.totalorder %s265, %s267
    %p271 = scmp.eq.s32.totalorder %s16, 0
    %p272 = por %p270, %p271
    %p273 = scmp.ne.s32.totalorder %s265, %s267
    %p274 = scmp.eq.s32.totalorder %s21, 1
    %p275 = por %p273, %p274
    %p276 = scmp.ne.s32.totalorder %s267, %s268
    %p277 = scmp.eq.s32.totalorder %s21, 0
    %p278 = por %p276, %p277
    %p279 = scmp.ne.s32.totalorder %s267, %s268
    %p280 = scmp.eq.s32.totalorder %s22, 1
    %p281 = por %p279, %p280
    %p283 = scmp.ne.s32.totalorder %s268, %s282
    %p284 = scmp.eq.s32.totalorder %s22, 0
    %p285 = por %p283, %p284
    %s286 = ssub.s32 %s23, %s35
    %s287 = ssub.s32 %s24, %s31
    %s288 = sor.u32 %s286, %s287
    %p289 = scmp.eq.s32.totalorder %s288, 0
    %s291 = sadd.s32 %s290, 1
    %s292 = scalar_select %p289, %s290, %s291
    %p295 = pneg %p289
    %p296 = scmp.eq.s32.totalorder %s16, 1
    %p297 = por %p295, %p296
    %p298 = scmp.ne.s32.totalorder %s290, %s293
    %p299 = scmp.eq.s32.totalorder %s16, 0
    %p300 = por %p298, %p299
    %p301 = scmp.ne.s32.totalorder %s290, %s293
    %p302 = scmp.eq.s32.totalorder %s21, 1
    %p303 = por %p301, %p302
    %p304 = scmp.ne.s32.totalorder %s293, %s294
    %p305 = scmp.eq.s32.totalorder %s21, 0
    %p306 = por %p304, %p305
    %p307 = scmp.ne.s32.totalorder %s293, %s294
    %p308 = scmp.eq.s32.totalorder %s22, 1
    %p309 = por %p307, %p308
    %p311 = scmp.ne.s32.totalorder %s294, %s310
    %p312 = scmp.eq.s32.totalorder %s22, 0
    %p313 = por %p311, %p312
    %p314 = scmp.le.s32.totalorder 1, %s16
    %p315 = scmp.lt.s32.totalorder %s16, 3
    %p316 = pnand %p314, %p315
    %p317 = pneg %p316
    // Predicated region
    $region9: #{tpu_custom_call.1} parent=5 // pred_check
      _
    $region10: #{tpu_custom_call.1} parent=5 // pred_check_branch
      %319 = sbr.rel (%p316) target = $region12
    $region11: #{tpu_custom_call.1} parent=5 // pred_region
      %s320 = ssub.s32 %s16, 1
      // Predicated region
      $region13: #{tpu_custom_call.1} parent=11 // pred_check
        %p321 = pneg %p173
      $region14: #{tpu_custom_call.1} parent=11 // pred_check_branch
        %323 = sbr.rel (%p321) target = $region16
      $region15: #{tpu_custom_call.1} parent=11 // pred_region
        _
      $region16: #{tpu_custom_call.1} parent=11 // pred_fallthru
        _
      // Predicated region
      $region17: #{tpu_custom_call.1} parent=11 // pred_check
        %p324 = pneg %p194
      $region18: #{tpu_custom_call.1} parent=11 // pred_check_branch
        %326 = sbr.rel (%p324) target = $region20
      $region19: #{tpu_custom_call.1} parent=11 // pred_region
        _
      $region20: #{tpu_custom_call.1} parent=11 // pred_fallthru
        _
      // Predicated region
      $region21: #{tpu_custom_call.1} parent=11 // pred_check
        %p327 = pneg %p215
      $region22: #{tpu_custom_call.1} parent=11 // pred_check_branch
        %329 = sbr.rel (%p327) target = $region24
      $region23: #{tpu_custom_call.1} parent=11 // pred_region
        _
      $region24: #{tpu_custom_call.1} parent=11 // pred_fallthru
        _
      // Predicated region
      $region25: #{tpu_custom_call.1} parent=11 // pred_check
        %p330 = pneg %p236
      $region26: #{tpu_custom_call.1} parent=11 // pred_check_branch
        %332 = sbr.rel (%p330) target = $region28
      $region27: #{tpu_custom_call.1} parent=11 // pred_region
        _
      $region28: #{tpu_custom_call.1} parent=11 // pred_fallthru
        _
      // Predicated region
      $region29: #{tpu_custom_call.1} parent=11 // pred_check
        %p333 = pneg %p257
      $region30: #{tpu_custom_call.1} parent=11 // pred_check_branch
        %335 = sbr.rel (%p333) target = $region32
      $region31: #{tpu_custom_call.1} parent=11 // pred_region
        _
      $region32: #{tpu_custom_call.1} parent=11 // pred_fallthru
        _
      // Predicated region
      $region33: #{tpu_custom_call.1} parent=11 // pred_check
        %p336 = pneg %p278
      $region34: #{tpu_custom_call.1} parent=11 // pred_check_branch
        %338 = sbr.rel (%p336) target = $region36
      $region35: #{tpu_custom_call.1} parent=11 // pred_region
        _
      $region36: #{tpu_custom_call.1} parent=11 // pred_fallthru
        _
    $region12: #{tpu_custom_call.1} parent=5 // pred_fallthru
      _
    %p339 = scmp.lt.s32.totalorder %s16, 2
    // Predicated region
    $region37: #{tpu_custom_call.1} parent=5 // pred_check
      %p340 = pneg %p339
    $region38: #{tpu_custom_call.1} parent=5 // pred_check_branch
      %342 = sbr.rel (%p340) target = $region40
    $region39: #{tpu_custom_call.1} parent=5 // pred_region
      // Predicated region
      $region41: #{tpu_custom_call.1} parent=39 // pred_check
        %p343 = pneg %p56
      $region42: #{tpu_custom_call.1} parent=39 // pred_check_branch
        %345 = sbr.rel (%p343) target = $region44
      $region43: #{tpu_custom_call.1} parent=39 // pred_region
        %s346 = sadd.s32 %s24, 1
        %s347 = smul.u32 %s346, 16
        %s348 = ssub.s32 %s347, 1
        %p349 = scmp.lt.s32.totalorder %s23, 1
        %s350 = scalar_select %p349, %s23, 1
        %p351 = scmp.lt.s32.totalorder %s348, 32
        %s352 = scalar_select %p351, %s348, 32
        %s353 = smul.addr %s352, 3
        %s354 = smul.addr %s350, 99
        %s355 = sadd.s32 %s353, %s354
        %s356 = smul.addr %s355, 4
        %s357 = scalar_lea.vmem %s0, %s356
        %s358 = sadd.s32 %s24, 1
        %s359 = smul.u32 %s358, 16
        %s360 = ssub.s32 %s359, 1
      $region44: #{tpu_custom_call.1} parent=39 // pred_fallthru
        _
      // Predicated region
      $region45: #{tpu_custom_call.1} parent=39 // pred_check
        %p361 = pneg %p86
      $region46: #{tpu_custom_call.1} parent=39 // pred_check_branch
        %363 = sbr.rel (%p361) target = $region48
      $region47: #{tpu_custom_call.1} parent=39 // pred_region
        %s364 = sadd.s32 %s24, 1
        %s365 = smul.u32 16, %s364
        %s366 = ssub.s32 33, %s365
        %p367 = scmp.lt.s32.totalorder %s366, 16
        %s368 = scalar_select %p367, %s366, 16
        %s369 = smul.u32 64, %s368
        %s370 = smul.u32 %s369, 3
        %p371 = scmp.lt.s32.totalorder %s23, 1
        %s372 = scalar_select %p371, %s23, 1
        %p373 = scmp.lt.s32.totalorder %s365, 32
        %s374 = scalar_select %p373, %s365, 32
        %s375 = smul.addr %s374, 3
        %s376 = smul.addr %s372, 99
        %s377 = sadd.s32 %s375, %s376
        %s378 = smul.addr %s377, 4
        %s379 = scalar_lea.vmem %s1, %s378
        %s380 = sadd.s32 %s24, 1
        %s381 = smul.u32 16, %s380
        %s382 = ssub.s32 33, %s381
        %p383 = scmp.lt.s32.totalorder %s382, 16
        %s384 = scalar_select %p383, %s382, 16
        %s385 = smul.u32 64, %s384
        %s386 = smul.u32 %s385, 3
      $region48: #{tpu_custom_call.1} parent=39 // pred_fallthru
        _
      // Predicated region
      $region49: #{tpu_custom_call.1} parent=39 // pred_check
        %p387 = pneg %p118
      $region50: #{tpu_custom_call.1} parent=39 // pred_check_branch
        %389 = sbr.rel (%p387) target = $region52
      $region51: #{tpu_custom_call.1} parent=39 // pred_region
        %s390 = sadd.s32 %s24, 2
        %s391 = smul.u32 %s390, 16
        %p392 = scmp.lt.s32.totalorder %s23, 1
        %s393 = scalar_select %p392, %s23, 1
        %p394 = scmp.lt.s32.totalorder %s391, 32
        %s395 = scalar_select %p394, %s391, 32
        %s396 = smul.addr %s395, 3
        %s397 = smul.addr %s393, 99
        %s398 = sadd.s32 %s396, %s397
        %s399 = smul.addr %s398, 4
        %s400 = scalar_lea.vmem %s2, %s399
        %s401 = sadd.s32 %s24, 2
        %s402 = smul.u32 %s401, 16
      $region52: #{tpu_custom_call.1} parent=39 // pred_fallthru
        _
      // Predicated region
      $region53: #{tpu_custom_call.1} parent=39 // pred_check
        %p403 = pneg %p146
      $region54: #{tpu_custom_call.1} parent=39 // pred_check_branch
        %405 = sbr.rel (%p403) target = $region56
      $region55: #{tpu_custom_call.1} parent=39 // pred_region
        %s406 = smul.u32 16, %s24
        %p407 = scmp.lt.s32.totalorder %s23, 1
        %s408 = scalar_select %p407, %s23, 1
        %p409 = scmp.lt.s32.totalorder %s406, 15
        %s410 = scalar_select %p409, %s406, 15
        %s411 = smul.addr %s410, 2
        %s412 = smul.addr %s408, 32
        %s413 = sadd.s32 %s411, %s412
        %s414 = smul.addr %s413, 8
        %s415 = scalar_lea.vmem %s3, %s414
        %s416 = smul.u32 16, %s24
      $region56: #{tpu_custom_call.1} parent=39 // pred_fallthru
        _
    $region40: #{tpu_custom_call.1} parent=5 // pred_fallthru
      _
    %p417 = scmp.le.s32.totalorder 1, %s16
    %p418 = scmp.lt.s32.totalorder %s16, 3
    %p419 = pnand %p417, %p418
    %p420 = pneg %p419
    // Predicated region
    $region57: #{tpu_custom_call.1} parent=5 // pred_check
      _
    $region58: #{tpu_custom_call.1} parent=5 // pred_check_branch
      %422 = sbr.rel (%p419) target = $region60
    $region59: #{tpu_custom_call.1} parent=5 // pred_region
      %s423 = ssub.s32 %s16, 1
      %s424 = sadd.s32 %s26, 1
      %s425 = smul.u32 %s424, 16
      %s426 = ssub.s32 %s425, 1
      %p427 = scmp.lt.s32.totalorder %s25, 1
      %s428 = scalar_select %p427, %s25, 1
      %p429 = scmp.lt.s32.totalorder %s426, 32
      %s430 = scalar_select %p429, %s426, 32
      %s431 = smul.addr %s430, 3
      %s432 = smul.addr %s428, 99
      %s433 = sadd.s32 %s431, %s432
      %s434 = smul.addr %s433, 4
      %s435 = scalar_lea.vmem %s0, %s434
      %p436 = pneg %p62
      %p437 = pneg %p59
      %s438 = sadd.s32 %s26, 1
      %s439 = smul.u32 16, %s438
      %s440 = ssub.s32 33, %s439
      %p441 = scmp.lt.s32.totalorder %s440, 16
      %s442 = scalar_select %p441, %s440, 16
      %s443 = smul.u32 64, %s442
      %s444 = smul.u32 %s443, 3
      %p445 = scmp.lt.s32.totalorder %s25, 1
      %s446 = scalar_select %p445, %s25, 1
      %p447 = scmp.lt.s32.totalorder %s439, 32
      %s448 = scalar_select %p447, %s439, 32
      %s449 = smul.addr %s448, 3
      %s450 = smul.addr %s446, 99
      %s451 = sadd.s32 %s449, %s450
      %s452 = smul.addr %s451, 4
      %s453 = scalar_lea.vmem %s1, %s452
      %p454 = pneg %p92
      %p455 = pneg %p89
      %s456 = sadd.s32 %s26, 2
      %s457 = smul.u32 %s456, 16
      %p458 = scmp.lt.s32.totalorder %s25, 1
      %s459 = scalar_select %p458, %s25, 1
      %p460 = scmp.lt.s32.totalorder %s457, 32
      %s461 = scalar_select %p460, %s457, 32
      %s462 = smul.addr %s461, 3
      %s463 = smul.addr %s459, 99
      %s464 = sadd.s32 %s462, %s463
      %s465 = smul.addr %s464, 4
      %s466 = scalar_lea.vmem %s2, %s465
      %p467 = pneg %p124
      %p468 = pneg %p121
      %s469 = smul.u32 16, %s26
      %p470 = scmp.lt.s32.totalorder %s25, 1
      %s471 = scalar_select %p470, %s25, 1
      %p472 = scmp.lt.s32.totalorder %s469, 15
      %s473 = scalar_select %p472, %s469, 15
      %s474 = smul.addr %s473, 2
      %s475 = smul.addr %s471, 32
      %s476 = sadd.s32 %s474, %s475
      %s477 = smul.addr %s476, 8
      %s478 = scalar_lea.vmem %s3, %s477
      %p479 = pneg %p152
      %p480 = pneg %p149
      %p481 = pneg %p173
      %p482 = pneg %p170
      %p483 = pneg %p194
      %p484 = pneg %p191
      %p485 = pneg %p215
      %p486 = pneg %p212
      %p487 = pneg %p236
      %p488 = pneg %p233
      %p489 = pneg %p257
      %p490 = pneg %p254
      %p491 = pneg %p278
      %p492 = pneg %p275
      %p493 = pneg %p306
      %p494 = pneg %p303
      %s495 = smul.u32 16, %s26
      %p496 = scmp.lt.s32.totalorder %s25, 1
      %s497 = scalar_select %p496, %s25, 1
      %p498 = scmp.lt.s32.totalorder %s495, 15
      %s499 = scalar_select %p498, %s495, 15
      %s500 = smul.addr %s499, 2
      %s501 = smul.addr %s497, 32
      %s502 = sadd.s32 %s500, %s501
      %s503 = smul.addr %s502, 8
      %s504 = scalar_lea.vmem %s10, %s503
      %s505 = sadd.s32 %s26, 1
      %s506 = smul.u32 %s505, 16
      %s507 = ssub.s32 %s506, 1
      %p508 = scmp.lt.s32.totalorder %s25, 1
      %s509 = scalar_select %p508, %s25, 1
      %p510 = scmp.lt.s32.totalorder %s507, 32
      %s511 = scalar_select %p510, %s507, 32
      %s512 = smul.addr %s511, 3
      %s513 = smul.addr %s509, 99
      %s514 = sadd.s32 %s512, %s513
      %s515 = smul.addr %s514, 4
      %s516 = scalar_lea.vmem %s0, %s515
      %s517 = sadd.s32 %s26, 1
      %s518 = smul.u32 %s517, 16
      %s519 = ssub.s32 %s518, 1
      %s520 = sadd.s32 %s26, 1
      %s521 = smul.u32 16, %s520
      %s522 = ssub.s32 33, %s521
      %p523 = scmp.lt.s32.totalorder %s522, 16
      %s524 = scalar_select %p523, %s522, 16
      %s525 = smul.u32 64, %s524
      %s526 = smul.u32 %s525, 3
      %p527 = scmp.lt.s32.totalorder %s25, 1
      %s528 = scalar_select %p527, %s25, 1
      %p529 = scmp.lt.s32.totalorder %s521, 32
      %s530 = scalar_select %p529, %s521, 32
      %s531 = smul.addr %s530, 3
      %s532 = smul.addr %s528, 99
      %s533 = sadd.s32 %s531, %s532
      %s534 = smul.addr %s533, 4
      %s535 = scalar_lea.vmem %s1, %s534
      %s536 = sadd.s32 %s26, 1
      %s537 = smul.u32 16, %s536
      %s538 = ssub.s32 33, %s537
      %p539 = scmp.lt.s32.totalorder %s538, 16
      %s540 = scalar_select %p539, %s538, 16
      %s541 = smul.u32 64, %s540
      %s542 = smul.u32 %s541, 3
      %s543 = sadd.s32 %s26, 2
      %s544 = smul.u32 %s543, 16
      %p545 = scmp.lt.s32.totalorder %s25, 1
      %s546 = scalar_select %p545, %s25, 1
      %p547 = scmp.lt.s32.totalorder %s544, 32
      %s548 = scalar_select %p547, %s544, 32
      %s549 = smul.addr %s548, 3
      %s550 = smul.addr %s546, 99
      %s551 = sadd.s32 %s549, %s550
      %s552 = smul.addr %s551, 4
      %s553 = scalar_lea.vmem %s2, %s552
      %s554 = sadd.s32 %s26, 2
      %s555 = smul.u32 %s554, 16
      %s556 = smul.u32 16, %s26
      %p557 = scmp.lt.s32.totalorder %s25, 1
      %s558 = scalar_select %p557, %s25, 1
      %p559 = scmp.lt.s32.totalorder %s556, 15
      %s560 = scalar_select %p559, %s556, 15
      %s561 = smul.addr %s560, 2
      %s562 = smul.addr %s558, 32
      %s563 = sadd.s32 %s561, %s562
      %s564 = smul.addr %s563, 8
      %s565 = scalar_lea.vmem %s3, %s564
      %s566 = smul.u32 16, %s26
      %s567 = smul.u32 16, %s26
      %p568 = scmp.lt.s32.totalorder %s25, 1
      %s569 = scalar_select %p568, %s25, 1
      %p570 = scmp.lt.s32.totalorder %s567, 15
      %s571 = scalar_select %p570, %s567, 15
      %s572 = smul.addr %s571, 2
      %s573 = smul.addr %s569, 32
      %s574 = sadd.s32 %s572, %s573
      %s575 = smul.addr %s574, 8
      %s576 = scalar_lea.vmem %s10, %s575
      %s577 = smul.u32 16, %s26
      %v579 = vld [vmem:[%s4] sm:$0x3]
      %v580 = vld [vmem:[%s5] sm:$0x1]
      %v581 = vld [vmem:[%s6] sm:$0x1]
      %v582 = vld [vmem:[%s7] sm:$0x1]
      %v583 = vld [vmem:[%s7 + $0x1] sm:$0x1]
      %v584 = vld [vmem:[%s7 + $0x2] sm:$0x1]
      %v585 = vld [vmem:[%s7 + $0x3] sm:$0x1]
      %v586 = vld [vmem:[%s7 + $0x4] sm:$0x1]
      %v587 = vld [vmem:[%s7 + $0x5] sm:$0x1]
      %v588 = vld [vmem:[%s7 + $0x6] sm:$0x1]
      %v589 = vld [vmem:[%s7 + $0x7] sm:$0x1]
      %v590 = vld [vmem:[%s7 + $0x8] sm:$0x1]
      %v591 = vld [vmem:[%s8] sm:$0x1]
      %v592 = vld [vmem:[%s9] sm:$0x1]
      %v593 = vlaneseq
      %v594 = vshrl.u32 %v593, 7
      %v595 = vadd.s32 %v594, 8
      %v596 = vadd.s32 %v594, 16
      %vm597 = vcmp.ge.s32.totalorder %v594, 1
      %vm598 = vcmp.ge.s32.totalorder %v595, 1
      %vm599 = vcmp.ge.s32.totalorder %v596, 1
      %vm600 = vcmp.le.s32.totalorder %v594, 16
      %vm601 = vcmp.le.s32.totalorder %v595, 16
      %vm602 = vcmp.le.s32.totalorder %v596, 16
      %vm603 = vmand %vm597, %vm600
      %vm604 = vmand %vm598, %vm601
      %vm605 = vmand %vm599, %vm602
      %s606 = smul.u32 %s26, 16
      %v607 = vstv %s606
      %v608 = vadd.s32 %v607, 1
      %v609 = vadd.s32 %v607, 2
      %v610 = vadd.s32 %v607, 3
      %v611 = vadd.s32 %v607, 4
      %v612 = vadd.s32 %v607, 5
      %v613 = vadd.s32 %v607, 6
      %v614 = vadd.s32 %v607, 7
      %v615 = vadd.s32 %v607, 8
      %v616 = vadd.s32 %v607, 9
      %v617 = vadd.s32 %v607, 10
      %v618 = vadd.s32 %v607, 11
      %v619 = vadd.s32 %v607, 12
      %v620 = vadd.s32 %v607, 13
      %v621 = vadd.s32 %v607, 14
      %v622 = vadd.s32 %v607, 15
      %v623 = vld [vmem:[%s516] sm:$0xf]
      %v624 = vld [vmem:[%s516 + $0x4] sm:$0xf]
      %v625 = vld [vmem:[%s516 + $0x8] sm:$0xf]
      %s626 = ssub.s32 %s606, 1
      %p627 = scmp.ge.s32.totalorder %s626, 0
      %v631 = vunpack.c.l.b16 %v623
      %v632 = vunpack.c.l.b16 %v624
      %v633 = vunpack.c.l.b16 %v625
      %v634 = vpack.c.b16 %v632, %v631
      %v635 = vpack.c.b16 %v633, %v633
      %vm636 = vcmask 31744
      %v638 = vsel %vm636, %v634, 0
      %v641 = vsel %vm636, %v635, 0
      %vm643 = vcmask 1041408
      %v645 = vsel %vm643, %v579, 0
      %647 = vmatprep.subr.bf16.mxu0 0
      %648 = vmatpush1.bf16.msra.mxu0 0
      %649 = vmatprep.subr.bf16.mxu0 0
      %650 = vmatpush1.bf16.msra.mxu0 0
      %651 = vmatprep.subr.bf16.mxu0 0
      %652 = vmatpush1.bf16.msra.mxu0 0
      %653 = vmatprep.subr.bf16.mxu0 0
      %654 = vmatpush1.bf16.msra.mxu0 0
      %655 = vmatprep.subr.bf16.mxu0 0
      %656 = vmatpush1.bf16.msra.mxu0 0
      %657 = vmatprep.subr.bf16.mxu0 0
      %658 = vmatpush1.bf16.msra.mxu0 0
      %659 = vmatprep.subr.bf16.mxu0 0
      %660 = vmatpush1.bf16.msra.mxu0 0
      %661 = vmatprep.subr.bf16.mxu0 0
      %662 = vmatpush1.bf16.msra.mxu0 %v645
      %663 = vmatprep.subr.bf16.mxu0 0
      %664 = vmatpush2.bf16.msra.mxu0 0
      %665 = vmatprep.subr.bf16.mxu0 0
      %666 = vmatpush2.bf16.msra.mxu0 0
      %667 = vmatprep.subr.bf16.mxu0 0
      %668 = vmatpush2.bf16.msra.mxu0 0
      %669 = vmatprep.subr.bf16.mxu0 0
      %670 = vmatpush2.bf16.msra.mxu0 0
      %671 = vmatprep.subr.bf16.mxu0 0
      %672 = vmatpush2.bf16.msra.mxu0 0
      %673 = vmatprep.subr.bf16.mxu0 0
      %674 = vmatpush2.bf16.msra.mxu0 0
      %675 = vmatprep.subr.bf16.mxu0 0
      %676 = vmatpush2.bf16.msra.mxu0 0
      %677 = vmatprep.subr.bf16.mxu0 0
      %678 = vmatpush2.bf16.msra.mxu0 0
      %679 = vmatprep.mubr.bf16.mxu0 0
      %680 = vmatmul.mubr.bf16.gmra.mxu0 %v638
      %v681 = vpop.f32.mrf.mxu0
      %v682 = vadd.f32 0.0, %v681
      %v683 = vpop.f32.mrf.mxu0
      %v684 = vpop.f32.mrf.mxu0
      %v685 = vadd.f32 0.0, %v684
      %v686 = vpop.f32.mrf.mxu0
      %687 = vmatprep.mubr.bf16.mxu0 0
      %688 = vmatmul.mubr.bf16.gmra.mxu0 %v641
      %v689 = vpop.f32.mrf.mxu0
      %v690 = vadd.f32 0.0, %v689
      %v691 = vpop.f32.mrf.mxu0
      %v692 = vpop.f32.mrf.mxu0
      %v693 = vpop.f32.mrf.mxu0
      %694 = vdwg.mxu0
      %s695 = scalar_select %p627, 1, 0
      %v696 = vstv %s695
      %vm697 = vcmp.eq.s32.totalorder %v696, 1
      %vm698 = vmand %vm697, %vm603
      %vm699 = vmand %vm697, %vm604
      %vm700 = vmand %vm697, %vm605
      %v702 = vlaneseq
      %v703 = vshrl.u32 %v702, 7
      %v704 = vsub.s32 0, %v703
      %v705 = vrot.slane %v580, %v704
      %v707 = vmul.f32 %v682, %v705
      %v708 = vmul.f32 %v685, %v705
      %v709 = vmul.f32 %v690, %v705
      %v711 = vlaneseq
      %v712 = vshrl.u32 %v711, 7
      %v713 = vsub.s32 0, %v712
      %v714 = vrot.slane %v581, %v713
      %v716 = vadd.f32 %v707, %v714
      %v717 = vadd.f32 %v708, %v714
      %v718 = vadd.f32 %v709, %v714
      %v719 = vsel %vm698, 1, 0
      %v720 = vsel %vm699, 1, 0
      %v721 = vsel %vm700, 1, 0
      %vm722 = vcmp.eq.s32.totalorder %v719, 1
      %vm723 = vcmp.eq.s32.totalorder %v720, 1
      %vm724 = vcmp.eq.s32.totalorder %v721, 1
      %v725 = vsel %vm722, %v716, 0.0
      %v726 = vsel %vm723, %v717, 0.0
      %v727 = vsel %vm724, %v718, 0.0
      %v728 = vmin.f32 %v725, 20.0
      %v729 = vmin.f32 %v726, 20.0
      %v730 = vmin.f32 %v727, 20.0
      %v731 = vmul.f32 %v728, 1.442695
      %v732 = vpow.pop %v731
      %v733 = vmul.f32 %v729, 1.442695
      %v734 = vpow.pop %v733
      %v735 = vmul.f32 %v730, 1.442695
      %v736 = vpow.pop %v735
      %v737 = vadd.f32 %v732, 2.0
      %v738 = vadd.f32 %v734, 2.0
      %v739 = vadd.f32 %v736, 2.0
      %v740 = vmul.f32 %v732, %v737
      %v741 = vmul.f32 %v734, %v738
      %v742 = vmul.f32 %v736, %v739
      %v743 = vadd.f32 %v740, 2.0
      %v744 = vadd.f32 %v741, 2.0
      %v745 = vadd.f32 %v742, 2.0
      %v746 = vrcp.pop %v743
      %v747 = vrcp.pop %v744
      %v748 = vrcp.pop %v745
      %v749 = vmul.f32 %v740, %v746
      %v750 = vmul.f32 %v741, %v747
      %v751 = vmul.f32 %v742, %v748
      %vm752 = vcmp.gt.f32.partialorder %v725, 20.0
      %vm753 = vcmp.gt.f32.partialorder %v726, 20.0
      %vm754 = vcmp.gt.f32.partialorder %v727, 20.0
      %v755 = vsel %vm752, 1.0, %v749
      %v756 = vsel %vm753, 1.0, %v750
      %v757 = vsel %vm754, 1.0, %v751
      %v758 = vmul.f32 %v725, %v755
      %v759 = vmul.f32 %v726, %v756
      %v760 = vmul.f32 %v727, %v757
      %v761 = vpack.c.bf16 %v759, %v758
      %v762 = vpack.c.bf16 %v760, %v760
      %v763 = vld [vmem:[%s535] sm:$0xf]
      %v764 = vld [vmem:[%s535 + $0x4] sm:$0xf]
      %v765 = vld [vmem:[%s535 + $0x8] sm:$0xf]
      %v766 = vld [vmem:[%s535 + $0xc] sm:$0xf]
      %v767 = vld [vmem:[%s535 + $0x10] sm:$0xf]
      %v768 = vld [vmem:[%s535 + $0x14] sm:$0xf]
      %v769 = vld [vmem:[%s535 + $0x18] sm:$0xf]
      %v770 = vld [vmem:[%s535 + $0x1c] sm:$0xf]
      %v771 = vld [vmem:[%s535 + $0x20] sm:$0xf]
      %v772 = vld [vmem:[%s535 + $0x24] sm:$0xf]
      %v773 = vld [vmem:[%s535 + $0x28] sm:$0xf]
      %v774 = vld [vmem:[%s535 + $0x2c] sm:$0xf]
      %v775 = vld [vmem:[%s535 + $0x30] sm:$0xf]
      %v776 = vld [vmem:[%s535 + $0x34] sm:$0xf]
      %v777 = vld [vmem:[%s535 + $0x38] sm:$0xf]
      %v778 = vld [vmem:[%s535 + $0x3c] sm:$0xf]
      %v779 = vld [vmem:[%s535 + $0x40] sm:$0xf]
      %v780 = vld [vmem:[%s535 + $0x44] sm:$0xf]
      %v781 = vld [vmem:[%s535 + $0x48] sm:$0xf]
      %v782 = vld [vmem:[%s535 + $0x4c] sm:$0xf]
      %v783 = vld [vmem:[%s535 + $0x50] sm:$0xf]
      %v784 = vld [vmem:[%s535 + $0x54] sm:$0xf]
      %v785 = vld [vmem:[%s535 + $0x58] sm:$0xf]
      %v786 = vld [vmem:[%s535 + $0x5c] sm:$0xf]
      %v787 = vld [vmem:[%s535 + $0x60] sm:$0xf]
      %v788 = vld [vmem:[%s535 + $0x64] sm:$0xf]
      %v789 = vld [vmem:[%s535 + $0x68] sm:$0xf]
      %v790 = vld [vmem:[%s535 + $0x6c] sm:$0xf]
      %v791 = vld [vmem:[%s535 + $0x70] sm:$0xf]
      %v792 = vld [vmem:[%s535 + $0x74] sm:$0xf]
      %v793 = vld [vmem:[%s535 + $0x78] sm:$0xf]
      %v794 = vld [vmem:[%s535 + $0x7c] sm:$0xf]
      %v795 = vld [vmem:[%s535 + $0x80] sm:$0xf]
      %v796 = vld [vmem:[%s535 + $0x84] sm:$0xf]
      %v797 = vld [vmem:[%s535 + $0x88] sm:$0xf]
      %v798 = vld [vmem:[%s535 + $0x8c] sm:$0xf]
      %v799 = vld [vmem:[%s535 + $0x90] sm:$0xf]
      %v800 = vld [vmem:[%s535 + $0x94] sm:$0xf]
      %v801 = vld [vmem:[%s535 + $0x98] sm:$0xf]
      %v802 = vld [vmem:[%s535 + $0x9c] sm:$0xf]
      %v803 = vld [vmem:[%s535 + $0xa0] sm:$0xf]
      %v804 = vld [vmem:[%s535 + $0xa4] sm:$0xf]
      %v805 = vld [vmem:[%s535 + $0xa8] sm:$0xf]
      %v806 = vld [vmem:[%s535 + $0xac] sm:$0xf]
      %v807 = vld [vmem:[%s535 + $0xb0] sm:$0xf]
      %v808 = vld [vmem:[%s535 + $0xb4] sm:$0xf]
      %v809 = vld [vmem:[%s535 + $0xb8] sm:$0xf]
      %v810 = vld [vmem:[%s535 + $0xbc] sm:$0xf]
      %vm811 = vcmp.lt.s32.totalorder %v607, 16
      %vm812 = vcmp.lt.s32.totalorder %v608, 16
      %vm813 = vcmp.lt.s32.totalorder %v609, 16
      %vm814 = vcmp.lt.s32.totalorder %v610, 16
      %vm815 = vcmp.lt.s32.totalorder %v611, 16
      %vm816 = vcmp.lt.s32.totalorder %v612, 16
      %vm817 = vcmp.lt.s32.totalorder %v613, 16
      %vm818 = vcmp.lt.s32.totalorder %v614, 16
      %vm819 = vcmp.lt.s32.totalorder %v615, 16
      %vm820 = vcmp.lt.s32.totalorder %v616, 16
      %vm821 = vcmp.lt.s32.totalorder %v617, 16
      %vm822 = vcmp.lt.s32.totalorder %v618, 16
      %vm823 = vcmp.lt.s32.totalorder %v619, 16
      %vm824 = vcmp.lt.s32.totalorder %v620, 16
      %vm825 = vcmp.lt.s32.totalorder %v621, 16
      %vm826 = vcmp.lt.s32.totalorder %v622, 16
      %v875 = vunpack.c.l.b16 %v763
      %v876 = vunpack.c.l.b16 %v764
      %v877 = vunpack.c.l.b16 %v765
      %v878 = vunpack.c.l.b16 %v766
      %v879 = vunpack.c.l.b16 %v767
      %v880 = vunpack.c.l.b16 %v768
      %v881 = vunpack.c.l.b16 %v769
      %v882 = vunpack.c.l.b16 %v770
      %v883 = vunpack.c.l.b16 %v771
      %v884 = vunpack.c.l.b16 %v772
      %v885 = vunpack.c.l.b16 %v773
      %v886 = vunpack.c.l.b16 %v774
      %v887 = vunpack.c.l.b16 %v775
      %v888 = vunpack.c.l.b16 %v776
      %v889 = vunpack.c.l.b16 %v777
      %v890 = vunpack.c.l.b16 %v778
      %v891 = vunpack.c.l.b16 %v779
      %v892 = vunpack.c.l.b16 %v780
      %v893 = vunpack.c.l.b16 %v781
      %v894 = vunpack.c.l.b16 %v782
      %v895 = vunpack.c.l.b16 %v783
      %v896 = vunpack.c.l.b16 %v784
      %v897 = vunpack.c.l.b16 %v785
      %v898 = vunpack.c.l.b16 %v786
      %v899 = vunpack.c.l.b16 %v787
      %v900 = vunpack.c.l.b16 %v788
      %v901 = vunpack.c.l.b16 %v789
      %v902 = vunpack.c.l.b16 %v790
      %v903 = vunpack.c.l.b16 %v791
      %v904 = vunpack.c.l.b16 %v792
      %v905 = vunpack.c.l.b16 %v793
      %v906 = vunpack.c.l.b16 %v794
      %v907 = vunpack.c.l.b16 %v795
      %v908 = vunpack.c.l.b16 %v796
      %v909 = vunpack.c.l.b16 %v797
      %v910 = vunpack.c.l.b16 %v798
      %v911 = vunpack.c.l.b16 %v799
      %v912 = vunpack.c.l.b16 %v800
      %v913 = vunpack.c.l.b16 %v801
      %v914 = vunpack.c.l.b16 %v802
      %v915 = vunpack.c.l.b16 %v803
      %v916 = vunpack.c.l.b16 %v804
      %v917 = vunpack.c.l.b16 %v805
      %v918 = vunpack.c.l.b16 %v806
      %v919 = vunpack.c.l.b16 %v807
      %v920 = vunpack.c.l.b16 %v808
      %v921 = vunpack.c.l.b16 %v809
      %v922 = vunpack.c.l.b16 %v810
      %v923 = vpack.c.b16 %v876, %v875
      %v924 = vpack.c.b16 %v878, %v877
      %v925 = vpack.c.b16 %v880, %v879
      %v926 = vpack.c.b16 %v882, %v881
      %v927 = vpack.c.b16 %v884, %v883
      %v928 = vpack.c.b16 %v886, %v885
      %v929 = vpack.c.b16 %v888, %v887
      %v930 = vpack.c.b16 %v890, %v889
      %v931 = vpack.c.b16 %v892, %v891
      %v932 = vpack.c.b16 %v894, %v893
      %v933 = vpack.c.b16 %v896, %v895
      %v934 = vpack.c.b16 %v898, %v897
      %v935 = vpack.c.b16 %v900, %v899
      %v936 = vpack.c.b16 %v902, %v901
      %v937 = vpack.c.b16 %v904, %v903
      %v938 = vpack.c.b16 %v906, %v905
      %v939 = vpack.c.b16 %v908, %v907
      %v940 = vpack.c.b16 %v910, %v909
      %v941 = vpack.c.b16 %v912, %v911
      %v942 = vpack.c.b16 %v914, %v913
      %v943 = vpack.c.b16 %v916, %v915
      %v944 = vpack.c.b16 %v918, %v917
      %v945 = vpack.c.b16 %v920, %v919
      %v946 = vpack.c.b16 %v922, %v921
      %v948 = vsel %vm636, %v923, 0
      %v951 = vsel %vm636, %v924, 0
      %v954 = vsel %vm636, %v925, 0
      %v957 = vsel %vm636, %v926, 0
      %v960 = vsel %vm636, %v927, 0
      %v963 = vsel %vm636, %v928, 0
      %v966 = vsel %vm636, %v929, 0
      %v969 = vsel %vm636, %v930, 0
      %v972 = vsel %vm636, %v931, 0
      %v975 = vsel %vm636, %v932, 0
      %v978 = vsel %vm636, %v933, 0
      %v981 = vsel %vm636, %v934, 0
      %v984 = vsel %vm636, %v935, 0
      %v987 = vsel %vm636, %v936, 0
      %v990 = vsel %vm636, %v937, 0
      %v993 = vsel %vm636, %v938, 0
      %v996 = vsel %vm636, %v939, 0
      %v999 = vsel %vm636, %v940, 0
      %v1002 = vsel %vm636, %v941, 0
      %v1005 = vsel %vm636, %v942, 0
      %v1008 = vsel %vm636, %v943, 0
      %v1011 = vsel %vm636, %v944, 0
      %v1014 = vsel %vm636, %v945, 0
      %v1017 = vsel %vm636, %v946, 0
      %1019 = vmatprep.subr.bf16.mxu0 0
      %1020 = vmatpush1.bf16.msra.mxu0 0
      %1021 = vmatprep.subr.bf16.mxu0 0
      %1022 = vmatpush1.bf16.msra.mxu0 0
      %1023 = vmatprep.subr.bf16.mxu0 0
      %1024 = vmatpush1.bf16.msra.mxu0 0
      %1025 = vmatprep.subr.bf16.mxu0 0
      %1026 = vmatpush1.bf16.msra.mxu0 0
      %1027 = vmatprep.subr.bf16.mxu0 0
      %1028 = vmatpush1.bf16.msra.mxu0 0
      %1029 = vmatprep.subr.bf16.mxu0 0
      %1030 = vmatpush1.bf16.msra.mxu0 0
      %1031 = vmatprep.subr.bf16.mxu0 0
      %1032 = vmatpush1.bf16.msra.mxu0 0
      %1033 = vmatprep.subr.bf16.mxu0 0
      %1034 = vmatpush1.bf16.msra.mxu0 %v645
      %1035 = vmatprep.subr.bf16.mxu0 0
      %1036 = vmatpush2.bf16.msra.mxu0 0
      %1037 = vmatprep.subr.bf16.mxu0 0
      %1038 = vmatpush2.bf16.msra.mxu0 0
      %1039 = vmatprep.subr.bf16.mxu0 0
      %1040 = vmatpush2.bf16.msra.mxu0 0
      %1041 = vmatprep.subr.bf16.mxu0 0
      %1042 = vmatpush2.bf16.msra.mxu0 0
      %1043 = vmatprep.subr.bf16.mxu0 0
      %1044 = vmatpush2.bf16.msra.mxu0 0
      %1045 = vmatprep.subr.bf16.mxu0 0
      %1046 = vmatpush2.bf16.msra.mxu0 0
      %1047 = vmatprep.subr.bf16.mxu0 0
      %1048 = vmatpush2.bf16.msra.mxu0 0
      %1049 = vmatprep.subr.bf16.mxu0 0
      %1050 = vmatpush2.bf16.msra.mxu0 0
      %1051 = vmatprep.mubr.bf16.mxu0 0
      %1052 = vmatmul.mubr.bf16.gmra.mxu0 %v948
      %v1053 = vpop.f32.mrf.mxu0
      %v1054 = vadd.f32 0.0, %v1053
      %v1055 = vpop.f32.mrf.mxu0
      %v1056 = vpop.f32.mrf.mxu0
      %v1057 = vadd.f32 0.0, %v1056
      %v1058 = vpop.f32.mrf.mxu0
      %1059 = vmatprep.mubr.bf16.mxu0 0
      %1060 = vmatmul.mubr.bf16.gmra.mxu0 %v951
      %v1061 = vpop.f32.mrf.mxu0
      %v1062 = vadd.f32 0.0, %v1061
      %v1063 = vpop.f32.mrf.mxu0
      %v1064 = vpop.f32.mrf.mxu0
      %v1065 = vadd.f32 0.0, %v1064
      %v1066 = vpop.f32.mrf.mxu0
      %1067 = vmatprep.mubr.bf16.mxu0 0
      %1068 = vmatmul.mubr.bf16.gmra.mxu0 %v954
      %v1069 = vpop.f32.mrf.mxu0
      %v1070 = vadd.f32 0.0, %v1069
      %v1071 = vpop.f32.mrf.mxu0
      %v1072 = vpop.f32.mrf.mxu0
      %v1073 = vadd.f32 0.0, %v1072
      %v1074 = vpop.f32.mrf.mxu0
      %1075 = vmatprep.mubr.bf16.mxu0 0
      %1076 = vmatmul.mubr.bf16.gmra.mxu0 %v957
      %v1077 = vpop.f32.mrf.mxu0
      %v1078 = vadd.f32 0.0, %v1077
      %v1079 = vpop.f32.mrf.mxu0
      %v1080 = vpop.f32.mrf.mxu0
      %v1081 = vadd.f32 0.0, %v1080
      %v1082 = vpop.f32.mrf.mxu0
      %1083 = vmatprep.mubr.bf16.mxu0 0
      %1084 = vmatmul.mubr.bf16.gmra.mxu0 %v960
      %v1085 = vpop.f32.mrf.mxu0
      %v1086 = vadd.f32 0.0, %v1085
      %v1087 = vpop.f32.mrf.mxu0
      %v1088 = vpop.f32.mrf.mxu0
      %v1089 = vadd.f32 0.0, %v1088
      %v1090 = vpop.f32.mrf.mxu0
      %1091 = vmatprep.mubr.bf16.mxu0 0
      %1092 = vmatmul.mubr.bf16.gmra.mxu0 %v963
      %v1093 = vpop.f32.mrf.mxu0
      %v1094 = vadd.f32 0.0, %v1093
      %v1095 = vpop.f32.mrf.mxu0
      %v1096 = vpop.f32.mrf.mxu0
      %v1097 = vadd.f32 0.0, %v1096
      %v1098 = vpop.f32.mrf.mxu0
      %1099 = vmatprep.mubr.bf16.mxu0 0
      %1100 = vmatmul.mubr.bf16.gmra.mxu0 %v966
      %v1101 = vpop.f32.mrf.mxu0
      %v1102 = vadd.f32 0.0, %v1101
      %v1103 = vpop.f32.mrf.mxu0
      %v1104 = vpop.f32.mrf.mxu0
      %v1105 = vadd.f32 0.0, %v1104
      %v1106 = vpop.f32.mrf.mxu0
      %1107 = vmatprep.mubr.bf16.mxu0 0
      %1108 = vmatmul.mubr.bf16.gmra.mxu0 %v969
      %v1109 = vpop.f32.mrf.mxu0
      %v1110 = vadd.f32 0.0, %v1109
      %v1111 = vpop.f32.mrf.mxu0
      %v1112 = vpop.f32.mrf.mxu0
      %v1113 = vadd.f32 0.0, %v1112
      %v1114 = vpop.f32.mrf.mxu0
      %1115 = vmatprep.mubr.bf16.mxu0 0
      %1116 = vmatmul.mubr.bf16.gmra.mxu0 %v972
      %v1117 = vpop.f32.mrf.mxu0
      %v1118 = vadd.f32 0.0, %v1117
      %v1119 = vpop.f32.mrf.mxu0
      %v1120 = vpop.f32.mrf.mxu0
      %v1121 = vadd.f32 0.0, %v1120
      %v1122 = vpop.f32.mrf.mxu0
      %1123 = vmatprep.mubr.bf16.mxu0 0
      %1124 = vmatmul.mubr.bf16.gmra.mxu0 %v975
      %v1125 = vpop.f32.mrf.mxu0
      %v1126 = vadd.f32 0.0, %v1125
      %v1127 = vpop.f32.mrf.mxu0
      %v1128 = vpop.f32.mrf.mxu0
      %v1129 = vadd.f32 0.0, %v1128
      %v1130 = vpop.f32.mrf.mxu0
      %1131 = vmatprep.mubr.bf16.mxu0 0
      %1132 = vmatmul.mubr.bf16.gmra.mxu0 %v978
      %v1133 = vpop.f32.mrf.mxu0
      %v1134 = vadd.f32 0.0, %v1133
      %v1135 = vpop.f32.mrf.mxu0
      %v1136 = vpop.f32.mrf.mxu0
      %v1137 = vadd.f32 0.0, %v1136
      %v1138 = vpop.f32.mrf.mxu0
      %1139 = vmatprep.mubr.bf16.mxu0 0
      %1140 = vmatmul.mubr.bf16.gmra.mxu0 %v981
      %v1141 = vpop.f32.mrf.mxu0
      %v1142 = vadd.f32 0.0, %v1141
      %v1143 = vpop.f32.mrf.mxu0
      %v1144 = vpop.f32.mrf.mxu0
      %v1145 = vadd.f32 0.0, %v1144
      %v1146 = vpop.f32.mrf.mxu0
      %1147 = vmatprep.mubr.bf16.mxu0 0
      %1148 = vmatmul.mubr.bf16.gmra.mxu0 %v984
      %v1149 = vpop.f32.mrf.mxu0
      %v1150 = vadd.f32 0.0, %v1149
      %v1151 = vpop.f32.mrf.mxu0
      %v1152 = vpop.f32.mrf.mxu0
      %v1153 = vadd.f32 0.0, %v1152
      %v1154 = vpop.f32.mrf.mxu0
      %1155 = vmatprep.mubr.bf16.mxu0 0
      %1156 = vmatmul.mubr.bf16.gmra.mxu0 %v987
      %v1157 = vpop.f32.mrf.mxu0
      %v1158 = vadd.f32 0.0, %v1157
      %v1159 = vpop.f32.mrf.mxu0
      %v1160 = vpop.f32.mrf.mxu0
      %v1161 = vadd.f32 0.0, %v1160
      %v1162 = vpop.f32.mrf.mxu0
      %1163 = vmatprep.mubr.bf16.mxu0 0
      %1164 = vmatmul.mubr.bf16.gmra.mxu0 %v990
      %v1165 = vpop.f32.mrf.mxu0
      %v1166 = vadd.f32 0.0, %v1165
      %v1167 = vpop.f32.mrf.mxu0
      %v1168 = vpop.f32.mrf.mxu0
      %v1169 = vadd.f32 0.0, %v1168
      %v1170 = vpop.f32.mrf.mxu0
      %1171 = vmatprep.mubr.bf16.mxu0 0
      %1172 = vmatmul.mubr.bf16.gmra.mxu0 %v993
      %v1173 = vpop.f32.mrf.mxu0
      %v1174 = vadd.f32 0.0, %v1173
      %v1175 = vpop.f32.mrf.mxu0
      %v1176 = vpop.f32.mrf.mxu0
      %v1177 = vadd.f32 0.0, %v1176
      %v1178 = vpop.f32.mrf.mxu0
      %1179 = vmatprep.mubr.bf16.mxu0 0
      %1180 = vmatmul.mubr.bf16.gmra.mxu0 %v996
      %v1181 = vpop.f32.mrf.mxu0
      %v1182 = vadd.f32 0.0, %v1181
      %v1183 = vpop.f32.mrf.mxu0
      %v1184 = vpop.f32.mrf.mxu0
      %v1185 = vadd.f32 0.0, %v1184
      %v1186 = vpop.f32.mrf.mxu0
      %1187 = vmatprep.mubr.bf16.mxu0 0
      %1188 = vmatmul.mubr.bf16.gmra.mxu0 %v999
      %v1189 = vpop.f32.mrf.mxu0
      %v1190 = vadd.f32 0.0, %v1189
      %v1191 = vpop.f32.mrf.mxu0
      %v1192 = vpop.f32.mrf.mxu0
      %v1193 = vadd.f32 0.0, %v1192
      %v1194 = vpop.f32.mrf.mxu0
      %1195 = vmatprep.mubr.bf16.mxu0 0
      %1196 = vmatmul.mubr.bf16.gmra.mxu0 %v1002
      %v1197 = vpop.f32.mrf.mxu0
      %v1198 = vadd.f32 0.0, %v1197
      %v1199 = vpop.f32.mrf.mxu0
      %v1200 = vpop.f32.mrf.mxu0
      %v1201 = vadd.f32 0.0, %v1200
      %v1202 = vpop.f32.mrf.mxu0
      %1203 = vmatprep.mubr.bf16.mxu0 0
      %1204 = vmatmul.mubr.bf16.gmra.mxu0 %v1005
      %v1205 = vpop.f32.mrf.mxu0
      %v1206 = vadd.f32 0.0, %v1205
      %v1207 = vpop.f32.mrf.mxu0
      %v1208 = vpop.f32.mrf.mxu0
      %v1209 = vadd.f32 0.0, %v1208
      %v1210 = vpop.f32.mrf.mxu0
      %1211 = vmatprep.mubr.bf16.mxu0 0
      %1212 = vmatmul.mubr.bf16.gmra.mxu0 %v1008
      %v1213 = vpop.f32.mrf.mxu0
      %v1214 = vadd.f32 0.0, %v1213
      %v1215 = vpop.f32.mrf.mxu0
      %v1216 = vpop.f32.mrf.mxu0
      %v1217 = vadd.f32 0.0, %v1216
      %v1218 = vpop.f32.mrf.mxu0
      %1219 = vmatprep.mubr.bf16.mxu0 0
      %1220 = vmatmul.mubr.bf16.gmra.mxu0 %v1011
      %v1221 = vpop.f32.mrf.mxu0
      %v1222 = vadd.f32 0.0, %v1221
      %v1223 = vpop.f32.mrf.mxu0
      %v1224 = vpop.f32.mrf.mxu0
      %v1225 = vadd.f32 0.0, %v1224
      %v1226 = vpop.f32.mrf.mxu0
      %1227 = vmatprep.mubr.bf16.mxu0 0
      %1228 = vmatmul.mubr.bf16.gmra.mxu0 %v1014
      %v1229 = vpop.f32.mrf.mxu0
      %v1230 = vadd.f32 0.0, %v1229
      %v1231 = vpop.f32.mrf.mxu0
      %v1232 = vpop.f32.mrf.mxu0
      %v1233 = vadd.f32 0.0, %v1232
      %v1234 = vpop.f32.mrf.mxu0
      %1235 = vmatprep.mubr.bf16.mxu0 0
      %1236 = vmatmul.mubr.bf16.gmra.mxu0 %v1017
      %v1237 = vpop.f32.mrf.mxu0
      %v1238 = vadd.f32 0.0, %v1237
      %v1239 = vpop.f32.mrf.mxu0
      %v1240 = vpop.f32.mrf.mxu0
      %v1241 = vadd.f32 0.0, %v1240
      %v1242 = vpop.f32.mrf.mxu0
      %1243 = vdwg.mxu0
      %v1244 = vsel %vm811, 1, 0
      %v1245 = vsel %vm812, 1, 0
      %v1246 = vsel %vm813, 1, 0
      %v1247 = vsel %vm814, 1, 0
      %v1248 = vsel %vm815, 1, 0
      %v1249 = vsel %vm816, 1, 0
      %v1250 = vsel %vm817, 1, 0
      %v1251 = vsel %vm818, 1, 0
      %v1252 = vsel %vm819, 1, 0
      %v1253 = vsel %vm820, 1, 0
      %v1254 = vsel %vm821, 1, 0
      %v1255 = vsel %vm822, 1, 0
      %v1256 = vsel %vm823, 1, 0
      %v1257 = vsel %vm824, 1, 0
      %v1258 = vsel %vm825, 1, 0
      %v1259 = vsel %vm826, 1, 0
      %vm1260 = vcmp.eq.s32.totalorder %v1244, 1
      %vm1261 = vcmp.eq.s32.totalorder %v1245, 1
      %vm1262 = vcmp.eq.s32.totalorder %v1246, 1
      %vm1263 = vcmp.eq.s32.totalorder %v1247, 1
      %vm1264 = vcmp.eq.s32.totalorder %v1248, 1
      %vm1265 = vcmp.eq.s32.totalorder %v1249, 1
      %vm1266 = vcmp.eq.s32.totalorder %v1250, 1
      %vm1267 = vcmp.eq.s32.totalorder %v1251, 1
      %vm1268 = vcmp.eq.s32.totalorder %v1252, 1
      %vm1269 = vcmp.eq.s32.totalorder %v1253, 1
      %vm1270 = vcmp.eq.s32.totalorder %v1254, 1
      %vm1271 = vcmp.eq.s32.totalorder %v1255, 1
      %vm1272 = vcmp.eq.s32.totalorder %v1256, 1
      %vm1273 = vcmp.eq.s32.totalorder %v1257, 1
      %vm1274 = vcmp.eq.s32.totalorder %v1258, 1
      %vm1275 = vcmp.eq.s32.totalorder %v1259, 1
      %v1276 = vsel %vm603, 1, 0
      %v1277 = vsel %vm604, 1, 0
      %v1278 = vsel %vm605, 1, 0
      %vm1279 = vcmp.eq.s32.totalorder %v1276, 1
      %vm1280 = vcmp.eq.s32.totalorder %v1277, 1
      %vm1281 = vcmp.eq.s32.totalorder %v1278, 1
      %vm1282 = vmand %vm1260, %vm1279
      %vm1283 = vmand %vm1260, %vm1280
      %vm1284 = vmand %vm1260, %vm1281
      %vm1285 = vmand %vm1261, %vm1279
      %vm1286 = vmand %vm1261, %vm1280
      %vm1287 = vmand %vm1261, %vm1281
      %vm1288 = vmand %vm1262, %vm1279
      %vm1289 = vmand %vm1262, %vm1280
      %vm1290 = vmand %vm1262, %vm1281
      %vm1291 = vmand %vm1263, %vm1279
      %vm1292 = vmand %vm1263, %vm1280
      %vm1293 = vmand %vm1263, %vm1281
      %vm1294 = vmand %vm1264, %vm1279
      %vm1295 = vmand %vm1264, %vm1280
      %vm1296 = vmand %vm1264, %vm1281
      %vm1297 = vmand %vm1265, %vm1279
      %vm1298 = vmand %vm1265, %vm1280
      %vm1299 = vmand %vm1265, %vm1281
      %vm1300 = vmand %vm1266, %vm1279
      %vm1301 = vmand %vm1266, %vm1280
      %vm1302 = vmand %vm1266, %vm1281
      %vm1303 = vmand %vm1267, %vm1279
      %vm1304 = vmand %vm1267, %vm1280
      %vm1305 = vmand %vm1267, %vm1281
      %vm1306 = vmand %vm1268, %vm1279
      %vm1307 = vmand %vm1268, %vm1280
      %vm1308 = vmand %vm1268, %vm1281
      %vm1309 = vmand %vm1269, %vm1279
      %vm1310 = vmand %vm1269, %vm1280
      %vm1311 = vmand %vm1269, %vm1281
      %vm1312 = vmand %vm1270, %vm1279
      %vm1313 = vmand %vm1270, %vm1280
      %vm1314 = vmand %vm1270, %vm1281
      %vm1315 = vmand %vm1271, %vm1279
      %vm1316 = vmand %vm1271, %vm1280
      %vm1317 = vmand %vm1271, %vm1281
      %vm1318 = vmand %vm1272, %vm1279
      %vm1319 = vmand %vm1272, %vm1280
      %vm1320 = vmand %vm1272, %vm1281
      %vm1321 = vmand %vm1273, %vm1279
      %vm1322 = vmand %vm1273, %vm1280
      %vm1323 = vmand %vm1273, %vm1281
      %vm1324 = vmand %vm1274, %vm1279
      %vm1325 = vmand %vm1274, %vm1280
      %vm1326 = vmand %vm1274, %vm1281
      %vm1327 = vmand %vm1275, %vm1279
      %vm1328 = vmand %vm1275, %vm1280
      %vm1329 = vmand %vm1275, %vm1281
      %v1330 = vmul.f32 %v1054, %v705
      %v1331 = vmul.f32 %v1057, %v705
      %v1332 = vmul.f32 %v1062, %v705
      %v1333 = vmul.f32 %v1065, %v705
      %v1334 = vmul.f32 %v1070, %v705
      %v1335 = vmul.f32 %v1073, %v705
      %v1336 = vmul.f32 %v1078, %v705
      %v1337 = vmul.f32 %v1081, %v705
      %v1338 = vmul.f32 %v1086, %v705
      %v1339 = vmul.f32 %v1089, %v705
      %v1340 = vmul.f32 %v1094, %v705
      %v1341 = vmul.f32 %v1097, %v705
      %v1342 = vmul.f32 %v1102, %v705
      %v1343 = vmul.f32 %v1105, %v705
      %v1344 = vmul.f32 %v1110, %v705
      %v1345 = vmul.f32 %v1113, %v705
      %v1346 = vmul.f32 %v1118, %v705
      %v1347 = vmul.f32 %v1121, %v705
      %v1348 = vmul.f32 %v1126, %v705
      %v1349 = vmul.f32 %v1129, %v705
      %v1350 = vmul.f32 %v1134, %v705
      %v1351 = vmul.f32 %v1137, %v705
      %v1352 = vmul.f32 %v1142, %v705
      %v1353 = vmul.f32 %v1145, %v705
      %v1354 = vmul.f32 %v1150, %v705
      %v1355 = vmul.f32 %v1153, %v705
      %v1356 = vmul.f32 %v1158, %v705
      %v1357 = vmul.f32 %v1161, %v705
      %v1358 = vmul.f32 %v1166, %v705
      %v1359 = vmul.f32 %v1169, %v705
      %v1360 = vmul.f32 %v1174, %v705
      %v1361 = vmul.f32 %v1177, %v705
      %v1362 = vmul.f32 %v1182, %v705
      %v1363 = vmul.f32 %v1185, %v705
      %v1364 = vmul.f32 %v1190, %v705
      %v1365 = vmul.f32 %v1193, %v705
      %v1366 = vmul.f32 %v1198, %v705
      %v1367 = vmul.f32 %v1201, %v705
      %v1368 = vmul.f32 %v1206, %v705
      %v1369 = vmul.f32 %v1209, %v705
      %v1370 = vmul.f32 %v1214, %v705
      %v1371 = vmul.f32 %v1217, %v705
      %v1372 = vmul.f32 %v1222, %v705
      %v1373 = vmul.f32 %v1225, %v705
      %v1374 = vmul.f32 %v1230, %v705
      %v1375 = vmul.f32 %v1233, %v705
      %v1376 = vmul.f32 %v1238, %v705
      %v1377 = vmul.f32 %v1241, %v705
      %v1378 = vadd.f32 %v1330, %v714
      %v1379 = vadd.f32 %v1331, %v714
      %v1380 = vadd.f32 %v1332, %v714
      %v1381 = vadd.f32 %v1333, %v714
      %v1382 = vadd.f32 %v1334, %v714
      %v1383 = vadd.f32 %v1335, %v714
      %v1384 = vadd.f32 %v1336, %v714
      %v1385 = vadd.f32 %v1337, %v714
      %v1386 = vadd.f32 %v1338, %v714
      %v1387 = vadd.f32 %v1339, %v714
      %v1388 = vadd.f32 %v1340, %v714
      %v1389 = vadd.f32 %v1341, %v714
      %v1390 = vadd.f32 %v1342, %v714
      %v1391 = vadd.f32 %v1343, %v714
      %v1392 = vadd.f32 %v1344, %v714
      %v1393 = vadd.f32 %v1345, %v714
      %v1394 = vadd.f32 %v1346, %v714
      %v1395 = vadd.f32 %v1347, %v714
      %v1396 = vadd.f32 %v1348, %v714
      %v1397 = vadd.f32 %v1349, %v714
      %v1398 = vadd.f32 %v1350, %v714
      %v1399 = vadd.f32 %v1351, %v714
      %v1400 = vadd.f32 %v1352, %v714
      %v1401 = vadd.f32 %v1353, %v714
      %v1402 = vadd.f32 %v1354, %v714
      %v1403 = vadd.f32 %v1355, %v714
      %v1404 = vadd.f32 %v1356, %v714
      %v1405 = vadd.f32 %v1357, %v714
      %v1406 = vadd.f32 %v1358, %v714
      %v1407 = vadd.f32 %v1359, %v714
      %v1408 = vadd.f32 %v1360, %v714
      %v1409 = vadd.f32 %v1361, %v714
      %v1410 = vadd.f32 %v1362, %v714
      %v1411 = vadd.f32 %v1363, %v714
      %v1412 = vadd.f32 %v1364, %v714
      %v1413 = vadd.f32 %v1365, %v714
      %v1414 = vadd.f32 %v1366, %v714
      %v1415 = vadd.f32 %v1367, %v714
      %v1416 = vadd.f32 %v1368, %v714
      %v1417 = vadd.f32 %v1369, %v714
      %v1418 = vadd.f32 %v1370, %v714
      %v1419 = vadd.f32 %v1371, %v714
      %v1420 = vadd.f32 %v1372, %v714
      %v1421 = vadd.f32 %v1373, %v714
      %v1422 = vadd.f32 %v1374, %v714
      %v1423 = vadd.f32 %v1375, %v714
      %v1424 = vadd.f32 %v1376, %v714
      %v1425 = vadd.f32 %v1377, %v714
      %v1426 = vsel %vm1282, 1, 0
      %v1427 = vsel %vm1283, 1, 0
      %v1428 = vsel %vm1284, 1, 0
      %v1429 = vsel %vm1285, 1, 0
      %v1430 = vsel %vm1286, 1, 0
      %v1431 = vsel %vm1287, 1, 0
      %v1432 = vsel %vm1288, 1, 0
      %v1433 = vsel %vm1289, 1, 0
      %v1434 = vsel %vm1290, 1, 0
      %v1435 = vsel %vm1291, 1, 0
      %v1436 = vsel %vm1292, 1, 0
      %v1437 = vsel %vm1293, 1, 0
      %v1438 = vsel %vm1294, 1, 0
      %v1439 = vsel %vm1295, 1, 0
      %v1440 = vsel %vm1296, 1, 0
      %v1441 = vsel %vm1297, 1, 0
      %v1442 = vsel %vm1298, 1, 0
      %v1443 = vsel %vm1299, 1, 0
      %v1444 = vsel %vm1300, 1, 0
      %v1445 = vsel %vm1301, 1, 0
      %v1446 = vsel %vm1302, 1, 0
      %v1447 = vsel %vm1303, 1, 0
      %v1448 = vsel %vm1304, 1, 0
      %v1449 = vsel %vm1305, 1, 0
      %v1450 = vsel %vm1306, 1, 0
      %v1451 = vsel %vm1307, 1, 0
      %v1452 = vsel %vm1308, 1, 0
      %v1453 = vsel %vm1309, 1, 0
      %v1454 = vsel %vm1310, 1, 0
      %v1455 = vsel %vm1311, 1, 0
      %v1456 = vsel %vm1312, 1, 0
      %v1457 = vsel %vm1313, 1, 0
      %v1458 = vsel %vm1314, 1, 0
      %v1459 = vsel %vm1315, 1, 0
      %v1460 = vsel %vm1316, 1, 0
      %v1461 = vsel %vm1317, 1, 0
      %v1462 = vsel %vm1318, 1, 0
      %v1463 = vsel %vm1319, 1, 0
      %v1464 = vsel %vm1320, 1, 0
      %v1465 = vsel %vm1321, 1, 0
      %v1466 = vsel %vm1322, 1, 0
      %v1467 = vsel %vm1323, 1, 0
      %v1468 = vsel %vm1324, 1, 0
      %v1469 = vsel %vm1325, 1, 0
      %v1470 = vsel %vm1326, 1, 0
      %v1471 = vsel %vm1327, 1, 0
      %v1472 = vsel %vm1328, 1, 0
      %v1473 = vsel %vm1329, 1, 0
      %vm1474 = vcmp.eq.s32.totalorder %v1426, 1
      %vm1475 = vcmp.eq.s32.totalorder %v1427, 1
      %vm1476 = vcmp.eq.s32.totalorder %v1428, 1
      %vm1477 = vcmp.eq.s32.totalorder %v1429, 1
      %vm1478 = vcmp.eq.s32.totalorder %v1430, 1
      %vm1479 = vcmp.eq.s32.totalorder %v1431, 1
      %vm1480 = vcmp.eq.s32.totalorder %v1432, 1
      %vm1481 = vcmp.eq.s32.totalorder %v1433, 1
      %vm1482 = vcmp.eq.s32.totalorder %v1434, 1
      %vm1483 = vcmp.eq.s32.totalorder %v1435, 1
      %vm1484 = vcmp.eq.s32.totalorder %v1436, 1
      %vm1485 = vcmp.eq.s32.totalorder %v1437, 1
      %vm1486 = vcmp.eq.s32.totalorder %v1438, 1
      %vm1487 = vcmp.eq.s32.totalorder %v1439, 1
      %vm1488 = vcmp.eq.s32.totalorder %v1440, 1
      %vm1489 = vcmp.eq.s32.totalorder %v1441, 1
      %vm1490 = vcmp.eq.s32.totalorder %v1442, 1
      %vm1491 = vcmp.eq.s32.totalorder %v1443, 1
      %vm1492 = vcmp.eq.s32.totalorder %v1444, 1
      %vm1493 = vcmp.eq.s32.totalorder %v1445, 1
      %vm1494 = vcmp.eq.s32.totalorder %v1446, 1
      %vm1495 = vcmp.eq.s32.totalorder %v1447, 1
      %vm1496 = vcmp.eq.s32.totalorder %v1448, 1
      %vm1497 = vcmp.eq.s32.totalorder %v1449, 1
      %vm1498 = vcmp.eq.s32.totalorder %v1450, 1
      %vm1499 = vcmp.eq.s32.totalorder %v1451, 1
      %vm1500 = vcmp.eq.s32.totalorder %v1452, 1
      %vm1501 = vcmp.eq.s32.totalorder %v1453, 1
      %vm1502 = vcmp.eq.s32.totalorder %v1454, 1
      %vm1503 = vcmp.eq.s32.totalorder %v1455, 1
      %vm1504 = vcmp.eq.s32.totalorder %v1456, 1
      %vm1505 = vcmp.eq.s32.totalorder %v1457, 1
      %vm1506 = vcmp.eq.s32.totalorder %v1458, 1
      %vm1507 = vcmp.eq.s32.totalorder %v1459, 1
      %vm1508 = vcmp.eq.s32.totalorder %v1460, 1
      %vm1509 = vcmp.eq.s32.totalorder %v1461, 1
      %vm1510 = vcmp.eq.s32.totalorder %v1462, 1
      %vm1511 = vcmp.eq.s32.totalorder %v1463, 1
      %vm1512 = vcmp.eq.s32.totalorder %v1464, 1
      %vm1513 = vcmp.eq.s32.totalorder %v1465, 1
      %vm1514 = vcmp.eq.s32.totalorder %v1466, 1
      %vm1515 = vcmp.eq.s32.totalorder %v1467, 1
      %vm1516 = vcmp.eq.s32.totalorder %v1468, 1
      %vm1517 = vcmp.eq.s32.totalorder %v1469, 1
      %vm1518 = vcmp.eq.s32.totalorder %v1470, 1
      %vm1519 = vcmp.eq.s32.totalorder %v1471, 1
      %vm1520 = vcmp.eq.s32.totalorder %v1472, 1
      %vm1521 = vcmp.eq.s32.totalorder %v1473, 1
      %v1522 = vsel %vm1474, %v1378, 0.0
      %v1523 = vsel %vm1475, %v1379, 0.0
      %v1524 = vsel %vm1476, %v1380, 0.0
      %v1525 = vsel %vm1477, %v1381, 0.0
      %v1526 = vsel %vm1478, %v1382, 0.0
      %v1527 = vsel %vm1479, %v1383, 0.0
      %v1528 = vsel %vm1480, %v1384, 0.0
      %v1529 = vsel %vm1481, %v1385, 0.0
      %v1530 = vsel %vm1482, %v1386, 0.0
      %v1531 = vsel %vm1483, %v1387, 0.0
      %v1532 = vsel %vm1484, %v1388, 0.0
      %v1533 = vsel %vm1485, %v1389, 0.0
      %v1534 = vsel %vm1486, %v1390, 0.0
      %v1535 = vsel %vm1487, %v1391, 0.0
      %v1536 = vsel %vm1488, %v1392, 0.0
      %v1537 = vsel %vm1489, %v1393, 0.0
      %v1538 = vsel %vm1490, %v1394, 0.0
      %v1539 = vsel %vm1491, %v1395, 0.0
      %v1540 = vsel %vm1492, %v1396, 0.0
      %v1541 = vsel %vm1493, %v1397, 0.0
      %v1542 = vsel %vm1494, %v1398, 0.0
      %v1543 = vsel %vm1495, %v1399, 0.0
      %v1544 = vsel %vm1496, %v1400, 0.0
      %v1545 = vsel %vm1497, %v1401, 0.0
      %v1546 = vsel %vm1498, %v1402, 0.0
      %v1547 = vsel %vm1499, %v1403, 0.0
      %v1548 = vsel %vm1500, %v1404, 0.0
      %v1549 = vsel %vm1501, %v1405, 0.0
      %v1550 = vsel %vm1502, %v1406, 0.0
      %v1551 = vsel %vm1503, %v1407, 0.0
      %v1552 = vsel %vm1504, %v1408, 0.0
      %v1553 = vsel %vm1505, %v1409, 0.0
      %v1554 = vsel %vm1506, %v1410, 0.0
      %v1555 = vsel %vm1507, %v1411, 0.0
      %v1556 = vsel %vm1508, %v1412, 0.0
      %v1557 = vsel %vm1509, %v1413, 0.0
      %v1558 = vsel %vm1510, %v1414, 0.0
      %v1559 = vsel %vm1511, %v1415, 0.0
      %v1560 = vsel %vm1512, %v1416, 0.0
      %v1561 = vsel %vm1513, %v1417, 0.0
      %v1562 = vsel %vm1514, %v1418, 0.0
      %v1563 = vsel %vm1515, %v1419, 0.0
      %v1564 = vsel %vm1516, %v1420, 0.0
      %v1565 = vsel %vm1517, %v1421, 0.0
      %v1566 = vsel %vm1518, %v1422, 0.0
      %v1567 = vsel %vm1519, %v1423, 0.0
      %v1568 = vsel %vm1520, %v1424, 0.0
      %v1569 = vsel %vm1521, %v1425, 0.0
      %v1570 = vmin.f32 %v1522, 20.0
      %v1571 = vmin.f32 %v1523, 20.0
      %v1572 = vmin.f32 %v1524, 20.0
      %v1573 = vmin.f32 %v1525, 20.0
      %v1574 = vmin.f32 %v1526, 20.0
      %v1575 = vmin.f32 %v1527, 20.0
      %v1576 = vmin.f32 %v1528, 20.0
      %v1577 = vmin.f32 %v1529, 20.0
      %v1578 = vmin.f32 %v1530, 20.0
      %v1579 = vmin.f32 %v1531, 20.0
      %v1580 = vmin.f32 %v1532, 20.0
      %v1581 = vmin.f32 %v1533, 20.0
      %v1582 = vmin.f32 %v1534, 20.0
      %v1583 = vmin.f32 %v1535, 20.0
      %v1584 = vmin.f32 %v1536, 20.0
      %v1585 = vmin.f32 %v1537, 20.0
      %v1586 = vmin.f32 %v1538, 20.0
      %v1587 = vmin.f32 %v1539, 20.0
      %v1588 = vmin.f32 %v1540, 20.0
      %v1589 = vmin.f32 %v1541, 20.0
      %v1590 = vmin.f32 %v1542, 20.0
      %v1591 = vmin.f32 %v1543, 20.0
      %v1592 = vmin.f32 %v1544, 20.0
      %v1593 = vmin.f32 %v1545, 20.0
      %v1594 = vmin.f32 %v1546, 20.0
      %v1595 = vmin.f32 %v1547, 20.0
      %v1596 = vmin.f32 %v1548, 20.0
      %v1597 = vmin.f32 %v1549, 20.0
      %v1598 = vmin.f32 %v1550, 20.0
      %v1599 = vmin.f32 %v1551, 20.0
      %v1600 = vmin.f32 %v1552, 20.0
      %v1601 = vmin.f32 %v1553, 20.0
      %v1602 = vmin.f32 %v1554, 20.0
      %v1603 = vmin.f32 %v1555, 20.0
      %v1604 = vmin.f32 %v1556, 20.0
      %v1605 = vmin.f32 %v1557, 20.0
      %v1606 = vmin.f32 %v1558, 20.0
      %v1607 = vmin.f32 %v1559, 20.0
      %v1608 = vmin.f32 %v1560, 20.0
      %v1609 = vmin.f32 %v1561, 20.0
      %v1610 = vmin.f32 %v1562, 20.0
      %v1611 = vmin.f32 %v1563, 20.0
      %v1612 = vmin.f32 %v1564, 20.0
      %v1613 = vmin.f32 %v1565, 20.0
      %v1614 = vmin.f32 %v1566, 20.0
      %v1615 = vmin.f32 %v1567, 20.0
      %v1616 = vmin.f32 %v1568, 20.0
      %v1617 = vmin.f32 %v1569, 20.0
      %v1618 = vmul.f32 %v1570, 1.442695
      %v1619 = vpow.pop %v1618
      %v1620 = vmul.f32 %v1571, 1.442695
      %v1621 = vpow.pop %v1620
      %v1622 = vmul.f32 %v1572, 1.442695
      %v1623 = vpow.pop %v1622
      %v1624 = vmul.f32 %v1573, 1.442695
      %v1625 = vpow.pop %v1624
      %v1626 = vmul.f32 %v1574, 1.442695
      %v1627 = vpow.pop %v1626
      %v1628 = vmul.f32 %v1575, 1.442695
      %v1629 = vpow.pop %v1628
      %v1630 = vmul.f32 %v1576, 1.442695
      %v1631 = vpow.pop %v1630
      %v1632 = vmul.f32 %v1577, 1.442695
      %v1633 = vpow.pop %v1632
      %v1634 = vmul.f32 %v1578, 1.442695
      %v1635 = vpow.pop %v1634
      %v1636 = vmul.f32 %v1579, 1.442695
      %v1637 = vpow.pop %v1636
      %v1638 = vmul.f32 %v1580, 1.442695
      %v1639 = vpow.pop %v1638
      %v1640 = vmul.f32 %v1581, 1.442695
      %v1641 = vpow.pop %v1640
      %v1642 = vmul.f32 %v1582, 1.442695
      %v1643 = vpow.pop %v1642
      %v1644 = vmul.f32 %v1583, 1.442695
      %v1645 = vpow.pop %v1644
      %v1646 = vmul.f32 %v1584, 1.442695
      %v1647 = vpow.pop %v1646
      %v1648 = vmul.f32 %v1585, 1.442695
      %v1649 = vpow.pop %v1648
      %v1650 = vmul.f32 %v1586, 1.442695
      %v1651 = vpow.pop %v1650
      %v1652 = vmul.f32 %v1587, 1.442695
      %v1653 = vpow.pop %v1652
      %v1654 = vmul.f32 %v1588, 1.442695
      %v1655 = vpow.pop %v1654
      %v1656 = vmul.f32 %v1589, 1.442695
      %v1657 = vpow.pop %v1656
      %v1658 = vmul.f32 %v1590, 1.442695
      %v1659 = vpow.pop %v1658
      %v1660 = vmul.f32 %v1591, 1.442695
      %v1661 = vpow.pop %v1660
      %v1662 = vmul.f32 %v1592, 1.442695
      %v1663 = vpow.pop %v1662
      %v1664 = vmul.f32 %v1593, 1.442695
      %v1665 = vpow.pop %v1664
      %v1666 = vmul.f32 %v1594, 1.442695
      %v1667 = vpow.pop %v1666
      %v1668 = vmul.f32 %v1595, 1.442695
      %v1669 = vpow.pop %v1668
      %v1670 = vmul.f32 %v1596, 1.442695
      %v1671 = vpow.pop %v1670
      %v1672 = vmul.f32 %v1597, 1.442695
      %v1673 = vpow.pop %v1672
      %v1674 = vmul.f32 %v1598, 1.442695
      %v1675 = vpow.pop %v1674
      %v1676 = vmul.f32 %v1599, 1.442695
      %v1677 = vpow.pop %v1676
      %v1678 = vmul.f32 %v1600, 1.442695
      %v1679 = vpow.pop %v1678
      %v1680 = vmul.f32 %v1601, 1.442695
      %v1681 = vpow.pop %v1680
      %v1682 = vmul.f32 %v1602, 1.442695
      %v1683 = vpow.pop %v1682
      %v1684 = vmul.f32 %v1603, 1.442695
      %v1685 = vpow.pop %v1684
      %v1686 = vmul.f32 %v1604, 1.442695
      %v1687 = vpow.pop %v1686
      %v1688 = vmul.f32 %v1605, 1.442695
      %v1689 = vpow.pop %v1688
      %v1690 = vmul.f32 %v1606, 1.442695
      %v1691 = vpow.pop %v1690
      %v1692 = vmul.f32 %v1607, 1.442695
      %v1693 = vpow.pop %v1692
      %v1694 = vmul.f32 %v1608, 1.442695
      %v1695 = vpow.pop %v1694
      %v1696 = vmul.f32 %v1609, 1.442695
      %v1697 = vpow.pop %v1696
      %v1698 = vmul.f32 %v1610, 1.442695
      %v1699 = vpow.pop %v1698
      %v1700 = vmul.f32 %v1611, 1.442695
      %v1701 = vpow.pop %v1700
      %v1702 = vmul.f32 %v1612, 1.442695
      %v1703 = vpow.pop %v1702
      %v1704 = vmul.f32 %v1613, 1.442695
      %v1705 = vpow.pop %v1704
      %v1706 = vmul.f32 %v1614, 1.442695
      %v1707 = vpow.pop %v1706
      %v1708 = vmul.f32 %v1615, 1.442695
      %v1709 = vpow.pop %v1708
      %v1710 = vmul.f32 %v1616, 1.442695
      %v1711 = vpow.pop %v1710
      %v1712 = vmul.f32 %v1617, 1.442695
      %v1713 = vpow.pop %v1712
      %v1714 = vadd.f32 %v1619, 2.0
      %v1715 = vadd.f32 %v1621, 2.0
      %v1716 = vadd.f32 %v1623, 2.0
      %v1717 = vadd.f32 %v1625, 2.0
      %v1718 = vadd.f32 %v1627, 2.0
      %v1719 = vadd.f32 %v1629, 2.0
      %v1720 = vadd.f32 %v1631, 2.0
      %v1721 = vadd.f32 %v1633, 2.0
      %v1722 = vadd.f32 %v1635, 2.0
      %v1723 = vadd.f32 %v1637, 2.0
      %v1724 = vadd.f32 %v1639, 2.0
      %v1725 = vadd.f32 %v1641, 2.0
      %v1726 = vadd.f32 %v1643, 2.0
      %v1727 = vadd.f32 %v1645, 2.0
      %v1728 = vadd.f32 %v1647, 2.0
      %v1729 = vadd.f32 %v1649, 2.0
      %v1730 = vadd.f32 %v1651, 2.0
      %v1731 = vadd.f32 %v1653, 2.0
      %v1732 = vadd.f32 %v1655, 2.0
      %v1733 = vadd.f32 %v1657, 2.0
      %v1734 = vadd.f32 %v1659, 2.0
      %v1735 = vadd.f32 %v1661, 2.0
      %v1736 = vadd.f32 %v1663, 2.0
      %v1737 = vadd.f32 %v1665, 2.0
      %v1738 = vadd.f32 %v1667, 2.0
      %v1739 = vadd.f32 %v1669, 2.0
      %v1740 = vadd.f32 %v1671, 2.0
      %v1741 = vadd.f32 %v1673, 2.0
      %v1742 = vadd.f32 %v1675, 2.0
      %v1743 = vadd.f32 %v1677, 2.0
      %v1744 = vadd.f32 %v1679, 2.0
      %v1745 = vadd.f32 %v1681, 2.0
      %v1746 = vadd.f32 %v1683, 2.0
      %v1747 = vadd.f32 %v1685, 2.0
      %v1748 = vadd.f32 %v1687, 2.0
      %v1749 = vadd.f32 %v1689, 2.0
      %v1750 = vadd.f32 %v1691, 2.0
      %v1751 = vadd.f32 %v1693, 2.0
      %v1752 = vadd.f32 %v1695, 2.0
      %v1753 = vadd.f32 %v1697, 2.0
      %v1754 = vadd.f32 %v1699, 2.0
      %v1755 = vadd.f32 %v1701, 2.0
      %v1756 = vadd.f32 %v1703, 2.0
      %v1757 = vadd.f32 %v1705, 2.0
      %v1758 = vadd.f32 %v1707, 2.0
      %v1759 = vadd.f32 %v1709, 2.0
      %v1760 = vadd.f32 %v1711, 2.0
      %v1761 = vadd.f32 %v1713, 2.0
      %v1762 = vmul.f32 %v1619, %v1714
      %v1763 = vmul.f32 %v1621, %v1715
      %v1764 = vmul.f32 %v1623, %v1716
      %v1765 = vmul.f32 %v1625, %v1717
      %v1766 = vmul.f32 %v1627, %v1718
      %v1767 = vmul.f32 %v1629, %v1719
      %v1768 = vmul.f32 %v1631, %v1720
      %v1769 = vmul.f32 %v1633, %v1721
      %v1770 = vmul.f32 %v1635, %v1722
      %v1771 = vmul.f32 %v1637, %v1723
      %v1772 = vmul.f32 %v1639, %v1724
      %v1773 = vmul.f32 %v1641, %v1725
      %v1774 = vmul.f32 %v1643, %v1726
      %v1775 = vmul.f32 %v1645, %v1727
      %v1776 = vmul.f32 %v1647, %v1728
      %v1777 = vmul.f32 %v1649, %v1729
      %v1778 = vmul.f32 %v1651, %v1730
      %v1779 = vmul.f32 %v1653, %v1731
      %v1780 = vmul.f32 %v1655, %v1732
      %v1781 = vmul.f32 %v1657, %v1733
      %v1782 = vmul.f32 %v1659, %v1734
      %v1783 = vmul.f32 %v1661, %v1735
      %v1784 = vmul.f32 %v1663, %v1736
      %v1785 = vmul.f32 %v1665, %v1737
      %v1786 = vmul.f32 %v1667, %v1738
      %v1787 = vmul.f32 %v1669, %v1739
      %v1788 = vmul.f32 %v1671, %v1740
      %v1789 = vmul.f32 %v1673, %v1741
      %v1790 = vmul.f32 %v1675, %v1742
      %v1791 = vmul.f32 %v1677, %v1743
      %v1792 = vmul.f32 %v1679, %v1744
      %v1793 = vmul.f32 %v1681, %v1745
      %v1794 = vmul.f32 %v1683, %v1746
      %v1795 = vmul.f32 %v1685, %v1747
      %v1796 = vmul.f32 %v1687, %v1748
      %v1797 = vmul.f32 %v1689, %v1749
      %v1798 = vmul.f32 %v1691, %v1750
      %v1799 = vmul.f32 %v1693, %v1751
      %v1800 = vmul.f32 %v1695, %v1752
      %v1801 = vmul.f32 %v1697, %v1753
      %v1802 = vmul.f32 %v1699, %v1754
      %v1803 = vmul.f32 %v1701, %v1755
      %v1804 = vmul.f32 %v1703, %v1756
      %v1805 = vmul.f32 %v1705, %v1757
      %v1806 = vmul.f32 %v1707, %v1758
      %v1807 = vmul.f32 %v1709, %v1759
      %v1808 = vmul.f32 %v1711, %v1760
      %v1809 = vmul.f32 %v1713, %v1761
      %v1810 = vadd.f32 %v1762, 2.0
      %v1811 = vadd.f32 %v1763, 2.0
      %v1812 = vadd.f32 %v1764, 2.0
      %v1813 = vadd.f32 %v1765, 2.0
      %v1814 = vadd.f32 %v1766, 2.0
      %v1815 = vadd.f32 %v1767, 2.0
      %v1816 = vadd.f32 %v1768, 2.0
      %v1817 = vadd.f32 %v1769, 2.0
      %v1818 = vadd.f32 %v1770, 2.0
      %v1819 = vadd.f32 %v1771, 2.0
      %v1820 = vadd.f32 %v1772, 2.0
      %v1821 = vadd.f32 %v1773, 2.0
      %v1822 = vadd.f32 %v1774, 2.0
      %v1823 = vadd.f32 %v1775, 2.0
      %v1824 = vadd.f32 %v1776, 2.0
      %v1825 = vadd.f32 %v1777, 2.0
      %v1826 = vadd.f32 %v1778, 2.0
      %v1827 = vadd.f32 %v1779, 2.0
      %v1828 = vadd.f32 %v1780, 2.0
      %v1829 = vadd.f32 %v1781, 2.0
      %v1830 = vadd.f32 %v1782, 2.0
      %v1831 = vadd.f32 %v1783, 2.0
      %v1832 = vadd.f32 %v1784, 2.0
      %v1833 = vadd.f32 %v1785, 2.0
      %v1834 = vadd.f32 %v1786, 2.0
      %v1835 = vadd.f32 %v1787, 2.0
      %v1836 = vadd.f32 %v1788, 2.0
      %v1837 = vadd.f32 %v1789, 2.0
      %v1838 = vadd.f32 %v1790, 2.0
      %v1839 = vadd.f32 %v1791, 2.0
      %v1840 = vadd.f32 %v1792, 2.0
      %v1841 = vadd.f32 %v1793, 2.0
      %v1842 = vadd.f32 %v1794, 2.0
      %v1843 = vadd.f32 %v1795, 2.0
      %v1844 = vadd.f32 %v1796, 2.0
      %v1845 = vadd.f32 %v1797, 2.0
      %v1846 = vadd.f32 %v1798, 2.0
      %v1847 = vadd.f32 %v1799, 2.0
      %v1848 = vadd.f32 %v1800, 2.0
      %v1849 = vadd.f32 %v1801, 2.0
      %v1850 = vadd.f32 %v1802, 2.0
      %v1851 = vadd.f32 %v1803, 2.0
      %v1852 = vadd.f32 %v1804, 2.0
      %v1853 = vadd.f32 %v1805, 2.0
      %v1854 = vadd.f32 %v1806, 2.0
      %v1855 = vadd.f32 %v1807, 2.0
      %v1856 = vadd.f32 %v1808, 2.0
      %v1857 = vadd.f32 %v1809, 2.0
      %v1858 = vrcp.pop %v1810
      %v1859 = vrcp.pop %v1811
      %v1860 = vrcp.pop %v1812
      %v1861 = vrcp.pop %v1813
      %v1862 = vrcp.pop %v1814
      %v1863 = vrcp.pop %v1815
      %v1864 = vrcp.pop %v1816
      %v1865 = vrcp.pop %v1817
      %v1866 = vrcp.pop %v1818
      %v1867 = vrcp.pop %v1819
      %v1868 = vrcp.pop %v1820
      %v1869 = vrcp.pop %v1821
      %v1870 = vrcp.pop %v1822
      %v1871 = vrcp.pop %v1823
      %v1872 = vrcp.pop %v1824
      %v1873 = vrcp.pop %v1825
      %v1874 = vrcp.pop %v1826
      %v1875 = vrcp.pop %v1827
      %v1876 = vrcp.pop %v1828
      %v1877 = vrcp.pop %v1829
      %v1878 = vrcp.pop %v1830
      %v1879 = vrcp.pop %v1831
      %v1880 = vrcp.pop %v1832
      %v1881 = vrcp.pop %v1833
      %v1882 = vrcp.pop %v1834
      %v1883 = vrcp.pop %v1835
      %v1884 = vrcp.pop %v1836
      %v1885 = vrcp.pop %v1837
      %v1886 = vrcp.pop %v1838
      %v1887 = vrcp.pop %v1839
      %v1888 = vrcp.pop %v1840
      %v1889 = vrcp.pop %v1841
      %v1890 = vrcp.pop %v1842
      %v1891 = vrcp.pop %v1843
      %v1892 = vrcp.pop %v1844
      %v1893 = vrcp.pop %v1845
      %v1894 = vrcp.pop %v1846
      %v1895 = vrcp.pop %v1847
      %v1896 = vrcp.pop %v1848
      %v1897 = vrcp.pop %v1849
      %v1898 = vrcp.pop %v1850
      %v1899 = vrcp.pop %v1851
      %v1900 = vrcp.pop %v1852
      %v1901 = vrcp.pop %v1853
      %v1902 = vrcp.pop %v1854
      %v1903 = vrcp.pop %v1855
      %v1904 = vrcp.pop %v1856
      %v1905 = vrcp.pop %v1857
      %v1906 = vmul.f32 %v1762, %v1858
      %v1907 = vmul.f32 %v1763, %v1859
      %v1908 = vmul.f32 %v1764, %v1860
      %v1909 = vmul.f32 %v1765, %v1861
      %v1910 = vmul.f32 %v1766, %v1862
      %v1911 = vmul.f32 %v1767, %v1863
      %v1912 = vmul.f32 %v1768, %v1864
      %v1913 = vmul.f32 %v1769, %v1865
      %v1914 = vmul.f32 %v1770, %v1866
      %v1915 = vmul.f32 %v1771, %v1867
      %v1916 = vmul.f32 %v1772, %v1868
      %v1917 = vmul.f32 %v1773, %v1869
      %v1918 = vmul.f32 %v1774, %v1870
      %v1919 = vmul.f32 %v1775, %v1871
      %v1920 = vmul.f32 %v1776, %v1872
      %v1921 = vmul.f32 %v1777, %v1873
      %v1922 = vmul.f32 %v1778, %v1874
      %v1923 = vmul.f32 %v1779, %v1875
      %v1924 = vmul.f32 %v1780, %v1876
      %v1925 = vmul.f32 %v1781, %v1877
      %v1926 = vmul.f32 %v1782, %v1878
      %v1927 = vmul.f32 %v1783, %v1879
      %v1928 = vmul.f32 %v1784, %v1880
      %v1929 = vmul.f32 %v1785, %v1881
      %v1930 = vmul.f32 %v1786, %v1882
      %v1931 = vmul.f32 %v1787, %v1883
      %v1932 = vmul.f32 %v1788, %v1884
      %v1933 = vmul.f32 %v1789, %v1885
      %v1934 = vmul.f32 %v1790, %v1886
      %v1935 = vmul.f32 %v1791, %v1887
      %v1936 = vmul.f32 %v1792, %v1888
      %v1937 = vmul.f32 %v1793, %v1889
      %v1938 = vmul.f32 %v1794, %v1890
      %v1939 = vmul.f32 %v1795, %v1891
      %v1940 = vmul.f32 %v1796, %v1892
      %v1941 = vmul.f32 %v1797, %v1893
      %v1942 = vmul.f32 %v1798, %v1894
      %v1943 = vmul.f32 %v1799, %v1895
      %v1944 = vmul.f32 %v1800, %v1896
      %v1945 = vmul.f32 %v1801, %v1897
      %v1946 = vmul.f32 %v1802, %v1898
      %v1947 = vmul.f32 %v1803, %v1899
      %v1948 = vmul.f32 %v1804, %v1900
      %v1949 = vmul.f32 %v1805, %v1901
      %v1950 = vmul.f32 %v1806, %v1902
      %v1951 = vmul.f32 %v1807, %v1903
      %v1952 = vmul.f32 %v1808, %v1904
      %v1953 = vmul.f32 %v1809, %v1905
      %vm1954 = vcmp.gt.f32.partialorder %v1522, 20.0
      %vm1955 = vcmp.gt.f32.partialorder %v1523, 20.0
      %vm1956 = vcmp.gt.f32.partialorder %v1524, 20.0
      %vm1957 = vcmp.gt.f32.partialorder %v1525, 20.0
      %vm1958 = vcmp.gt.f32.partialorder %v1526, 20.0
      %vm1959 = vcmp.gt.f32.partialorder %v1527, 20.0
      %vm1960 = vcmp.gt.f32.partialorder %v1528, 20.0
      %vm1961 = vcmp.gt.f32.partialorder %v1529, 20.0
      %vm1962 = vcmp.gt.f32.partialorder %v1530, 20.0
      %vm1963 = vcmp.gt.f32.partialorder %v1531, 20.0
      %vm1964 = vcmp.gt.f32.partialorder %v1532, 20.0
      %vm1965 = vcmp.gt.f32.partialorder %v1533, 20.0
      %vm1966 = vcmp.gt.f32.partialorder %v1534, 20.0
      %vm1967 = vcmp.gt.f32.partialorder %v1535, 20.0
      %vm1968 = vcmp.gt.f32.partialorder %v1536, 20.0
      %vm1969 = vcmp.gt.f32.partialorder %v1537, 20.0
      %vm1970 = vcmp.gt.f32.partialorder %v1538, 20.0
      %vm1971 = vcmp.gt.f32.partialorder %v1539, 20.0
      %vm1972 = vcmp.gt.f32.partialorder %v1540, 20.0
      %vm1973 = vcmp.gt.f32.partialorder %v1541, 20.0
      %vm1974 = vcmp.gt.f32.partialorder %v1542, 20.0
      %vm1975 = vcmp.gt.f32.partialorder %v1543, 20.0
      %vm1976 = vcmp.gt.f32.partialorder %v1544, 20.0
      %vm1977 = vcmp.gt.f32.partialorder %v1545, 20.0
      %vm1978 = vcmp.gt.f32.partialorder %v1546, 20.0
      %vm1979 = vcmp.gt.f32.partialorder %v1547, 20.0
      %vm1980 = vcmp.gt.f32.partialorder %v1548, 20.0
      %vm1981 = vcmp.gt.f32.partialorder %v1549, 20.0
      %vm1982 = vcmp.gt.f32.partialorder %v1550, 20.0
      %vm1983 = vcmp.gt.f32.partialorder %v1551, 20.0
      %vm1984 = vcmp.gt.f32.partialorder %v1552, 20.0
      %vm1985 = vcmp.gt.f32.partialorder %v1553, 20.0
      %vm1986 = vcmp.gt.f32.partialorder %v1554, 20.0
      %vm1987 = vcmp.gt.f32.partialorder %v1555, 20.0
      %vm1988 = vcmp.gt.f32.partialorder %v1556, 20.0
      %vm1989 = vcmp.gt.f32.partialorder %v1557, 20.0
      %vm1990 = vcmp.gt.f32.partialorder %v1558, 20.0
      %vm1991 = vcmp.gt.f32.partialorder %v1559, 20.0
      %vm1992 = vcmp.gt.f32.partialorder %v1560, 20.0
      %vm1993 = vcmp.gt.f32.partialorder %v1561, 20.0
      %vm1994 = vcmp.gt.f32.partialorder %v1562, 20.0
      %vm1995 = vcmp.gt.f32.partialorder %v1563, 20.0
      %vm1996 = vcmp.gt.f32.partialorder %v1564, 20.0
      %vm1997 = vcmp.gt.f32.partialorder %v1565, 20.0
      %vm1998 = vcmp.gt.f32.partialorder %v1566, 20.0
      %vm1999 = vcmp.gt.f32.partialorder %v1567, 20.0
      %vm2000 = vcmp.gt.f32.partialorder %v1568, 20.0
      %vm2001 = vcmp.gt.f32.partialorder %v1569, 20.0
      %v2002 = vsel %vm1954, 1.0, %v1906
      %v2003 = vsel %vm1955, 1.0, %v1907
      %v2004 = vsel %vm1956, 1.0, %v1908
      %v2005 = vsel %vm1957, 1.0, %v1909
      %v2006 = vsel %vm1958, 1.0, %v1910
      %v2007 = vsel %vm1959, 1.0, %v1911
      %v2008 = vsel %vm1960, 1.0, %v1912
      %v2009 = vsel %vm1961, 1.0, %v1913
      %v2010 = vsel %vm1962, 1.0, %v1914
      %v2011 = vsel %vm1963, 1.0, %v1915
      %v2012 = vsel %vm1964, 1.0, %v1916
      %v2013 = vsel %vm1965, 1.0, %v1917
      %v2014 = vsel %vm1966, 1.0, %v1918
      %v2015 = vsel %vm1967, 1.0, %v1919
      %v2016 = vsel %vm1968, 1.0, %v1920
      %v2017 = vsel %vm1969, 1.0, %v1921
      %v2018 = vsel %vm1970, 1.0, %v1922
      %v2019 = vsel %vm1971, 1.0, %v1923
      %v2020 = vsel %vm1972, 1.0, %v1924
      %v2021 = vsel %vm1973, 1.0, %v1925
      %v2022 = vsel %vm1974, 1.0, %v1926
      %v2023 = vsel %vm1975, 1.0, %v1927
      %v2024 = vsel %vm1976, 1.0, %v1928
      %v2025 = vsel %vm1977, 1.0, %v1929
      %v2026 = vsel %vm1978, 1.0, %v1930
      %v2027 = vsel %vm1979, 1.0, %v1931
      %v2028 = vsel %vm1980, 1.0, %v1932
      %v2029 = vsel %vm1981, 1.0, %v1933
      %v2030 = vsel %vm1982, 1.0, %v1934
      %v2031 = vsel %vm1983, 1.0, %v1935
      %v2032 = vsel %vm1984, 1.0, %v1936
      %v2033 = vsel %vm1985, 1.0, %v1937
      %v2034 = vsel %vm1986, 1.0, %v1938
      %v2035 = vsel %vm1987, 1.0, %v1939
      %v2036 = vsel %vm1988, 1.0, %v1940
      %v2037 = vsel %vm1989, 1.0, %v1941
      %v2038 = vsel %vm1990, 1.0, %v1942
      %v2039 = vsel %vm1991, 1.0, %v1943
      %v2040 = vsel %vm1992, 1.0, %v1944
      %v2041 = vsel %vm1993, 1.0, %v1945
      %v2042 = vsel %vm1994, 1.0, %v1946
      %v2043 = vsel %vm1995, 1.0, %v1947
      %v2044 = vsel %vm1996, 1.0, %v1948
      %v2045 = vsel %vm1997, 1.0, %v1949
      %v2046 = vsel %vm1998, 1.0, %v1950
      %v2047 = vsel %vm1999, 1.0, %v1951
      %v2048 = vsel %vm2000, 1.0, %v1952
      %v2049 = vsel %vm2001, 1.0, %v1953
      %v2050 = vmul.f32 %v1522, %v2002
      %v2051 = vmul.f32 %v1523, %v2003
      %v2052 = vmul.f32 %v1524, %v2004
      %v2053 = vmul.f32 %v1525, %v2005
      %v2054 = vmul.f32 %v1526, %v2006
      %v2055 = vmul.f32 %v1527, %v2007
      %v2056 = vmul.f32 %v1528, %v2008
      %v2057 = vmul.f32 %v1529, %v2009
      %v2058 = vmul.f32 %v1530, %v2010
      %v2059 = vmul.f32 %v1531, %v2011
      %v2060 = vmul.f32 %v1532, %v2012
      %v2061 = vmul.f32 %v1533, %v2013
      %v2062 = vmul.f32 %v1534, %v2014
      %v2063 = vmul.f32 %v1535, %v2015
      %v2064 = vmul.f32 %v1536, %v2016
      %v2065 = vmul.f32 %v1537, %v2017
      %v2066 = vmul.f32 %v1538, %v2018
      %v2067 = vmul.f32 %v1539, %v2019
      %v2068 = vmul.f32 %v1540, %v2020
      %v2069 = vmul.f32 %v1541, %v2021
      %v2070 = vmul.f32 %v1542, %v2022
      %v2071 = vmul.f32 %v1543, %v2023
      %v2072 = vmul.f32 %v1544, %v2024
      %v2073 = vmul.f32 %v1545, %v2025
      %v2074 = vmul.f32 %v1546, %v2026
      %v2075 = vmul.f32 %v1547, %v2027
      %v2076 = vmul.f32 %v1548, %v2028
      %v2077 = vmul.f32 %v1549, %v2029
      %v2078 = vmul.f32 %v1550, %v2030
      %v2079 = vmul.f32 %v1551, %v2031
      %v2080 = vmul.f32 %v1552, %v2032
      %v2081 = vmul.f32 %v1553, %v2033
      %v2082 = vmul.f32 %v1554, %v2034
      %v2083 = vmul.f32 %v1555, %v2035
      %v2084 = vmul.f32 %v1556, %v2036
      %v2085 = vmul.f32 %v1557, %v2037
      %v2086 = vmul.f32 %v1558, %v2038
      %v2087 = vmul.f32 %v1559, %v2039
      %v2088 = vmul.f32 %v1560, %v2040
      %v2089 = vmul.f32 %v1561, %v2041
      %v2090 = vmul.f32 %v1562, %v2042
      %v2091 = vmul.f32 %v1563, %v2043
      %v2092 = vmul.f32 %v1564, %v2044
      %v2093 = vmul.f32 %v1565, %v2045
      %v2094 = vmul.f32 %v1566, %v2046
      %v2095 = vmul.f32 %v1567, %v2047
      %v2096 = vmul.f32 %v1568, %v2048
      %v2097 = vmul.f32 %v1569, %v2049
      %v2098 = vpack.c.bf16 %v2051, %v2050
      %v2099 = vpack.c.bf16 %v2052, %v2052
      %v2100 = vpack.c.bf16 %v2054, %v2053
      %v2101 = vpack.c.bf16 %v2055, %v2055
      %v2102 = vpack.c.bf16 %v2057, %v2056
      %v2103 = vpack.c.bf16 %v2058, %v2058
      %v2104 = vpack.c.bf16 %v2060, %v2059
      %v2105 = vpack.c.bf16 %v2061, %v2061
      %v2106 = vpack.c.bf16 %v2063, %v2062
      %v2107 = vpack.c.bf16 %v2064, %v2064
      %v2108 = vpack.c.bf16 %v2066, %v2065
      %v2109 = vpack.c.bf16 %v2067, %v2067
      %v2110 = vpack.c.bf16 %v2069, %v2068
      %v2111 = vpack.c.bf16 %v2070, %v2070
      %v2112 = vpack.c.bf16 %v2072, %v2071
      %v2113 = vpack.c.bf16 %v2073, %v2073
      %v2114 = vpack.c.bf16 %v2075, %v2074
      %v2115 = vpack.c.bf16 %v2076, %v2076
      %v2116 = vpack.c.bf16 %v2078, %v2077
      %v2117 = vpack.c.bf16 %v2079, %v2079
      %v2118 = vpack.c.bf16 %v2081, %v2080
      %v2119 = vpack.c.bf16 %v2082, %v2082
      %v2120 = vpack.c.bf16 %v2084, %v2083
      %v2121 = vpack.c.bf16 %v2085, %v2085
      %v2122 = vpack.c.bf16 %v2087, %v2086
      %v2123 = vpack.c.bf16 %v2088, %v2088
      %v2124 = vpack.c.bf16 %v2090, %v2089
      %v2125 = vpack.c.bf16 %v2091, %v2091
      %v2126 = vpack.c.bf16 %v2093, %v2092
      %v2127 = vpack.c.bf16 %v2094, %v2094
      %v2128 = vpack.c.bf16 %v2096, %v2095
      %v2129 = vpack.c.bf16 %v2097, %v2097
      %v2130 = vld [vmem:[%s553] sm:$0xf]
      %v2131 = vld [vmem:[%s553 + $0x4] sm:$0xf]
      %v2132 = vld [vmem:[%s553 + $0x8] sm:$0xf]
      %s2133 = sadd.s32 %s26, 1
      %s2134 = smul.u32 %s2133, 16
      %p2135 = scmp.lt.s32.totalorder %s2134, 16
      %v2139 = vunpack.c.l.b16 %v2130
      %v2140 = vunpack.c.l.b16 %v2131
      %v2141 = vunpack.c.l.b16 %v2132
      %v2142 = vpack.c.b16 %v2140, %v2139
      %v2143 = vpack.c.b16 %v2141, %v2141
      %v2145 = vsel %vm636, %v2142, 0
      %v2148 = vsel %vm636, %v2143, 0
      %2150 = vmatprep.subr.bf16.mxu0 0
      %2151 = vmatpush1.bf16.msra.mxu0 0
      %2152 = vmatprep.subr.bf16.mxu0 0
      %2153 = vmatpush1.bf16.msra.mxu0 0
      %2154 = vmatprep.subr.bf16.mxu0 0
      %2155 = vmatpush1.bf16.msra.mxu0 0
      %2156 = vmatprep.subr.bf16.mxu0 0
      %2157 = vmatpush1.bf16.msra.mxu0 0
      %2158 = vmatprep.subr.bf16.mxu0 0
      %2159 = vmatpush1.bf16.msra.mxu0 0
      %2160 = vmatprep.subr.bf16.mxu0 0
      %2161 = vmatpush1.bf16.msra.mxu0 0
      %2162 = vmatprep.subr.bf16.mxu0 0
      %2163 = vmatpush1.bf16.msra.mxu0 0
      %2164 = vmatprep.subr.bf16.mxu0 0
      %2165 = vmatpush1.bf16.msra.mxu0 %v645
      %2166 = vmatprep.subr.bf16.mxu0 0
      %2167 = vmatpush2.bf16.msra.mxu0 0
      %2168 = vmatprep.subr.bf16.mxu0 0
      %2169 = vmatpush2.bf16.msra.mxu0 0
      %2170 = vmatprep.subr.bf16.mxu0 0
      %2171 = vmatpush2.bf16.msra.mxu0 0
      %2172 = vmatprep.subr.bf16.mxu0 0
      %2173 = vmatpush2.bf16.msra.mxu0 0
      %2174 = vmatprep.subr.bf16.mxu0 0
      %2175 = vmatpush2.bf16.msra.mxu0 0
      %2176 = vmatprep.subr.bf16.mxu0 0
      %2177 = vmatpush2.bf16.msra.mxu0 0
      %2178 = vmatprep.subr.bf16.mxu0 0
      %2179 = vmatpush2.bf16.msra.mxu0 0
      %2180 = vmatprep.subr.bf16.mxu0 0
      %2181 = vmatpush2.bf16.msra.mxu0 0
      %2182 = vmatprep.mubr.bf16.mxu0 0
      %2183 = vmatmul.mubr.bf16.gmra.mxu0 %v2145
      %v2184 = vpop.f32.mrf.mxu0
      %v2185 = vadd.f32 0.0, %v2184
      %v2186 = vpop.f32.mrf.mxu0
      %v2187 = vpop.f32.mrf.mxu0
      %v2188 = vadd.f32 0.0, %v2187
      %v2189 = vpop.f32.mrf.mxu0
      %2190 = vmatprep.mubr.bf16.mxu0 0
      %2191 = vmatmul.mubr.bf16.gmra.mxu0 %v2148
      %v2192 = vpop.f32.mrf.mxu0
      %v2193 = vadd.f32 0.0, %v2192
      %v2194 = vpop.f32.mrf.mxu0
      %v2195 = vpop.f32.mrf.mxu0
      %v2196 = vpop.f32.mrf.mxu0
      %2197 = vdwg.mxu0
      %s2198 = scalar_select %p2135, 1, 0
      %v2199 = vstv %s2198
      %vm2200 = vcmp.eq.s32.totalorder %v2199, 1
      %vm2201 = vmand %vm2200, %vm603
      %vm2202 = vmand %vm2200, %vm604
      %vm2203 = vmand %vm2200, %vm605
      %v2204 = vmul.f32 %v2185, %v705
      %v2205 = vmul.f32 %v2188, %v705
      %v2206 = vmul.f32 %v2193, %v705
      %v2207 = vadd.f32 %v2204, %v714
      %v2208 = vadd.f32 %v2205, %v714
      %v2209 = vadd.f32 %v2206, %v714
      %v2210 = vsel %vm2201, 1, 0
      %v2211 = vsel %vm2202, 1, 0
      %v2212 = vsel %vm2203, 1, 0
      %vm2213 = vcmp.eq.s32.totalorder %v2210, 1
      %vm2214 = vcmp.eq.s32.totalorder %v2211, 1
      %vm2215 = vcmp.eq.s32.totalorder %v2212, 1
      %v2216 = vsel %vm2213, %v2207, 0.0
      %v2217 = vsel %vm2214, %v2208, 0.0
      %v2218 = vsel %vm2215, %v2209, 0.0
      %v2219 = vmin.f32 %v2216, 20.0
      %v2220 = vmin.f32 %v2217, 20.0
      %v2221 = vmin.f32 %v2218, 20.0
      %v2222 = vmul.f32 %v2219, 1.442695
      %v2223 = vpow.pop %v2222
      %v2224 = vmul.f32 %v2220, 1.442695
      %v2225 = vpow.pop %v2224
      %v2226 = vmul.f32 %v2221, 1.442695
      %v2227 = vpow.pop %v2226
      %v2228 = vadd.f32 %v2223, 2.0
      %v2229 = vadd.f32 %v2225, 2.0
      %v2230 = vadd.f32 %v2227, 2.0
      %v2231 = vmul.f32 %v2223, %v2228
      %v2232 = vmul.f32 %v2225, %v2229
      %v2233 = vmul.f32 %v2227, %v2230
      %v2234 = vadd.f32 %v2231, 2.0
      %v2235 = vadd.f32 %v2232, 2.0
      %v2236 = vadd.f32 %v2233, 2.0
      %v2237 = vrcp.pop %v2234
      %v2238 = vrcp.pop %v2235
      %v2239 = vrcp.pop %v2236
      %v2240 = vmul.f32 %v2231, %v2237
      %v2241 = vmul.f32 %v2232, %v2238
      %v2242 = vmul.f32 %v2233, %v2239
      %vm2243 = vcmp.gt.f32.partialorder %v2216, 20.0
      %vm2244 = vcmp.gt.f32.partialorder %v2217, 20.0
      %vm2245 = vcmp.gt.f32.partialorder %v2218, 20.0
      %v2246 = vsel %vm2243, 1.0, %v2240
      %v2247 = vsel %vm2244, 1.0, %v2241
      %v2248 = vsel %vm2245, 1.0, %v2242
      %v2249 = vmul.f32 %v2216, %v2246
      %v2250 = vmul.f32 %v2217, %v2247
      %v2251 = vmul.f32 %v2218, %v2248
      %v2252 = vpack.c.bf16 %v2250, %v2249
      %v2253 = vpack.c.bf16 %v2251, %v2251
      %vm2254 = vsmask.f32 7424
      %v2256 = vshrl.u32 %v761, 16
      %v2258 = vshll.u32 %v761, 16
      %v2260 = vrot.slane %v2258, 1
      %v2261 = vor.u32 %v2256, %v2260
      %v2263 = vshll.u32 %v762, 16
      %v2265 = vrot.slane %v2263, 1
      %v2266 = vsel %vm2254, %v2261, %v2265
      %v2268 = vshrl.u32 %v2098, 16
      %v2270 = vshll.u32 %v2098, 16
      %v2272 = vrot.slane %v2270, 1
      %v2273 = vor.u32 %v2268, %v2272
      %v2275 = vshll.u32 %v2099, 16
      %v2277 = vrot.slane %v2275, 1
      %v2278 = vsel %vm2254, %v2273, %v2277
      %v2280 = vshrl.u32 %v2100, 16
      %v2282 = vshll.u32 %v2100, 16
      %v2284 = vrot.slane %v2282, 1
      %v2285 = vor.u32 %v2280, %v2284
      %v2287 = vshll.u32 %v2101, 16
      %v2289 = vrot.slane %v2287, 1
      %v2290 = vsel %vm2254, %v2285, %v2289
      %v2292 = vshrl.u32 %v2102, 16
      %v2294 = vshll.u32 %v2102, 16
      %v2296 = vrot.slane %v2294, 1
      %v2297 = vor.u32 %v2292, %v2296
      %v2299 = vshll.u32 %v2103, 16
      %v2301 = vrot.slane %v2299, 1
      %v2302 = vsel %vm2254, %v2297, %v2301
      %v2304 = vshrl.u32 %v2104, 16
      %v2306 = vshll.u32 %v2104, 16
      %v2308 = vrot.slane %v2306, 1
      %v2309 = vor.u32 %v2304, %v2308
      %v2311 = vshll.u32 %v2105, 16
      %v2313 = vrot.slane %v2311, 1
      %v2314 = vsel %vm2254, %v2309, %v2313
      %v2316 = vshrl.u32 %v2106, 16
      %v2318 = vshll.u32 %v2106, 16
      %v2320 = vrot.slane %v2318, 1
      %v2321 = vor.u32 %v2316, %v2320
      %v2323 = vshll.u32 %v2107, 16
      %v2325 = vrot.slane %v2323, 1
      %v2326 = vsel %vm2254, %v2321, %v2325
      %v2328 = vshrl.u32 %v2108, 16
      %v2330 = vshll.u32 %v2108, 16
      %v2332 = vrot.slane %v2330, 1
      %v2333 = vor.u32 %v2328, %v2332
      %v2335 = vshll.u32 %v2109, 16
      %v2337 = vrot.slane %v2335, 1
      %v2338 = vsel %vm2254, %v2333, %v2337
      %v2340 = vshrl.u32 %v2110, 16
      %v2342 = vshll.u32 %v2110, 16
      %v2344 = vrot.slane %v2342, 1
      %v2345 = vor.u32 %v2340, %v2344
      %v2347 = vshll.u32 %v2111, 16
      %v2349 = vrot.slane %v2347, 1
      %v2350 = vsel %vm2254, %v2345, %v2349
      %v2352 = vshrl.u32 %v2112, 16
      %v2354 = vshll.u32 %v2112, 16
      %v2356 = vrot.slane %v2354, 1
      %v2357 = vor.u32 %v2352, %v2356
      %v2359 = vshll.u32 %v2113, 16
      %v2361 = vrot.slane %v2359, 1
      %v2362 = vsel %vm2254, %v2357, %v2361
      %v2364 = vshrl.u32 %v2114, 16
      %v2366 = vshll.u32 %v2114, 16
      %v2368 = vrot.slane %v2366, 1
      %v2369 = vor.u32 %v2364, %v2368
      %v2371 = vshll.u32 %v2115, 16
      %v2373 = vrot.slane %v2371, 1
      %v2374 = vsel %vm2254, %v2369, %v2373
      %v2376 = vshrl.u32 %v2116, 16
      %v2378 = vshll.u32 %v2116, 16
      %v2380 = vrot.slane %v2378, 1
      %v2381 = vor.u32 %v2376, %v2380
      %v2383 = vshll.u32 %v2117, 16
      %v2385 = vrot.slane %v2383, 1
      %v2386 = vsel %vm2254, %v2381, %v2385
      %v2388 = vshrl.u32 %v2118, 16
      %v2390 = vshll.u32 %v2118, 16
      %v2392 = vrot.slane %v2390, 1
      %v2393 = vor.u32 %v2388, %v2392
      %v2395 = vshll.u32 %v2119, 16
      %v2397 = vrot.slane %v2395, 1
      %v2398 = vsel %vm2254, %v2393, %v2397
      %v2400 = vshrl.u32 %v2120, 16
      %v2402 = vshll.u32 %v2120, 16
      %v2404 = vrot.slane %v2402, 1
      %v2405 = vor.u32 %v2400, %v2404
      %v2407 = vshll.u32 %v2121, 16
      %v2409 = vrot.slane %v2407, 1
      %v2410 = vsel %vm2254, %v2405, %v2409
      %v2412 = vshrl.u32 %v2122, 16
      %v2414 = vshll.u32 %v2122, 16
      %v2416 = vrot.slane %v2414, 1
      %v2417 = vor.u32 %v2412, %v2416
      %v2419 = vshll.u32 %v2123, 16
      %v2421 = vrot.slane %v2419, 1
      %v2422 = vsel %vm2254, %v2417, %v2421
      %v2424 = vshrl.u32 %v2124, 16
      %v2426 = vshll.u32 %v2124, 16
      %v2428 = vrot.slane %v2426, 1
      %v2429 = vor.u32 %v2424, %v2428
      %v2431 = vshll.u32 %v2125, 16
      %v2433 = vrot.slane %v2431, 1
      %v2434 = vsel %vm2254, %v2429, %v2433
      %v2436 = vshrl.u32 %v2126, 16
      %v2438 = vshll.u32 %v2126, 16
      %v2440 = vrot.slane %v2438, 1
      %v2441 = vor.u32 %v2436, %v2440
      %v2443 = vshll.u32 %v2127, 16
      %v2445 = vrot.slane %v2443, 1
      %v2446 = vsel %vm2254, %v2441, %v2445
      %vm2447 = vcmask 15360
      %v2449 = vsel %vm2447, %v2266, 0
      %v2452 = vsel %vm2447, %v2278, 0
      %v2455 = vsel %vm2447, %v2290, 0
      %v2458 = vsel %vm2447, %v2302, 0
      %v2461 = vsel %vm2447, %v2314, 0
      %v2464 = vsel %vm2447, %v2326, 0
      %v2467 = vsel %vm2447, %v2338, 0
      %v2470 = vsel %vm2447, %v2350, 0
      %v2473 = vsel %vm2447, %v2362, 0
      %v2476 = vsel %vm2447, %v2374, 0
      %v2479 = vsel %vm2447, %v2386, 0
      %v2482 = vsel %vm2447, %v2398, 0
      %v2485 = vsel %vm2447, %v2410, 0
      %v2488 = vsel %vm2447, %v2422, 0
      %v2491 = vsel %vm2447, %v2434, 0
      %v2494 = vsel %vm2447, %v2446, 0
      %vm2496 = vcmask 1040384
      %v2498 = vsel %vm2496, %v583, 0
      %2500 = vmatprep.subr.bf16.mxu0 0
      %2501 = vmatpush1.bf16.msra.mxu0 0
      %2502 = vmatprep.subr.bf16.mxu0 0
      %2503 = vmatpush1.bf16.msra.mxu0 0
      %2504 = vmatprep.subr.bf16.mxu0 0
      %2505 = vmatpush1.bf16.msra.mxu0 0
      %2506 = vmatprep.subr.bf16.mxu0 0
      %2507 = vmatpush1.bf16.msra.mxu0 0
      %2508 = vmatprep.subr.bf16.mxu0 0
      %2509 = vmatpush1.bf16.msra.mxu0 0
      %2510 = vmatprep.subr.bf16.mxu0 0
      %2511 = vmatpush1.bf16.msra.mxu0 0
      %2512 = vmatprep.subr.bf16.mxu0 0
      %2513 = vmatpush1.bf16.msra.mxu0 0
      %2514 = vmatprep.subr.bf16.mxu0 0
      %2515 = vmatpush1.bf16.msra.mxu0 %v2498
      %2516 = vmatprep.subr.bf16.mxu0 0
      %2517 = vmatpush2.bf16.msra.mxu0 0
      %2518 = vmatprep.subr.bf16.mxu0 0
      %2519 = vmatpush2.bf16.msra.mxu0 0
      %2520 = vmatprep.subr.bf16.mxu0 0
      %2521 = vmatpush2.bf16.msra.mxu0 0
      %2522 = vmatprep.subr.bf16.mxu0 0
      %2523 = vmatpush2.bf16.msra.mxu0 0
      %2524 = vmatprep.subr.bf16.mxu0 0
      %2525 = vmatpush2.bf16.msra.mxu0 0
      %2526 = vmatprep.subr.bf16.mxu0 0
      %2527 = vmatpush2.bf16.msra.mxu0 0
      %2528 = vmatprep.subr.bf16.mxu0 0
      %2529 = vmatpush2.bf16.msra.mxu0 0
      %2530 = vmatprep.subr.bf16.mxu0 0
      %2531 = vmatpush2.bf16.msra.mxu0 0
      %2532 = vmatprep.mubr.bf16.mxu0 0
      %2533 = vmatmul.mubr.bf16.gmra.mxu0 %v2449
      %v2534 = vpop.f32.mrf.mxu0
      %v2535 = vadd.f32 0.0, %v2534
      %v2536 = vpop.f32.mrf.mxu0
      %v2537 = vpop.f32.mrf.mxu0
      %v2538 = vadd.f32 0.0, %v2537
      %v2539 = vpop.f32.mrf.mxu0
      %2540 = vmatprep.mubr.bf16.mxu0 0
      %2541 = vmatmul.mubr.bf16.gmra.mxu0 %v2452
      %v2542 = vpop.f32.mrf.mxu0
      %v2543 = vadd.f32 0.0, %v2542
      %v2544 = vpop.f32.mrf.mxu0
      %v2545 = vpop.f32.mrf.mxu0
      %v2546 = vadd.f32 0.0, %v2545
      %v2547 = vpop.f32.mrf.mxu0
      %2548 = vmatprep.mubr.bf16.mxu0 0
      %2549 = vmatmul.mubr.bf16.gmra.mxu0 %v2455
      %v2550 = vpop.f32.mrf.mxu0
      %v2551 = vadd.f32 0.0, %v2550
      %v2552 = vpop.f32.mrf.mxu0
      %v2553 = vpop.f32.mrf.mxu0
      %v2554 = vadd.f32 0.0, %v2553
      %v2555 = vpop.f32.mrf.mxu0
      %2556 = vmatprep.mubr.bf16.mxu0 0
      %2557 = vmatmul.mubr.bf16.gmra.mxu0 %v2458
      %v2558 = vpop.f32.mrf.mxu0
      %v2559 = vadd.f32 0.0, %v2558
      %v2560 = vpop.f32.mrf.mxu0
      %v2561 = vpop.f32.mrf.mxu0
      %v2562 = vadd.f32 0.0, %v2561
      %v2563 = vpop.f32.mrf.mxu0
      %2564 = vmatprep.mubr.bf16.mxu0 0
      %2565 = vmatmul.mubr.bf16.gmra.mxu0 %v2461
      %v2566 = vpop.f32.mrf.mxu0
      %v2567 = vadd.f32 0.0, %v2566
      %v2568 = vpop.f32.mrf.mxu0
      %v2569 = vpop.f32.mrf.mxu0
      %v2570 = vadd.f32 0.0, %v2569
      %v2571 = vpop.f32.mrf.mxu0
      %2572 = vmatprep.mubr.bf16.mxu0 0
      %2573 = vmatmul.mubr.bf16.gmra.mxu0 %v2464
      %v2574 = vpop.f32.mrf.mxu0
      %v2575 = vadd.f32 0.0, %v2574
      %v2576 = vpop.f32.mrf.mxu0
      %v2577 = vpop.f32.mrf.mxu0
      %v2578 = vadd.f32 0.0, %v2577
      %v2579 = vpop.f32.mrf.mxu0
      %2580 = vmatprep.mubr.bf16.mxu0 0
      %2581 = vmatmul.mubr.bf16.gmra.mxu0 %v2467
      %v2582 = vpop.f32.mrf.mxu0
      %v2583 = vadd.f32 0.0, %v2582
      %v2584 = vpop.f32.mrf.mxu0
      %v2585 = vpop.f32.mrf.mxu0
      %v2586 = vadd.f32 0.0, %v2585
      %v2587 = vpop.f32.mrf.mxu0
      %2588 = vmatprep.mubr.bf16.mxu0 0
      %2589 = vmatmul.mubr.bf16.gmra.mxu0 %v2470
      %v2590 = vpop.f32.mrf.mxu0
      %v2591 = vadd.f32 0.0, %v2590
      %v2592 = vpop.f32.mrf.mxu0
      %v2593 = vpop.f32.mrf.mxu0
      %v2594 = vadd.f32 0.0, %v2593
      %v2595 = vpop.f32.mrf.mxu0
      %2596 = vmatprep.mubr.bf16.mxu0 0
      %2597 = vmatmul.mubr.bf16.gmra.mxu0 %v2473
      %v2598 = vpop.f32.mrf.mxu0
      %v2599 = vadd.f32 0.0, %v2598
      %v2600 = vpop.f32.mrf.mxu0
      %v2601 = vpop.f32.mrf.mxu0
      %v2602 = vadd.f32 0.0, %v2601
      %v2603 = vpop.f32.mrf.mxu0
      %2604 = vmatprep.mubr.bf16.mxu0 0
      %2605 = vmatmul.mubr.bf16.gmra.mxu0 %v2476
      %v2606 = vpop.f32.mrf.mxu0
      %v2607 = vadd.f32 0.0, %v2606
      %v2608 = vpop.f32.mrf.mxu0
      %v2609 = vpop.f32.mrf.mxu0
      %v2610 = vadd.f32 0.0, %v2609
      %v2611 = vpop.f32.mrf.mxu0
      %2612 = vmatprep.mubr.bf16.mxu0 0
      %2613 = vmatmul.mubr.bf16.gmra.mxu0 %v2479
      %v2614 = vpop.f32.mrf.mxu0
      %v2615 = vadd.f32 0.0, %v2614
      %v2616 = vpop.f32.mrf.mxu0
      %v2617 = vpop.f32.mrf.mxu0
      %v2618 = vadd.f32 0.0, %v2617
      %v2619 = vpop.f32.mrf.mxu0
      %2620 = vmatprep.mubr.bf16.mxu0 0
      %2621 = vmatmul.mubr.bf16.gmra.mxu0 %v2482
      %v2622 = vpop.f32.mrf.mxu0
      %v2623 = vadd.f32 0.0, %v2622
      %v2624 = vpop.f32.mrf.mxu0
      %v2625 = vpop.f32.mrf.mxu0
      %v2626 = vadd.f32 0.0, %v2625
      %v2627 = vpop.f32.mrf.mxu0
      %2628 = vmatprep.mubr.bf16.mxu0 0
      %2629 = vmatmul.mubr.bf16.gmra.mxu0 %v2485
      %v2630 = vpop.f32.mrf.mxu0
      %v2631 = vadd.f32 0.0, %v2630
      %v2632 = vpop.f32.mrf.mxu0
      %v2633 = vpop.f32.mrf.mxu0
      %v2634 = vadd.f32 0.0, %v2633
      %v2635 = vpop.f32.mrf.mxu0
      %2636 = vmatprep.mubr.bf16.mxu0 0
      %2637 = vmatmul.mubr.bf16.gmra.mxu0 %v2488
      %v2638 = vpop.f32.mrf.mxu0
      %v2639 = vadd.f32 0.0, %v2638
      %v2640 = vpop.f32.mrf.mxu0
      %v2641 = vpop.f32.mrf.mxu0
      %v2642 = vadd.f32 0.0, %v2641
      %v2643 = vpop.f32.mrf.mxu0
      %2644 = vmatprep.mubr.bf16.mxu0 0
      %2645 = vmatmul.mubr.bf16.gmra.mxu0 %v2491
      %v2646 = vpop.f32.mrf.mxu0
      %v2647 = vadd.f32 0.0, %v2646
      %v2648 = vpop.f32.mrf.mxu0
      %v2649 = vpop.f32.mrf.mxu0
      %v2650 = vadd.f32 0.0, %v2649
      %v2651 = vpop.f32.mrf.mxu0
      %2652 = vmatprep.mubr.bf16.mxu0 0
      %2653 = vmatmul.mubr.bf16.gmra.mxu0 %v2494
      %v2654 = vpop.f32.mrf.mxu0
      %v2655 = vadd.f32 0.0, %v2654
      %v2656 = vpop.f32.mrf.mxu0
      %v2657 = vpop.f32.mrf.mxu0
      %v2658 = vadd.f32 0.0, %v2657
      %v2659 = vpop.f32.mrf.mxu0
      %2660 = vdwg.mxu0
      %v2661 = vsel %vm2447, %v761, 0
      %v2663 = vsel %vm2447, %v2098, 0
      %v2665 = vsel %vm2447, %v2100, 0
      %v2667 = vsel %vm2447, %v2102, 0
      %v2669 = vsel %vm2447, %v2104, 0
      %v2671 = vsel %vm2447, %v2106, 0
      %v2673 = vsel %vm2447, %v2108, 0
      %v2675 = vsel %vm2447, %v2110, 0
      %v2677 = vsel %vm2447, %v2112, 0
      %v2679 = vsel %vm2447, %v2114, 0
      %v2681 = vsel %vm2447, %v2116, 0
      %v2683 = vsel %vm2447, %v2118, 0
      %v2685 = vsel %vm2447, %v2120, 0
      %v2687 = vsel %vm2447, %v2122, 0
      %v2689 = vsel %vm2447, %v2124, 0
      %v2691 = vsel %vm2447, %v2126, 0
      %v2694 = vsel %vm2496, %v582, 0
      %2696 = vmatprep.subr.bf16.mxu0 0
      %2697 = vmatpush1.bf16.msra.mxu0 0
      %2698 = vmatprep.subr.bf16.mxu0 0
      %2699 = vmatpush1.bf16.msra.mxu0 0
      %2700 = vmatprep.subr.bf16.mxu0 0
      %2701 = vmatpush1.bf16.msra.mxu0 0
      %2702 = vmatprep.subr.bf16.mxu0 0
      %2703 = vmatpush1.bf16.msra.mxu0 0
      %2704 = vmatprep.subr.bf16.mxu0 0
      %2705 = vmatpush1.bf16.msra.mxu0 0
      %2706 = vmatprep.subr.bf16.mxu0 0
      %2707 = vmatpush1.bf16.msra.mxu0 0
      %2708 = vmatprep.subr.bf16.mxu0 0
      %2709 = vmatpush1.bf16.msra.mxu0 0
      %2710 = vmatprep.subr.bf16.mxu0 0
      %2711 = vmatpush1.bf16.msra.mxu0 %v2694
      %2712 = vmatprep.subr.bf16.mxu0 0
      %2713 = vmatpush2.bf16.msra.mxu0 0
      %2714 = vmatprep.subr.bf16.mxu0 0
      %2715 = vmatpush2.bf16.msra.mxu0 0
      %2716 = vmatprep.subr.bf16.mxu0 0
      %2717 = vmatpush2.bf16.msra.mxu0 0
      %2718 = vmatprep.subr.bf16.mxu0 0
      %2719 = vmatpush2.bf16.msra.mxu0 0
      %2720 = vmatprep.subr.bf16.mxu0 0
      %2721 = vmatpush2.bf16.msra.mxu0 0
      %2722 = vmatprep.subr.bf16.mxu0 0
      %2723 = vmatpush2.bf16.msra.mxu0 0
      %2724 = vmatprep.subr.bf16.mxu0 0
      %2725 = vmatpush2.bf16.msra.mxu0 0
      %2726 = vmatprep.subr.bf16.mxu0 0
      %2727 = vmatpush2.bf16.msra.mxu0 0
      %2728 = vmatprep.mubr.bf16.mxu0 0
      %2729 = vmatmul.mubr.bf16.gmra.mxu0 %v2661
      %v2730 = vpop.f32.mrf.mxu0
      %v2731 = vadd.f32 %v2535, %v2730
      %v2732 = vpop.f32.mrf.mxu0
      %v2733 = vpop.f32.mrf.mxu0
      %v2734 = vadd.f32 %v2538, %v2733
      %v2735 = vpop.f32.mrf.mxu0
      %2736 = vmatprep.mubr.bf16.mxu0 0
      %2737 = vmatmul.mubr.bf16.gmra.mxu0 %v2663
      %v2738 = vpop.f32.mrf.mxu0
      %v2739 = vadd.f32 %v2543, %v2738
      %v2740 = vpop.f32.mrf.mxu0
      %v2741 = vpop.f32.mrf.mxu0
      %v2742 = vadd.f32 %v2546, %v2741
      %v2743 = vpop.f32.mrf.mxu0
      %2744 = vmatprep.mubr.bf16.mxu0 0
      %2745 = vmatmul.mubr.bf16.gmra.mxu0 %v2665
      %v2746 = vpop.f32.mrf.mxu0
      %v2747 = vadd.f32 %v2551, %v2746
      %v2748 = vpop.f32.mrf.mxu0
      %v2749 = vpop.f32.mrf.mxu0
      %v2750 = vadd.f32 %v2554, %v2749
      %v2751 = vpop.f32.mrf.mxu0
      %2752 = vmatprep.mubr.bf16.mxu0 0
      %2753 = vmatmul.mubr.bf16.gmra.mxu0 %v2667
      %v2754 = vpop.f32.mrf.mxu0
      %v2755 = vadd.f32 %v2559, %v2754
      %v2756 = vpop.f32.mrf.mxu0
      %v2757 = vpop.f32.mrf.mxu0
      %v2758 = vadd.f32 %v2562, %v2757
      %v2759 = vpop.f32.mrf.mxu0
      %2760 = vmatprep.mubr.bf16.mxu0 0
      %2761 = vmatmul.mubr.bf16.gmra.mxu0 %v2669
      %v2762 = vpop.f32.mrf.mxu0
      %v2763 = vadd.f32 %v2567, %v2762
      %v2764 = vpop.f32.mrf.mxu0
      %v2765 = vpop.f32.mrf.mxu0
      %v2766 = vadd.f32 %v2570, %v2765
      %v2767 = vpop.f32.mrf.mxu0
      %2768 = vmatprep.mubr.bf16.mxu0 0
      %2769 = vmatmul.mubr.bf16.gmra.mxu0 %v2671
      %v2770 = vpop.f32.mrf.mxu0
      %v2771 = vadd.f32 %v2575, %v2770
      %v2772 = vpop.f32.mrf.mxu0
      %v2773 = vpop.f32.mrf.mxu0
      %v2774 = vadd.f32 %v2578, %v2773
      %v2775 = vpop.f32.mrf.mxu0
      %2776 = vmatprep.mubr.bf16.mxu0 0
      %2777 = vmatmul.mubr.bf16.gmra.mxu0 %v2673
      %v2778 = vpop.f32.mrf.mxu0
      %v2779 = vadd.f32 %v2583, %v2778
      %v2780 = vpop.f32.mrf.mxu0
      %v2781 = vpop.f32.mrf.mxu0
      %v2782 = vadd.f32 %v2586, %v2781
      %v2783 = vpop.f32.mrf.mxu0
      %2784 = vmatprep.mubr.bf16.mxu0 0
      %2785 = vmatmul.mubr.bf16.gmra.mxu0 %v2675
      %v2786 = vpop.f32.mrf.mxu0
      %v2787 = vadd.f32 %v2591, %v2786
      %v2788 = vpop.f32.mrf.mxu0
      %v2789 = vpop.f32.mrf.mxu0
      %v2790 = vadd.f32 %v2594, %v2789
      %v2791 = vpop.f32.mrf.mxu0
      %2792 = vmatprep.mubr.bf16.mxu0 0
      %2793 = vmatmul.mubr.bf16.gmra.mxu0 %v2677
      %v2794 = vpop.f32.mrf.mxu0
      %v2795 = vadd.f32 %v2599, %v2794
      %v2796 = vpop.f32.mrf.mxu0
      %v2797 = vpop.f32.mrf.mxu0
      %v2798 = vadd.f32 %v2602, %v2797
      %v2799 = vpop.f32.mrf.mxu0
      %2800 = vmatprep.mubr.bf16.mxu0 0
      %2801 = vmatmul.mubr.bf16.gmra.mxu0 %v2679
      %v2802 = vpop.f32.mrf.mxu0
      %v2803 = vadd.f32 %v2607, %v2802
      %v2804 = vpop.f32.mrf.mxu0
      %v2805 = vpop.f32.mrf.mxu0
      %v2806 = vadd.f32 %v2610, %v2805
      %v2807 = vpop.f32.mrf.mxu0
      %2808 = vmatprep.mubr.bf16.mxu0 0
      %2809 = vmatmul.mubr.bf16.gmra.mxu0 %v2681
      %v2810 = vpop.f32.mrf.mxu0
      %v2811 = vadd.f32 %v2615, %v2810
      %v2812 = vpop.f32.mrf.mxu0
      %v2813 = vpop.f32.mrf.mxu0
      %v2814 = vadd.f32 %v2618, %v2813
      %v2815 = vpop.f32.mrf.mxu0
      %2816 = vmatprep.mubr.bf16.mxu0 0
      %2817 = vmatmul.mubr.bf16.gmra.mxu0 %v2683
      %v2818 = vpop.f32.mrf.mxu0
      %v2819 = vadd.f32 %v2623, %v2818
      %v2820 = vpop.f32.mrf.mxu0
      %v2821 = vpop.f32.mrf.mxu0
      %v2822 = vadd.f32 %v2626, %v2821
      %v2823 = vpop.f32.mrf.mxu0
      %2824 = vmatprep.mubr.bf16.mxu0 0
      %2825 = vmatmul.mubr.bf16.gmra.mxu0 %v2685
      %v2826 = vpop.f32.mrf.mxu0
      %v2827 = vadd.f32 %v2631, %v2826
      %v2828 = vpop.f32.mrf.mxu0
      %v2829 = vpop.f32.mrf.mxu0
      %v2830 = vadd.f32 %v2634, %v2829
      %v2831 = vpop.f32.mrf.mxu0
      %2832 = vmatprep.mubr.bf16.mxu0 0
      %2833 = vmatmul.mubr.bf16.gmra.mxu0 %v2687
      %v2834 = vpop.f32.mrf.mxu0
      %v2835 = vadd.f32 %v2639, %v2834
      %v2836 = vpop.f32.mrf.mxu0
      %v2837 = vpop.f32.mrf.mxu0
      %v2838 = vadd.f32 %v2642, %v2837
      %v2839 = vpop.f32.mrf.mxu0
      %2840 = vmatprep.mubr.bf16.mxu0 0
      %2841 = vmatmul.mubr.bf16.gmra.mxu0 %v2689
      %v2842 = vpop.f32.mrf.mxu0
      %v2843 = vadd.f32 %v2647, %v2842
      %v2844 = vpop.f32.mrf.mxu0
      %v2845 = vpop.f32.mrf.mxu0
      %v2846 = vadd.f32 %v2650, %v2845
      %v2847 = vpop.f32.mrf.mxu0
      %2848 = vmatprep.mubr.bf16.mxu0 0
      %2849 = vmatmul.mubr.bf16.gmra.mxu0 %v2691
      %v2850 = vpop.f32.mrf.mxu0
      %v2851 = vadd.f32 %v2655, %v2850
      %v2852 = vpop.f32.mrf.mxu0
      %v2853 = vpop.f32.mrf.mxu0
      %v2854 = vadd.f32 %v2658, %v2853
      %v2855 = vpop.f32.mrf.mxu0
      %2856 = vdwg.mxu0
      %vm2889 = vcmask 1046528
      %v2890 = vrot.slane %v761, 1
      %v2891 = vrot.slane %v762, 1
      %v2892 = vsel %vm2889, %v2890, %v2891
      %v2893 = vrot.slane %v2098, 1
      %v2894 = vrot.slane %v2099, 1
      %v2895 = vsel %vm2889, %v2893, %v2894
      %v2896 = vrot.slane %v2100, 1
      %v2897 = vrot.slane %v2101, 1
      %v2898 = vsel %vm2889, %v2896, %v2897
      %v2899 = vrot.slane %v2102, 1
      %v2900 = vrot.slane %v2103, 1
      %v2901 = vsel %vm2889, %v2899, %v2900
      %v2902 = vrot.slane %v2104, 1
      %v2903 = vrot.slane %v2105, 1
      %v2904 = vsel %vm2889, %v2902, %v2903
      %v2905 = vrot.slane %v2106, 1
      %v2906 = vrot.slane %v2107, 1
      %v2907 = vsel %vm2889, %v2905, %v2906
      %v2908 = vrot.slane %v2108, 1
      %v2909 = vrot.slane %v2109, 1
      %v2910 = vsel %vm2889, %v2908, %v2909
      %v2911 = vrot.slane %v2110, 1
      %v2912 = vrot.slane %v2111, 1
      %v2913 = vsel %vm2889, %v2911, %v2912
      %v2914 = vrot.slane %v2112, 1
      %v2915 = vrot.slane %v2113, 1
      %v2916 = vsel %vm2889, %v2914, %v2915
      %v2917 = vrot.slane %v2114, 1
      %v2918 = vrot.slane %v2115, 1
      %v2919 = vsel %vm2889, %v2917, %v2918
      %v2920 = vrot.slane %v2116, 1
      %v2921 = vrot.slane %v2117, 1
      %v2922 = vsel %vm2889, %v2920, %v2921
      %v2923 = vrot.slane %v2118, 1
      %v2924 = vrot.slane %v2119, 1
      %v2925 = vsel %vm2889, %v2923, %v2924
      %v2926 = vrot.slane %v2120, 1
      %v2927 = vrot.slane %v2121, 1
      %v2928 = vsel %vm2889, %v2926, %v2927
      %v2929 = vrot.slane %v2122, 1
      %v2930 = vrot.slane %v2123, 1
      %v2931 = vsel %vm2889, %v2929, %v2930
      %v2932 = vrot.slane %v2124, 1
      %v2933 = vrot.slane %v2125, 1
      %v2934 = vsel %vm2889, %v2932, %v2933
      %v2935 = vrot.slane %v2126, 1
      %v2936 = vrot.slane %v2127, 1
      %v2937 = vsel %vm2889, %v2935, %v2936
      %v2939 = vsel %vm2447, %v2892, 0
      %v2942 = vsel %vm2447, %v2895, 0
      %v2945 = vsel %vm2447, %v2898, 0
      %v2948 = vsel %vm2447, %v2901, 0
      %v2951 = vsel %vm2447, %v2904, 0
      %v2954 = vsel %vm2447, %v2907, 0
      %v2957 = vsel %vm2447, %v2910, 0
      %v2960 = vsel %vm2447, %v2913, 0
      %v2963 = vsel %vm2447, %v2916, 0
      %v2966 = vsel %vm2447, %v2919, 0
      %v2969 = vsel %vm2447, %v2922, 0
      %v2972 = vsel %vm2447, %v2925, 0
      %v2975 = vsel %vm2447, %v2928, 0
      %v2978 = vsel %vm2447, %v2931, 0
      %v2981 = vsel %vm2447, %v2934, 0
      %v2984 = vsel %vm2447, %v2937, 0
      %v2987 = vsel %vm2496, %v584, 0
      %2989 = vmatprep.subr.bf16.mxu0 0
      %2990 = vmatpush1.bf16.msra.mxu0 0
      %2991 = vmatprep.subr.bf16.mxu0 0
      %2992 = vmatpush1.bf16.msra.mxu0 0
      %2993 = vmatprep.subr.bf16.mxu0 0
      %2994 = vmatpush1.bf16.msra.mxu0 0
      %2995 = vmatprep.subr.bf16.mxu0 0
      %2996 = vmatpush1.bf16.msra.mxu0 0
      %2997 = vmatprep.subr.bf16.mxu0 0
      %2998 = vmatpush1.bf16.msra.mxu0 0
      %2999 = vmatprep.subr.bf16.mxu0 0
      %3000 = vmatpush1.bf16.msra.mxu0 0
      %3001 = vmatprep.subr.bf16.mxu0 0
      %3002 = vmatpush1.bf16.msra.mxu0 0
      %3003 = vmatprep.subr.bf16.mxu0 0
      %3004 = vmatpush1.bf16.msra.mxu0 %v2987
      %3005 = vmatprep.subr.bf16.mxu0 0
      %3006 = vmatpush2.bf16.msra.mxu0 0
      %3007 = vmatprep.subr.bf16.mxu0 0
      %3008 = vmatpush2.bf16.msra.mxu0 0
      %3009 = vmatprep.subr.bf16.mxu0 0
      %3010 = vmatpush2.bf16.msra.mxu0 0
      %3011 = vmatprep.subr.bf16.mxu0 0
      %3012 = vmatpush2.bf16.msra.mxu0 0
      %3013 = vmatprep.subr.bf16.mxu0 0
      %3014 = vmatpush2.bf16.msra.mxu0 0
      %3015 = vmatprep.subr.bf16.mxu0 0
      %3016 = vmatpush2.bf16.msra.mxu0 0
      %3017 = vmatprep.subr.bf16.mxu0 0
      %3018 = vmatpush2.bf16.msra.mxu0 0
      %3019 = vmatprep.subr.bf16.mxu0 0
      %3020 = vmatpush2.bf16.msra.mxu0 0
      %3021 = vmatprep.mubr.bf16.mxu0 0
      %3022 = vmatmul.mubr.bf16.gmra.mxu0 %v2939
      %v3023 = vpop.f32.mrf.mxu0
      %v3024 = vadd.f32 0.0, %v3023
      %v3025 = vpop.f32.mrf.mxu0
      %v3026 = vpop.f32.mrf.mxu0
      %v3027 = vadd.f32 0.0, %v3026
      %v3028 = vpop.f32.mrf.mxu0
      %3029 = vmatprep.mubr.bf16.mxu0 0
      %3030 = vmatmul.mubr.bf16.gmra.mxu0 %v2942
      %v3031 = vpop.f32.mrf.mxu0
      %v3032 = vadd.f32 0.0, %v3031
      %v3033 = vpop.f32.mrf.mxu0
      %v3034 = vpop.f32.mrf.mxu0
      %v3035 = vadd.f32 0.0, %v3034
      %v3036 = vpop.f32.mrf.mxu0
      %3037 = vmatprep.mubr.bf16.mxu0 0
      %3038 = vmatmul.mubr.bf16.gmra.mxu0 %v2945
      %v3039 = vpop.f32.mrf.mxu0
      %v3040 = vadd.f32 0.0, %v3039
      %v3041 = vpop.f32.mrf.mxu0
      %v3042 = vpop.f32.mrf.mxu0
      %v3043 = vadd.f32 0.0, %v3042
      %v3044 = vpop.f32.mrf.mxu0
      %3045 = vmatprep.mubr.bf16.mxu0 0
      %3046 = vmatmul.mubr.bf16.gmra.mxu0 %v2948
      %v3047 = vpop.f32.mrf.mxu0
      %v3048 = vadd.f32 0.0, %v3047
      %v3049 = vpop.f32.mrf.mxu0
      %v3050 = vpop.f32.mrf.mxu0
      %v3051 = vadd.f32 0.0, %v3050
      %v3052 = vpop.f32.mrf.mxu0
      %3053 = vmatprep.mubr.bf16.mxu0 0
      %3054 = vmatmul.mubr.bf16.gmra.mxu0 %v2951
      %v3055 = vpop.f32.mrf.mxu0
      %v3056 = vadd.f32 0.0, %v3055
      %v3057 = vpop.f32.mrf.mxu0
      %v3058 = vpop.f32.mrf.mxu0
      %v3059 = vadd.f32 0.0, %v3058
      %v3060 = vpop.f32.mrf.mxu0
      %3061 = vmatprep.mubr.bf16.mxu0 0
      %3062 = vmatmul.mubr.bf16.gmra.mxu0 %v2954
      %v3063 = vpop.f32.mrf.mxu0
      %v3064 = vadd.f32 0.0, %v3063
      %v3065 = vpop.f32.mrf.mxu0
      %v3066 = vpop.f32.mrf.mxu0
      %v3067 = vadd.f32 0.0, %v3066
      %v3068 = vpop.f32.mrf.mxu0
      %3069 = vmatprep.mubr.bf16.mxu0 0
      %3070 = vmatmul.mubr.bf16.gmra.mxu0 %v2957
      %v3071 = vpop.f32.mrf.mxu0
      %v3072 = vadd.f32 0.0, %v3071
      %v3073 = vpop.f32.mrf.mxu0
      %v3074 = vpop.f32.mrf.mxu0
      %v3075 = vadd.f32 0.0, %v3074
      %v3076 = vpop.f32.mrf.mxu0
      %3077 = vmatprep.mubr.bf16.mxu0 0
      %3078 = vmatmul.mubr.bf16.gmra.mxu0 %v2960
      %v3079 = vpop.f32.mrf.mxu0
      %v3080 = vadd.f32 0.0, %v3079
      %v3081 = vpop.f32.mrf.mxu0
      %v3082 = vpop.f32.mrf.mxu0
      %v3083 = vadd.f32 0.0, %v3082
      %v3084 = vpop.f32.mrf.mxu0
      %3085 = vmatprep.mubr.bf16.mxu0 0
      %3086 = vmatmul.mubr.bf16.gmra.mxu0 %v2963
      %v3087 = vpop.f32.mrf.mxu0
      %v3088 = vadd.f32 0.0, %v3087
      %v3089 = vpop.f32.mrf.mxu0
      %v3090 = vpop.f32.mrf.mxu0
      %v3091 = vadd.f32 0.0, %v3090
      %v3092 = vpop.f32.mrf.mxu0
      %3093 = vmatprep.mubr.bf16.mxu0 0
      %3094 = vmatmul.mubr.bf16.gmra.mxu0 %v2966
      %v3095 = vpop.f32.mrf.mxu0
      %v3096 = vadd.f32 0.0, %v3095
      %v3097 = vpop.f32.mrf.mxu0
      %v3098 = vpop.f32.mrf.mxu0
      %v3099 = vadd.f32 0.0, %v3098
      %v3100 = vpop.f32.mrf.mxu0
      %3101 = vmatprep.mubr.bf16.mxu0 0
      %3102 = vmatmul.mubr.bf16.gmra.mxu0 %v2969
      %v3103 = vpop.f32.mrf.mxu0
      %v3104 = vadd.f32 0.0, %v3103
      %v3105 = vpop.f32.mrf.mxu0
      %v3106 = vpop.f32.mrf.mxu0
      %v3107 = vadd.f32 0.0, %v3106
      %v3108 = vpop.f32.mrf.mxu0
      %3109 = vmatprep.mubr.bf16.mxu0 0
      %3110 = vmatmul.mubr.bf16.gmra.mxu0 %v2972
      %v3111 = vpop.f32.mrf.mxu0
      %v3112 = vadd.f32 0.0, %v3111
      %v3113 = vpop.f32.mrf.mxu0
      %v3114 = vpop.f32.mrf.mxu0
      %v3115 = vadd.f32 0.0, %v3114
      %v3116 = vpop.f32.mrf.mxu0
      %3117 = vmatprep.mubr.bf16.mxu0 0
      %3118 = vmatmul.mubr.bf16.gmra.mxu0 %v2975
      %v3119 = vpop.f32.mrf.mxu0
      %v3120 = vadd.f32 0.0, %v3119
      %v3121 = vpop.f32.mrf.mxu0
      %v3122 = vpop.f32.mrf.mxu0
      %v3123 = vadd.f32 0.0, %v3122
      %v3124 = vpop.f32.mrf.mxu0
      %3125 = vmatprep.mubr.bf16.mxu0 0
      %3126 = vmatmul.mubr.bf16.gmra.mxu0 %v2978
      %v3127 = vpop.f32.mrf.mxu0
      %v3128 = vadd.f32 0.0, %v3127
      %v3129 = vpop.f32.mrf.mxu0
      %v3130 = vpop.f32.mrf.mxu0
      %v3131 = vadd.f32 0.0, %v3130
      %v3132 = vpop.f32.mrf.mxu0
      %3133 = vmatprep.mubr.bf16.mxu0 0
      %3134 = vmatmul.mubr.bf16.gmra.mxu0 %v2981
      %v3135 = vpop.f32.mrf.mxu0
      %v3136 = vadd.f32 0.0, %v3135
      %v3137 = vpop.f32.mrf.mxu0
      %v3138 = vpop.f32.mrf.mxu0
      %v3139 = vadd.f32 0.0, %v3138
      %v3140 = vpop.f32.mrf.mxu0
      %3141 = vmatprep.mubr.bf16.mxu0 0
      %3142 = vmatmul.mubr.bf16.gmra.mxu0 %v2984
      %v3143 = vpop.f32.mrf.mxu0
      %v3144 = vadd.f32 0.0, %v3143
      %v3145 = vpop.f32.mrf.mxu0
      %v3146 = vpop.f32.mrf.mxu0
      %v3147 = vadd.f32 0.0, %v3146
      %v3148 = vpop.f32.mrf.mxu0
      %3149 = vdwg.mxu0
      %v3150 = vadd.f32 %v2731, %v3024
      %v3151 = vadd.f32 %v2734, %v3027
      %v3152 = vadd.f32 %v2739, %v3032
      %v3153 = vadd.f32 %v2742, %v3035
      %v3154 = vadd.f32 %v2747, %v3040
      %v3155 = vadd.f32 %v2750, %v3043
      %v3156 = vadd.f32 %v2755, %v3048
      %v3157 = vadd.f32 %v2758, %v3051
      %v3158 = vadd.f32 %v2763, %v3056
      %v3159 = vadd.f32 %v2766, %v3059
      %v3160 = vadd.f32 %v2771, %v3064
      %v3161 = vadd.f32 %v2774, %v3067
      %v3162 = vadd.f32 %v2779, %v3072
      %v3163 = vadd.f32 %v2782, %v3075
      %v3164 = vadd.f32 %v2787, %v3080
      %v3165 = vadd.f32 %v2790, %v3083
      %v3166 = vadd.f32 %v2795, %v3088
      %v3167 = vadd.f32 %v2798, %v3091
      %v3168 = vadd.f32 %v2803, %v3096
      %v3169 = vadd.f32 %v2806, %v3099
      %v3170 = vadd.f32 %v2811, %v3104
      %v3171 = vadd.f32 %v2814, %v3107
      %v3172 = vadd.f32 %v2819, %v3112
      %v3173 = vadd.f32 %v2822, %v3115
      %v3174 = vadd.f32 %v2827, %v3120
      %v3175 = vadd.f32 %v2830, %v3123
      %v3176 = vadd.f32 %v2835, %v3128
      %v3177 = vadd.f32 %v2838, %v3131
      %v3178 = vadd.f32 %v2843, %v3136
      %v3179 = vadd.f32 %v2846, %v3139
      %v3180 = vadd.f32 %v2851, %v3144
      %v3181 = vadd.f32 %v2854, %v3147
      %v3183 = vsel %vm2447, %v2128, 0
      %v3186 = vsel %vm2496, %v585, 0
      %3188 = vmatprep.subr.bf16.mxu0 0
      %3189 = vmatpush1.bf16.msra.mxu0 0
      %3190 = vmatprep.subr.bf16.mxu0 0
      %3191 = vmatpush1.bf16.msra.mxu0 0
      %3192 = vmatprep.subr.bf16.mxu0 0
      %3193 = vmatpush1.bf16.msra.mxu0 0
      %3194 = vmatprep.subr.bf16.mxu0 0
      %3195 = vmatpush1.bf16.msra.mxu0 0
      %3196 = vmatprep.subr.bf16.mxu0 0
      %3197 = vmatpush1.bf16.msra.mxu0 0
      %3198 = vmatprep.subr.bf16.mxu0 0
      %3199 = vmatpush1.bf16.msra.mxu0 0
      %3200 = vmatprep.subr.bf16.mxu0 0
      %3201 = vmatpush1.bf16.msra.mxu0 0
      %3202 = vmatprep.subr.bf16.mxu0 0
      %3203 = vmatpush1.bf16.msra.mxu0 %v3186
      %3204 = vmatprep.subr.bf16.mxu0 0
      %3205 = vmatpush2.bf16.msra.mxu0 0
      %3206 = vmatprep.subr.bf16.mxu0 0
      %3207 = vmatpush2.bf16.msra.mxu0 0
      %3208 = vmatprep.subr.bf16.mxu0 0
      %3209 = vmatpush2.bf16.msra.mxu0 0
      %3210 = vmatprep.subr.bf16.mxu0 0
      %3211 = vmatpush2.bf16.msra.mxu0 0
      %3212 = vmatprep.subr.bf16.mxu0 0
      %3213 = vmatpush2.bf16.msra.mxu0 0
      %3214 = vmatprep.subr.bf16.mxu0 0
      %3215 = vmatpush2.bf16.msra.mxu0 0
      %3216 = vmatprep.subr.bf16.mxu0 0
      %3217 = vmatpush2.bf16.msra.mxu0 0
      %3218 = vmatprep.subr.bf16.mxu0 0
      %3219 = vmatpush2.bf16.msra.mxu0 0
      %3220 = vmatprep.mubr.bf16.mxu0 0
      %3221 = vmatmul.mubr.bf16.gmra.mxu0 %v2663
      %v3222 = vpop.f32.mrf.mxu0
      %v3223 = vadd.f32 0.0, %v3222
      %v3224 = vpop.f32.mrf.mxu0
      %v3225 = vpop.f32.mrf.mxu0
      %v3226 = vadd.f32 0.0, %v3225
      %v3227 = vpop.f32.mrf.mxu0
      %3228 = vmatprep.mubr.bf16.mxu0 0
      %3229 = vmatmul.mubr.bf16.gmra.mxu0 %v2665
      %v3230 = vpop.f32.mrf.mxu0
      %v3231 = vadd.f32 0.0, %v3230
      %v3232 = vpop.f32.mrf.mxu0
      %v3233 = vpop.f32.mrf.mxu0
      %v3234 = vadd.f32 0.0, %v3233
      %v3235 = vpop.f32.mrf.mxu0
      %3236 = vmatprep.mubr.bf16.mxu0 0
      %3237 = vmatmul.mubr.bf16.gmra.mxu0 %v2667
      %v3238 = vpop.f32.mrf.mxu0
      %v3239 = vadd.f32 0.0, %v3238
      %v3240 = vpop.f32.mrf.mxu0
      %v3241 = vpop.f32.mrf.mxu0
      %v3242 = vadd.f32 0.0, %v3241
      %v3243 = vpop.f32.mrf.mxu0
      %3244 = vmatprep.mubr.bf16.mxu0 0
      %3245 = vmatmul.mubr.bf16.gmra.mxu0 %v2669
      %v3246 = vpop.f32.mrf.mxu0
      %v3247 = vadd.f32 0.0, %v3246
      %v3248 = vpop.f32.mrf.mxu0
      %v3249 = vpop.f32.mrf.mxu0
      %v3250 = vadd.f32 0.0, %v3249
      %v3251 = vpop.f32.mrf.mxu0
      %3252 = vmatprep.mubr.bf16.mxu0 0
      %3253 = vmatmul.mubr.bf16.gmra.mxu0 %v2671
      %v3254 = vpop.f32.mrf.mxu0
      %v3255 = vadd.f32 0.0, %v3254
      %v3256 = vpop.f32.mrf.mxu0
      %v3257 = vpop.f32.mrf.mxu0
      %v3258 = vadd.f32 0.0, %v3257
      %v3259 = vpop.f32.mrf.mxu0
      %3260 = vmatprep.mubr.bf16.mxu0 0
      %3261 = vmatmul.mubr.bf16.gmra.mxu0 %v2673
      %v3262 = vpop.f32.mrf.mxu0
      %v3263 = vadd.f32 0.0, %v3262
      %v3264 = vpop.f32.mrf.mxu0
      %v3265 = vpop.f32.mrf.mxu0
      %v3266 = vadd.f32 0.0, %v3265
      %v3267 = vpop.f32.mrf.mxu0
      %3268 = vmatprep.mubr.bf16.mxu0 0
      %3269 = vmatmul.mubr.bf16.gmra.mxu0 %v2675
      %v3270 = vpop.f32.mrf.mxu0
      %v3271 = vadd.f32 0.0, %v3270
      %v3272 = vpop.f32.mrf.mxu0
      %v3273 = vpop.f32.mrf.mxu0
      %v3274 = vadd.f32 0.0, %v3273
      %v3275 = vpop.f32.mrf.mxu0
      %3276 = vmatprep.mubr.bf16.mxu0 0
      %3277 = vmatmul.mubr.bf16.gmra.mxu0 %v2677
      %v3278 = vpop.f32.mrf.mxu0
      %v3279 = vadd.f32 0.0, %v3278
      %v3280 = vpop.f32.mrf.mxu0
      %v3281 = vpop.f32.mrf.mxu0
      %v3282 = vadd.f32 0.0, %v3281
      %v3283 = vpop.f32.mrf.mxu0
      %3284 = vmatprep.mubr.bf16.mxu0 0
      %3285 = vmatmul.mubr.bf16.gmra.mxu0 %v2679
      %v3286 = vpop.f32.mrf.mxu0
      %v3287 = vadd.f32 0.0, %v3286
      %v3288 = vpop.f32.mrf.mxu0
      %v3289 = vpop.f32.mrf.mxu0
      %v3290 = vadd.f32 0.0, %v3289
      %v3291 = vpop.f32.mrf.mxu0
      %3292 = vmatprep.mubr.bf16.mxu0 0
      %3293 = vmatmul.mubr.bf16.gmra.mxu0 %v2681
      %v3294 = vpop.f32.mrf.mxu0
      %v3295 = vadd.f32 0.0, %v3294
      %v3296 = vpop.f32.mrf.mxu0
      %v3297 = vpop.f32.mrf.mxu0
      %v3298 = vadd.f32 0.0, %v3297
      %v3299 = vpop.f32.mrf.mxu0
      %3300 = vmatprep.mubr.bf16.mxu0 0
      %3301 = vmatmul.mubr.bf16.gmra.mxu0 %v2683
      %v3302 = vpop.f32.mrf.mxu0
      %v3303 = vadd.f32 0.0, %v3302
      %v3304 = vpop.f32.mrf.mxu0
      %v3305 = vpop.f32.mrf.mxu0
      %v3306 = vadd.f32 0.0, %v3305
      %v3307 = vpop.f32.mrf.mxu0
      %3308 = vmatprep.mubr.bf16.mxu0 0
      %3309 = vmatmul.mubr.bf16.gmra.mxu0 %v2685
      %v3310 = vpop.f32.mrf.mxu0
      %v3311 = vadd.f32 0.0, %v3310
      %v3312 = vpop.f32.mrf.mxu0
      %v3313 = vpop.f32.mrf.mxu0
      %v3314 = vadd.f32 0.0, %v3313
      %v3315 = vpop.f32.mrf.mxu0
      %3316 = vmatprep.mubr.bf16.mxu0 0
      %3317 = vmatmul.mubr.bf16.gmra.mxu0 %v2687
      %v3318 = vpop.f32.mrf.mxu0
      %v3319 = vadd.f32 0.0, %v3318
      %v3320 = vpop.f32.mrf.mxu0
      %v3321 = vpop.f32.mrf.mxu0
      %v3322 = vadd.f32 0.0, %v3321
      %v3323 = vpop.f32.mrf.mxu0
      %3324 = vmatprep.mubr.bf16.mxu0 0
      %3325 = vmatmul.mubr.bf16.gmra.mxu0 %v2689
      %v3326 = vpop.f32.mrf.mxu0
      %v3327 = vadd.f32 0.0, %v3326
      %v3328 = vpop.f32.mrf.mxu0
      %v3329 = vpop.f32.mrf.mxu0
      %v3330 = vadd.f32 0.0, %v3329
      %v3331 = vpop.f32.mrf.mxu0
      %3332 = vmatprep.mubr.bf16.mxu0 0
      %3333 = vmatmul.mubr.bf16.gmra.mxu0 %v2691
      %v3334 = vpop.f32.mrf.mxu0
      %v3335 = vadd.f32 0.0, %v3334
      %v3336 = vpop.f32.mrf.mxu0
      %v3337 = vpop.f32.mrf.mxu0
      %v3338 = vadd.f32 0.0, %v3337
      %v3339 = vpop.f32.mrf.mxu0
      %3340 = vmatprep.mubr.bf16.mxu0 0
      %3341 = vmatmul.mubr.bf16.gmra.mxu0 %v3183
      %v3342 = vpop.f32.mrf.mxu0
      %v3343 = vadd.f32 0.0, %v3342
      %v3344 = vpop.f32.mrf.mxu0
      %v3345 = vpop.f32.mrf.mxu0
      %v3346 = vadd.f32 0.0, %v3345
      %v3347 = vpop.f32.mrf.mxu0
      %3348 = vdwg.mxu0
      %v3349 = vadd.f32 %v3150, %v3223
      %v3350 = vadd.f32 %v3151, %v3226
      %v3351 = vadd.f32 %v3152, %v3231
      %v3352 = vadd.f32 %v3153, %v3234
      %v3353 = vadd.f32 %v3154, %v3239
      %v3354 = vadd.f32 %v3155, %v3242
      %v3355 = vadd.f32 %v3156, %v3247
      %v3356 = vadd.f32 %v3157, %v3250
      %v3357 = vadd.f32 %v3158, %v3255
      %v3358 = vadd.f32 %v3159, %v3258
      %v3359 = vadd.f32 %v3160, %v3263
      %v3360 = vadd.f32 %v3161, %v3266
      %v3361 = vadd.f32 %v3162, %v3271
      %v3362 = vadd.f32 %v3163, %v3274
      %v3363 = vadd.f32 %v3164, %v3279
      %v3364 = vadd.f32 %v3165, %v3282
      %v3365 = vadd.f32 %v3166, %v3287
      %v3366 = vadd.f32 %v3167, %v3290
      %v3367 = vadd.f32 %v3168, %v3295
      %v3368 = vadd.f32 %v3169, %v3298
      %v3369 = vadd.f32 %v3170, %v3303
      %v3370 = vadd.f32 %v3171, %v3306
      %v3371 = vadd.f32 %v3172, %v3311
      %v3372 = vadd.f32 %v3173, %v3314
      %v3373 = vadd.f32 %v3174, %v3319
      %v3374 = vadd.f32 %v3175, %v3322
      %v3375 = vadd.f32 %v3176, %v3327
      %v3376 = vadd.f32 %v3177, %v3330
      %v3377 = vadd.f32 %v3178, %v3335
      %v3378 = vadd.f32 %v3179, %v3338
      %v3379 = vadd.f32 %v3180, %v3343
      %v3380 = vadd.f32 %v3181, %v3346
      %v3381 = vshrl.u32 %v2128, 16
      %v3383 = vshll.u32 %v2128, 16
      %v3385 = vrot.slane %v3383, 1
      %v3386 = vor.u32 %v3381, %v3385
      %v3388 = vshll.u32 %v2129, 16
      %v3390 = vrot.slane %v3388, 1
      %v3391 = vsel %vm2254, %v3386, %v3390
      %v3393 = vsel %vm2447, %v3391, 0
      %v3396 = vsel %vm2496, %v586, 0
      %3398 = vmatprep.subr.bf16.mxu0 0
      %3399 = vmatpush1.bf16.msra.mxu0 0
      %3400 = vmatprep.subr.bf16.mxu0 0
      %3401 = vmatpush1.bf16.msra.mxu0 0
      %3402 = vmatprep.subr.bf16.mxu0 0
      %3403 = vmatpush1.bf16.msra.mxu0 0
      %3404 = vmatprep.subr.bf16.mxu0 0
      %3405 = vmatpush1.bf16.msra.mxu0 0
      %3406 = vmatprep.subr.bf16.mxu0 0
      %3407 = vmatpush1.bf16.msra.mxu0 0
      %3408 = vmatprep.subr.bf16.mxu0 0
      %3409 = vmatpush1.bf16.msra.mxu0 0
      %3410 = vmatprep.subr.bf16.mxu0 0
      %3411 = vmatpush1.bf16.msra.mxu0 0
      %3412 = vmatprep.subr.bf16.mxu0 0
      %3413 = vmatpush1.bf16.msra.mxu0 %v3396
      %3414 = vmatprep.subr.bf16.mxu0 0
      %3415 = vmatpush2.bf16.msra.mxu0 0
      %3416 = vmatprep.subr.bf16.mxu0 0
      %3417 = vmatpush2.bf16.msra.mxu0 0
      %3418 = vmatprep.subr.bf16.mxu0 0
      %3419 = vmatpush2.bf16.msra.mxu0 0
      %3420 = vmatprep.subr.bf16.mxu0 0
      %3421 = vmatpush2.bf16.msra.mxu0 0
      %3422 = vmatprep.subr.bf16.mxu0 0
      %3423 = vmatpush2.bf16.msra.mxu0 0
      %3424 = vmatprep.subr.bf16.mxu0 0
      %3425 = vmatpush2.bf16.msra.mxu0 0
      %3426 = vmatprep.subr.bf16.mxu0 0
      %3427 = vmatpush2.bf16.msra.mxu0 0
      %3428 = vmatprep.subr.bf16.mxu0 0
      %3429 = vmatpush2.bf16.msra.mxu0 0
      %3430 = vmatprep.mubr.bf16.mxu0 0
      %3431 = vmatmul.mubr.bf16.gmra.mxu0 %v2452
      %v3432 = vpop.f32.mrf.mxu0
      %v3433 = vadd.f32 0.0, %v3432
      %v3434 = vpop.f32.mrf.mxu0
      %v3435 = vpop.f32.mrf.mxu0
      %v3436 = vadd.f32 0.0, %v3435
      %v3437 = vpop.f32.mrf.mxu0
      %3438 = vmatprep.mubr.bf16.mxu0 0
      %3439 = vmatmul.mubr.bf16.gmra.mxu0 %v2455
      %v3440 = vpop.f32.mrf.mxu0
      %v3441 = vadd.f32 0.0, %v3440
      %v3442 = vpop.f32.mrf.mxu0
      %v3443 = vpop.f32.mrf.mxu0
      %v3444 = vadd.f32 0.0, %v3443
      %v3445 = vpop.f32.mrf.mxu0
      %3446 = vmatprep.mubr.bf16.mxu0 0
      %3447 = vmatmul.mubr.bf16.gmra.mxu0 %v2458
      %v3448 = vpop.f32.mrf.mxu0
      %v3449 = vadd.f32 0.0, %v3448
      %v3450 = vpop.f32.mrf.mxu0
      %v3451 = vpop.f32.mrf.mxu0
      %v3452 = vadd.f32 0.0, %v3451
      %v3453 = vpop.f32.mrf.mxu0
      %3454 = vmatprep.mubr.bf16.mxu0 0
      %3455 = vmatmul.mubr.bf16.gmra.mxu0 %v2461
      %v3456 = vpop.f32.mrf.mxu0
      %v3457 = vadd.f32 0.0, %v3456
      %v3458 = vpop.f32.mrf.mxu0
      %v3459 = vpop.f32.mrf.mxu0
      %v3460 = vadd.f32 0.0, %v3459
      %v3461 = vpop.f32.mrf.mxu0
      %3462 = vmatprep.mubr.bf16.mxu0 0
      %3463 = vmatmul.mubr.bf16.gmra.mxu0 %v2464
      %v3464 = vpop.f32.mrf.mxu0
      %v3465 = vadd.f32 0.0, %v3464
      %v3466 = vpop.f32.mrf.mxu0
      %v3467 = vpop.f32.mrf.mxu0
      %v3468 = vadd.f32 0.0, %v3467
      %v3469 = vpop.f32.mrf.mxu0
      %3470 = vmatprep.mubr.bf16.mxu0 0
      %3471 = vmatmul.mubr.bf16.gmra.mxu0 %v2467
      %v3472 = vpop.f32.mrf.mxu0
      %v3473 = vadd.f32 0.0, %v3472
      %v3474 = vpop.f32.mrf.mxu0
      %v3475 = vpop.f32.mrf.mxu0
      %v3476 = vadd.f32 0.0, %v3475
      %v3477 = vpop.f32.mrf.mxu0
      %3478 = vmatprep.mubr.bf16.mxu0 0
      %3479 = vmatmul.mubr.bf16.gmra.mxu0 %v2470
      %v3480 = vpop.f32.mrf.mxu0
      %v3481 = vadd.f32 0.0, %v3480
      %v3482 = vpop.f32.mrf.mxu0
      %v3483 = vpop.f32.mrf.mxu0
      %v3484 = vadd.f32 0.0, %v3483
      %v3485 = vpop.f32.mrf.mxu0
      %3486 = vmatprep.mubr.bf16.mxu0 0
      %3487 = vmatmul.mubr.bf16.gmra.mxu0 %v2473
      %v3488 = vpop.f32.mrf.mxu0
      %v3489 = vadd.f32 0.0, %v3488
      %v3490 = vpop.f32.mrf.mxu0
      %v3491 = vpop.f32.mrf.mxu0
      %v3492 = vadd.f32 0.0, %v3491
      %v3493 = vpop.f32.mrf.mxu0
      %3494 = vmatprep.mubr.bf16.mxu0 0
      %3495 = vmatmul.mubr.bf16.gmra.mxu0 %v2476
      %v3496 = vpop.f32.mrf.mxu0
      %v3497 = vadd.f32 0.0, %v3496
      %v3498 = vpop.f32.mrf.mxu0
      %v3499 = vpop.f32.mrf.mxu0
      %v3500 = vadd.f32 0.0, %v3499
      %v3501 = vpop.f32.mrf.mxu0
      %3502 = vmatprep.mubr.bf16.mxu0 0
      %3503 = vmatmul.mubr.bf16.gmra.mxu0 %v2479
      %v3504 = vpop.f32.mrf.mxu0
      %v3505 = vadd.f32 0.0, %v3504
      %v3506 = vpop.f32.mrf.mxu0
      %v3507 = vpop.f32.mrf.mxu0
      %v3508 = vadd.f32 0.0, %v3507
      %v3509 = vpop.f32.mrf.mxu0
      %3510 = vmatprep.mubr.bf16.mxu0 0
      %3511 = vmatmul.mubr.bf16.gmra.mxu0 %v2482
      %v3512 = vpop.f32.mrf.mxu0
      %v3513 = vadd.f32 0.0, %v3512
      %v3514 = vpop.f32.mrf.mxu0
      %v3515 = vpop.f32.mrf.mxu0
      %v3516 = vadd.f32 0.0, %v3515
      %v3517 = vpop.f32.mrf.mxu0
      %3518 = vmatprep.mubr.bf16.mxu0 0
      %3519 = vmatmul.mubr.bf16.gmra.mxu0 %v2485
      %v3520 = vpop.f32.mrf.mxu0
      %v3521 = vadd.f32 0.0, %v3520
      %v3522 = vpop.f32.mrf.mxu0
      %v3523 = vpop.f32.mrf.mxu0
      %v3524 = vadd.f32 0.0, %v3523
      %v3525 = vpop.f32.mrf.mxu0
      %3526 = vmatprep.mubr.bf16.mxu0 0
      %3527 = vmatmul.mubr.bf16.gmra.mxu0 %v2488
      %v3528 = vpop.f32.mrf.mxu0
      %v3529 = vadd.f32 0.0, %v3528
      %v3530 = vpop.f32.mrf.mxu0
      %v3531 = vpop.f32.mrf.mxu0
      %v3532 = vadd.f32 0.0, %v3531
      %v3533 = vpop.f32.mrf.mxu0
      %3534 = vmatprep.mubr.bf16.mxu0 0
      %3535 = vmatmul.mubr.bf16.gmra.mxu0 %v2491
      %v3536 = vpop.f32.mrf.mxu0
      %v3537 = vadd.f32 0.0, %v3536
      %v3538 = vpop.f32.mrf.mxu0
      %v3539 = vpop.f32.mrf.mxu0
      %v3540 = vadd.f32 0.0, %v3539
      %v3541 = vpop.f32.mrf.mxu0
      %3542 = vmatprep.mubr.bf16.mxu0 0
      %3543 = vmatmul.mubr.bf16.gmra.mxu0 %v2494
      %v3544 = vpop.f32.mrf.mxu0
      %v3545 = vadd.f32 0.0, %v3544
      %v3546 = vpop.f32.mrf.mxu0
      %v3547 = vpop.f32.mrf.mxu0
      %v3548 = vadd.f32 0.0, %v3547
      %v3549 = vpop.f32.mrf.mxu0
      %3550 = vmatprep.mubr.bf16.mxu0 0
      %3551 = vmatmul.mubr.bf16.gmra.mxu0 %v3393
      %v3552 = vpop.f32.mrf.mxu0
      %v3553 = vadd.f32 0.0, %v3552
      %v3554 = vpop.f32.mrf.mxu0
      %v3555 = vpop.f32.mrf.mxu0
      %v3556 = vadd.f32 0.0, %v3555
      %v3557 = vpop.f32.mrf.mxu0
      %3558 = vdwg.mxu0
      %v3559 = vadd.f32 %v3349, %v3433
      %v3560 = vadd.f32 %v3350, %v3436
      %v3561 = vadd.f32 %v3351, %v3441
      %v3562 = vadd.f32 %v3352, %v3444
      %v3563 = vadd.f32 %v3353, %v3449
      %v3564 = vadd.f32 %v3354, %v3452
      %v3565 = vadd.f32 %v3355, %v3457
      %v3566 = vadd.f32 %v3356, %v3460
      %v3567 = vadd.f32 %v3357, %v3465
      %v3568 = vadd.f32 %v3358, %v3468
      %v3569 = vadd.f32 %v3359, %v3473
      %v3570 = vadd.f32 %v3360, %v3476
      %v3571 = vadd.f32 %v3361, %v3481
      %v3572 = vadd.f32 %v3362, %v3484
      %v3573 = vadd.f32 %v3363, %v3489
      %v3574 = vadd.f32 %v3364, %v3492
      %v3575 = vadd.f32 %v3365, %v3497
      %v3576 = vadd.f32 %v3366, %v3500
      %v3577 = vadd.f32 %v3367, %v3505
      %v3578 = vadd.f32 %v3368, %v3508
      %v3579 = vadd.f32 %v3369, %v3513
      %v3580 = vadd.f32 %v3370, %v3516
      %v3581 = vadd.f32 %v3371, %v3521
      %v3582 = vadd.f32 %v3372, %v3524
      %v3583 = vadd.f32 %v3373, %v3529
      %v3584 = vadd.f32 %v3374, %v3532
      %v3585 = vadd.f32 %v3375, %v3537
      %v3586 = vadd.f32 %v3376, %v3540
      %v3587 = vadd.f32 %v3377, %v3545
      %v3588 = vadd.f32 %v3378, %v3548
      %v3589 = vadd.f32 %v3379, %v3553
      %v3590 = vadd.f32 %v3380, %v3556
      %v3593 = vrot.slane %v2128, 1
      %v3594 = vrot.slane %v2129, 1
      %v3595 = vsel %vm2889, %v3593, %v3594
      %v3597 = vsel %vm2447, %v3595, 0
      %v3600 = vsel %vm2496, %v587, 0
      %3602 = vmatprep.subr.bf16.mxu0 0
      %3603 = vmatpush1.bf16.msra.mxu0 0
      %3604 = vmatprep.subr.bf16.mxu0 0
      %3605 = vmatpush1.bf16.msra.mxu0 0
      %3606 = vmatprep.subr.bf16.mxu0 0
      %3607 = vmatpush1.bf16.msra.mxu0 0
      %3608 = vmatprep.subr.bf16.mxu0 0
      %3609 = vmatpush1.bf16.msra.mxu0 0
      %3610 = vmatprep.subr.bf16.mxu0 0
      %3611 = vmatpush1.bf16.msra.mxu0 0
      %3612 = vmatprep.subr.bf16.mxu0 0
      %3613 = vmatpush1.bf16.msra.mxu0 0
      %3614 = vmatprep.subr.bf16.mxu0 0
      %3615 = vmatpush1.bf16.msra.mxu0 0
      %3616 = vmatprep.subr.bf16.mxu0 0
      %3617 = vmatpush1.bf16.msra.mxu0 %v3600
      %3618 = vmatprep.subr.bf16.mxu0 0
      %3619 = vmatpush2.bf16.msra.mxu0 0
      %3620 = vmatprep.subr.bf16.mxu0 0
      %3621 = vmatpush2.bf16.msra.mxu0 0
      %3622 = vmatprep.subr.bf16.mxu0 0
      %3623 = vmatpush2.bf16.msra.mxu0 0
      %3624 = vmatprep.subr.bf16.mxu0 0
      %3625 = vmatpush2.bf16.msra.mxu0 0
      %3626 = vmatprep.subr.bf16.mxu0 0
      %3627 = vmatpush2.bf16.msra.mxu0 0
      %3628 = vmatprep.subr.bf16.mxu0 0
      %3629 = vmatpush2.bf16.msra.mxu0 0
      %3630 = vmatprep.subr.bf16.mxu0 0
      %3631 = vmatpush2.bf16.msra.mxu0 0
      %3632 = vmatprep.subr.bf16.mxu0 0
      %3633 = vmatpush2.bf16.msra.mxu0 0
      %3634 = vmatprep.mubr.bf16.mxu0 0
      %3635 = vmatmul.mubr.bf16.gmra.mxu0 %v2942
      %v3636 = vpop.f32.mrf.mxu0
      %v3637 = vadd.f32 0.0, %v3636
      %v3638 = vpop.f32.mrf.mxu0
      %v3639 = vpop.f32.mrf.mxu0
      %v3640 = vadd.f32 0.0, %v3639
      %v3641 = vpop.f32.mrf.mxu0
      %3642 = vmatprep.mubr.bf16.mxu0 0
      %3643 = vmatmul.mubr.bf16.gmra.mxu0 %v2945
      %v3644 = vpop.f32.mrf.mxu0
      %v3645 = vadd.f32 0.0, %v3644
      %v3646 = vpop.f32.mrf.mxu0
      %v3647 = vpop.f32.mrf.mxu0
      %v3648 = vadd.f32 0.0, %v3647
      %v3649 = vpop.f32.mrf.mxu0
      %3650 = vmatprep.mubr.bf16.mxu0 0
      %3651 = vmatmul.mubr.bf16.gmra.mxu0 %v2948
      %v3652 = vpop.f32.mrf.mxu0
      %v3653 = vadd.f32 0.0, %v3652
      %v3654 = vpop.f32.mrf.mxu0
      %v3655 = vpop.f32.mrf.mxu0
      %v3656 = vadd.f32 0.0, %v3655
      %v3657 = vpop.f32.mrf.mxu0
      %3658 = vmatprep.mubr.bf16.mxu0 0
      %3659 = vmatmul.mubr.bf16.gmra.mxu0 %v2951
      %v3660 = vpop.f32.mrf.mxu0
      %v3661 = vadd.f32 0.0, %v3660
      %v3662 = vpop.f32.mrf.mxu0
      %v3663 = vpop.f32.mrf.mxu0
      %v3664 = vadd.f32 0.0, %v3663
      %v3665 = vpop.f32.mrf.mxu0
      %3666 = vmatprep.mubr.bf16.mxu0 0
      %3667 = vmatmul.mubr.bf16.gmra.mxu0 %v2954
      %v3668 = vpop.f32.mrf.mxu0
      %v3669 = vadd.f32 0.0, %v3668
      %v3670 = vpop.f32.mrf.mxu0
      %v3671 = vpop.f32.mrf.mxu0
      %v3672 = vadd.f32 0.0, %v3671
      %v3673 = vpop.f32.mrf.mxu0
      %3674 = vmatprep.mubr.bf16.mxu0 0
      %3675 = vmatmul.mubr.bf16.gmra.mxu0 %v2957
      %v3676 = vpop.f32.mrf.mxu0
      %v3677 = vadd.f32 0.0, %v3676
      %v3678 = vpop.f32.mrf.mxu0
      %v3679 = vpop.f32.mrf.mxu0
      %v3680 = vadd.f32 0.0, %v3679
      %v3681 = vpop.f32.mrf.mxu0
      %3682 = vmatprep.mubr.bf16.mxu0 0
      %3683 = vmatmul.mubr.bf16.gmra.mxu0 %v2960
      %v3684 = vpop.f32.mrf.mxu0
      %v3685 = vadd.f32 0.0, %v3684
      %v3686 = vpop.f32.mrf.mxu0
      %v3687 = vpop.f32.mrf.mxu0
      %v3688 = vadd.f32 0.0, %v3687
      %v3689 = vpop.f32.mrf.mxu0
      %3690 = vmatprep.mubr.bf16.mxu0 0
      %3691 = vmatmul.mubr.bf16.gmra.mxu0 %v2963
      %v3692 = vpop.f32.mrf.mxu0
      %v3693 = vadd.f32 0.0, %v3692
      %v3694 = vpop.f32.mrf.mxu0
      %v3695 = vpop.f32.mrf.mxu0
      %v3696 = vadd.f32 0.0, %v3695
      %v3697 = vpop.f32.mrf.mxu0
      %3698 = vmatprep.mubr.bf16.mxu0 0
      %3699 = vmatmul.mubr.bf16.gmra.mxu0 %v2966
      %v3700 = vpop.f32.mrf.mxu0
      %v3701 = vadd.f32 0.0, %v3700
      %v3702 = vpop.f32.mrf.mxu0
      %v3703 = vpop.f32.mrf.mxu0
      %v3704 = vadd.f32 0.0, %v3703
      %v3705 = vpop.f32.mrf.mxu0
      %3706 = vmatprep.mubr.bf16.mxu0 0
      %3707 = vmatmul.mubr.bf16.gmra.mxu0 %v2969
      %v3708 = vpop.f32.mrf.mxu0
      %v3709 = vadd.f32 0.0, %v3708
      %v3710 = vpop.f32.mrf.mxu0
      %v3711 = vpop.f32.mrf.mxu0
      %v3712 = vadd.f32 0.0, %v3711
      %v3713 = vpop.f32.mrf.mxu0
      %3714 = vmatprep.mubr.bf16.mxu0 0
      %3715 = vmatmul.mubr.bf16.gmra.mxu0 %v2972
      %v3716 = vpop.f32.mrf.mxu0
      %v3717 = vadd.f32 0.0, %v3716
      %v3718 = vpop.f32.mrf.mxu0
      %v3719 = vpop.f32.mrf.mxu0
      %v3720 = vadd.f32 0.0, %v3719
      %v3721 = vpop.f32.mrf.mxu0
      %3722 = vmatprep.mubr.bf16.mxu0 0
      %3723 = vmatmul.mubr.bf16.gmra.mxu0 %v2975
      %v3724 = vpop.f32.mrf.mxu0
      %v3725 = vadd.f32 0.0, %v3724
      %v3726 = vpop.f32.mrf.mxu0
      %v3727 = vpop.f32.mrf.mxu0
      %v3728 = vadd.f32 0.0, %v3727
      %v3729 = vpop.f32.mrf.mxu0
      %3730 = vmatprep.mubr.bf16.mxu0 0
      %3731 = vmatmul.mubr.bf16.gmra.mxu0 %v2978
      %v3732 = vpop.f32.mrf.mxu0
      %v3733 = vadd.f32 0.0, %v3732
      %v3734 = vpop.f32.mrf.mxu0
      %v3735 = vpop.f32.mrf.mxu0
      %v3736 = vadd.f32 0.0, %v3735
      %v3737 = vpop.f32.mrf.mxu0
      %3738 = vmatprep.mubr.bf16.mxu0 0
      %3739 = vmatmul.mubr.bf16.gmra.mxu0 %v2981
      %v3740 = vpop.f32.mrf.mxu0
      %v3741 = vadd.f32 0.0, %v3740
      %v3742 = vpop.f32.mrf.mxu0
      %v3743 = vpop.f32.mrf.mxu0
      %v3744 = vadd.f32 0.0, %v3743
      %v3745 = vpop.f32.mrf.mxu0
      %3746 = vmatprep.mubr.bf16.mxu0 0
      %3747 = vmatmul.mubr.bf16.gmra.mxu0 %v2984
      %v3748 = vpop.f32.mrf.mxu0
      %v3749 = vadd.f32 0.0, %v3748
      %v3750 = vpop.f32.mrf.mxu0
      %v3751 = vpop.f32.mrf.mxu0
      %v3752 = vadd.f32 0.0, %v3751
      %v3753 = vpop.f32.mrf.mxu0
      %3754 = vmatprep.mubr.bf16.mxu0 0
      %3755 = vmatmul.mubr.bf16.gmra.mxu0 %v3597
      %v3756 = vpop.f32.mrf.mxu0
      %v3757 = vadd.f32 0.0, %v3756
      %v3758 = vpop.f32.mrf.mxu0
      %v3759 = vpop.f32.mrf.mxu0
      %v3760 = vadd.f32 0.0, %v3759
      %v3761 = vpop.f32.mrf.mxu0
      %3762 = vdwg.mxu0
      %v3763 = vadd.f32 %v3559, %v3637
      %v3764 = vadd.f32 %v3560, %v3640
      %v3765 = vadd.f32 %v3561, %v3645
      %v3766 = vadd.f32 %v3562, %v3648
      %v3767 = vadd.f32 %v3563, %v3653
      %v3768 = vadd.f32 %v3564, %v3656
      %v3769 = vadd.f32 %v3565, %v3661
      %v3770 = vadd.f32 %v3566, %v3664
      %v3771 = vadd.f32 %v3567, %v3669
      %v3772 = vadd.f32 %v3568, %v3672
      %v3773 = vadd.f32 %v3569, %v3677
      %v3774 = vadd.f32 %v3570, %v3680
      %v3775 = vadd.f32 %v3571, %v3685
      %v3776 = vadd.f32 %v3572, %v3688
      %v3777 = vadd.f32 %v3573, %v3693
      %v3778 = vadd.f32 %v3574, %v3696
      %v3779 = vadd.f32 %v3575, %v3701
      %v3780 = vadd.f32 %v3576, %v3704
      %v3781 = vadd.f32 %v3577, %v3709
      %v3782 = vadd.f32 %v3578, %v3712
      %v3783 = vadd.f32 %v3579, %v3717
      %v3784 = vadd.f32 %v3580, %v3720
      %v3785 = vadd.f32 %v3581, %v3725
      %v3786 = vadd.f32 %v3582, %v3728
      %v3787 = vadd.f32 %v3583, %v3733
      %v3788 = vadd.f32 %v3584, %v3736
      %v3789 = vadd.f32 %v3585, %v3741
      %v3790 = vadd.f32 %v3586, %v3744
      %v3791 = vadd.f32 %v3587, %v3749
      %v3792 = vadd.f32 %v3588, %v3752
      %v3793 = vadd.f32 %v3589, %v3757
      %v3794 = vadd.f32 %v3590, %v3760
      %v3796 = vsel %vm2447, %v2252, 0
      %v3799 = vsel %vm2496, %v588, 0
      %3801 = vmatprep.subr.bf16.mxu0 0
      %3802 = vmatpush1.bf16.msra.mxu0 0
      %3803 = vmatprep.subr.bf16.mxu0 0
      %3804 = vmatpush1.bf16.msra.mxu0 0
      %3805 = vmatprep.subr.bf16.mxu0 0
      %3806 = vmatpush1.bf16.msra.mxu0 0
      %3807 = vmatprep.subr.bf16.mxu0 0
      %3808 = vmatpush1.bf16.msra.mxu0 0
      %3809 = vmatprep.subr.bf16.mxu0 0
      %3810 = vmatpush1.bf16.msra.mxu0 0
      %3811 = vmatprep.subr.bf16.mxu0 0
      %3812 = vmatpush1.bf16.msra.mxu0 0
      %3813 = vmatprep.subr.bf16.mxu0 0
      %3814 = vmatpush1.bf16.msra.mxu0 0
      %3815 = vmatprep.subr.bf16.mxu0 0
      %3816 = vmatpush1.bf16.msra.mxu0 %v3799
      %3817 = vmatprep.subr.bf16.mxu0 0
      %3818 = vmatpush2.bf16.msra.mxu0 0
      %3819 = vmatprep.subr.bf16.mxu0 0
      %3820 = vmatpush2.bf16.msra.mxu0 0
      %3821 = vmatprep.subr.bf16.mxu0 0
      %3822 = vmatpush2.bf16.msra.mxu0 0
      %3823 = vmatprep.subr.bf16.mxu0 0
      %3824 = vmatpush2.bf16.msra.mxu0 0
      %3825 = vmatprep.subr.bf16.mxu0 0
      %3826 = vmatpush2.bf16.msra.mxu0 0
      %3827 = vmatprep.subr.bf16.mxu0 0
      %3828 = vmatpush2.bf16.msra.mxu0 0
      %3829 = vmatprep.subr.bf16.mxu0 0
      %3830 = vmatpush2.bf16.msra.mxu0 0
      %3831 = vmatprep.subr.bf16.mxu0 0
      %3832 = vmatpush2.bf16.msra.mxu0 0
      %3833 = vmatprep.mubr.bf16.mxu0 0
      %3834 = vmatmul.mubr.bf16.gmra.mxu0 %v2665
      %v3835 = vpop.f32.mrf.mxu0
      %v3836 = vadd.f32 0.0, %v3835
      %v3837 = vpop.f32.mrf.mxu0
      %v3838 = vpop.f32.mrf.mxu0
      %v3839 = vadd.f32 0.0, %v3838
      %v3840 = vpop.f32.mrf.mxu0
      %3841 = vmatprep.mubr.bf16.mxu0 0
      %3842 = vmatmul.mubr.bf16.gmra.mxu0 %v2667
      %v3843 = vpop.f32.mrf.mxu0
      %v3844 = vadd.f32 0.0, %v3843
      %v3845 = vpop.f32.mrf.mxu0
      %v3846 = vpop.f32.mrf.mxu0
      %v3847 = vadd.f32 0.0, %v3846
      %v3848 = vpop.f32.mrf.mxu0
      %3849 = vmatprep.mubr.bf16.mxu0 0
      %3850 = vmatmul.mubr.bf16.gmra.mxu0 %v2669
      %v3851 = vpop.f32.mrf.mxu0
      %v3852 = vadd.f32 0.0, %v3851
      %v3853 = vpop.f32.mrf.mxu0
      %v3854 = vpop.f32.mrf.mxu0
      %v3855 = vadd.f32 0.0, %v3854
      %v3856 = vpop.f32.mrf.mxu0
      %3857 = vmatprep.mubr.bf16.mxu0 0
      %3858 = vmatmul.mubr.bf16.gmra.mxu0 %v2671
      %v3859 = vpop.f32.mrf.mxu0
      %v3860 = vadd.f32 0.0, %v3859
      %v3861 = vpop.f32.mrf.mxu0
      %v3862 = vpop.f32.mrf.mxu0
      %v3863 = vadd.f32 0.0, %v3862
      %v3864 = vpop.f32.mrf.mxu0
      %3865 = vmatprep.mubr.bf16.mxu0 0
      %3866 = vmatmul.mubr.bf16.gmra.mxu0 %v2673
      %v3867 = vpop.f32.mrf.mxu0
      %v3868 = vadd.f32 0.0, %v3867
      %v3869 = vpop.f32.mrf.mxu0
      %v3870 = vpop.f32.mrf.mxu0
      %v3871 = vadd.f32 0.0, %v3870
      %v3872 = vpop.f32.mrf.mxu0
      %3873 = vmatprep.mubr.bf16.mxu0 0
      %3874 = vmatmul.mubr.bf16.gmra.mxu0 %v2675
      %v3875 = vpop.f32.mrf.mxu0
      %v3876 = vadd.f32 0.0, %v3875
      %v3877 = vpop.f32.mrf.mxu0
      %v3878 = vpop.f32.mrf.mxu0
      %v3879 = vadd.f32 0.0, %v3878
      %v3880 = vpop.f32.mrf.mxu0
      %3881 = vmatprep.mubr.bf16.mxu0 0
      %3882 = vmatmul.mubr.bf16.gmra.mxu0 %v2677
      %v3883 = vpop.f32.mrf.mxu0
      %v3884 = vadd.f32 0.0, %v3883
      %v3885 = vpop.f32.mrf.mxu0
      %v3886 = vpop.f32.mrf.mxu0
      %v3887 = vadd.f32 0.0, %v3886
      %v3888 = vpop.f32.mrf.mxu0
      %3889 = vmatprep.mubr.bf16.mxu0 0
      %3890 = vmatmul.mubr.bf16.gmra.mxu0 %v2679
      %v3891 = vpop.f32.mrf.mxu0
      %v3892 = vadd.f32 0.0, %v3891
      %v3893 = vpop.f32.mrf.mxu0
      %v3894 = vpop.f32.mrf.mxu0
      %v3895 = vadd.f32 0.0, %v3894
      %v3896 = vpop.f32.mrf.mxu0
      %3897 = vmatprep.mubr.bf16.mxu0 0
      %3898 = vmatmul.mubr.bf16.gmra.mxu0 %v2681
      %v3899 = vpop.f32.mrf.mxu0
      %v3900 = vadd.f32 0.0, %v3899
      %v3901 = vpop.f32.mrf.mxu0
      %v3902 = vpop.f32.mrf.mxu0
      %v3903 = vadd.f32 0.0, %v3902
      %v3904 = vpop.f32.mrf.mxu0
      %3905 = vmatprep.mubr.bf16.mxu0 0
      %3906 = vmatmul.mubr.bf16.gmra.mxu0 %v2683
      %v3907 = vpop.f32.mrf.mxu0
      %v3908 = vadd.f32 0.0, %v3907
      %v3909 = vpop.f32.mrf.mxu0
      %v3910 = vpop.f32.mrf.mxu0
      %v3911 = vadd.f32 0.0, %v3910
      %v3912 = vpop.f32.mrf.mxu0
      %3913 = vmatprep.mubr.bf16.mxu0 0
      %3914 = vmatmul.mubr.bf16.gmra.mxu0 %v2685
      %v3915 = vpop.f32.mrf.mxu0
      %v3916 = vadd.f32 0.0, %v3915
      %v3917 = vpop.f32.mrf.mxu0
      %v3918 = vpop.f32.mrf.mxu0
      %v3919 = vadd.f32 0.0, %v3918
      %v3920 = vpop.f32.mrf.mxu0
      %3921 = vmatprep.mubr.bf16.mxu0 0
      %3922 = vmatmul.mubr.bf16.gmra.mxu0 %v2687
      %v3923 = vpop.f32.mrf.mxu0
      %v3924 = vadd.f32 0.0, %v3923
      %v3925 = vpop.f32.mrf.mxu0
      %v3926 = vpop.f32.mrf.mxu0
      %v3927 = vadd.f32 0.0, %v3926
      %v3928 = vpop.f32.mrf.mxu0
      %3929 = vmatprep.mubr.bf16.mxu0 0
      %3930 = vmatmul.mubr.bf16.gmra.mxu0 %v2689
      %v3931 = vpop.f32.mrf.mxu0
      %v3932 = vadd.f32 0.0, %v3931
      %v3933 = vpop.f32.mrf.mxu0
      %v3934 = vpop.f32.mrf.mxu0
      %v3935 = vadd.f32 0.0, %v3934
      %v3936 = vpop.f32.mrf.mxu0
      %3937 = vmatprep.mubr.bf16.mxu0 0
      %3938 = vmatmul.mubr.bf16.gmra.mxu0 %v2691
      %v3939 = vpop.f32.mrf.mxu0
      %v3940 = vadd.f32 0.0, %v3939
      %v3941 = vpop.f32.mrf.mxu0
      %v3942 = vpop.f32.mrf.mxu0
      %v3943 = vadd.f32 0.0, %v3942
      %v3944 = vpop.f32.mrf.mxu0
      %3945 = vmatprep.mubr.bf16.mxu0 0
      %3946 = vmatmul.mubr.bf16.gmra.mxu0 %v3183
      %v3947 = vpop.f32.mrf.mxu0
      %v3948 = vadd.f32 0.0, %v3947
      %v3949 = vpop.f32.mrf.mxu0
      %v3950 = vpop.f32.mrf.mxu0
      %v3951 = vadd.f32 0.0, %v3950
      %v3952 = vpop.f32.mrf.mxu0
      %3953 = vmatprep.mubr.bf16.mxu0 0
      %3954 = vmatmul.mubr.bf16.gmra.mxu0 %v3796
      %v3955 = vpop.f32.mrf.mxu0
      %v3956 = vadd.f32 0.0, %v3955
      %v3957 = vpop.f32.mrf.mxu0
      %v3958 = vpop.f32.mrf.mxu0
      %v3959 = vadd.f32 0.0, %v3958
      %v3960 = vpop.f32.mrf.mxu0
      %3961 = vdwg.mxu0
      %v3962 = vadd.f32 %v3763, %v3836
      %v3963 = vadd.f32 %v3764, %v3839
      %v3964 = vadd.f32 %v3765, %v3844
      %v3965 = vadd.f32 %v3766, %v3847
      %v3966 = vadd.f32 %v3767, %v3852
      %v3967 = vadd.f32 %v3768, %v3855
      %v3968 = vadd.f32 %v3769, %v3860
      %v3969 = vadd.f32 %v3770, %v3863
      %v3970 = vadd.f32 %v3771, %v3868
      %v3971 = vadd.f32 %v3772, %v3871
      %v3972 = vadd.f32 %v3773, %v3876
      %v3973 = vadd.f32 %v3774, %v3879
      %v3974 = vadd.f32 %v3775, %v3884
      %v3975 = vadd.f32 %v3776, %v3887
      %v3976 = vadd.f32 %v3777, %v3892
      %v3977 = vadd.f32 %v3778, %v3895
      %v3978 = vadd.f32 %v3779, %v3900
      %v3979 = vadd.f32 %v3780, %v3903
      %v3980 = vadd.f32 %v3781, %v3908
      %v3981 = vadd.f32 %v3782, %v3911
      %v3982 = vadd.f32 %v3783, %v3916
      %v3983 = vadd.f32 %v3784, %v3919
      %v3984 = vadd.f32 %v3785, %v3924
      %v3985 = vadd.f32 %v3786, %v3927
      %v3986 = vadd.f32 %v3787, %v3932
      %v3987 = vadd.f32 %v3788, %v3935
      %v3988 = vadd.f32 %v3789, %v3940
      %v3989 = vadd.f32 %v3790, %v3943
      %v3990 = vadd.f32 %v3791, %v3948
      %v3991 = vadd.f32 %v3792, %v3951
      %v3992 = vadd.f32 %v3793, %v3956
      %v3993 = vadd.f32 %v3794, %v3959
      %v3994 = vshrl.u32 %v2252, 16
      %v3996 = vshll.u32 %v2252, 16
      %v3998 = vrot.slane %v3996, 1
      %v3999 = vor.u32 %v3994, %v3998
      %v4001 = vshll.u32 %v2253, 16
      %v4003 = vrot.slane %v4001, 1
      %v4004 = vsel %vm2254, %v3999, %v4003
      %v4006 = vsel %vm2447, %v4004, 0
      %v4009 = vsel %vm2496, %v589, 0
      %4011 = vmatprep.subr.bf16.mxu0 0
      %4012 = vmatpush1.bf16.msra.mxu0 0
      %4013 = vmatprep.subr.bf16.mxu0 0
      %4014 = vmatpush1.bf16.msra.mxu0 0
      %4015 = vmatprep.subr.bf16.mxu0 0
      %4016 = vmatpush1.bf16.msra.mxu0 0
      %4017 = vmatprep.subr.bf16.mxu0 0
      %4018 = vmatpush1.bf16.msra.mxu0 0
      %4019 = vmatprep.subr.bf16.mxu0 0
      %4020 = vmatpush1.bf16.msra.mxu0 0
      %4021 = vmatprep.subr.bf16.mxu0 0
      %4022 = vmatpush1.bf16.msra.mxu0 0
      %4023 = vmatprep.subr.bf16.mxu0 0
      %4024 = vmatpush1.bf16.msra.mxu0 0
      %4025 = vmatprep.subr.bf16.mxu0 0
      %4026 = vmatpush1.bf16.msra.mxu0 %v4009
      %4027 = vmatprep.subr.bf16.mxu0 0
      %4028 = vmatpush2.bf16.msra.mxu0 0
      %4029 = vmatprep.subr.bf16.mxu0 0
      %4030 = vmatpush2.bf16.msra.mxu0 0
      %4031 = vmatprep.subr.bf16.mxu0 0
      %4032 = vmatpush2.bf16.msra.mxu0 0
      %4033 = vmatprep.subr.bf16.mxu0 0
      %4034 = vmatpush2.bf16.msra.mxu0 0
      %4035 = vmatprep.subr.bf16.mxu0 0
      %4036 = vmatpush2.bf16.msra.mxu0 0
      %4037 = vmatprep.subr.bf16.mxu0 0
      %4038 = vmatpush2.bf16.msra.mxu0 0
      %4039 = vmatprep.subr.bf16.mxu0 0
      %4040 = vmatpush2.bf16.msra.mxu0 0
      %4041 = vmatprep.subr.bf16.mxu0 0
      %4042 = vmatpush2.bf16.msra.mxu0 0
      %4043 = vmatprep.mubr.bf16.mxu0 0
      %4044 = vmatmul.mubr.bf16.gmra.mxu0 %v2455
      %v4045 = vpop.f32.mrf.mxu0
      %v4046 = vadd.f32 0.0, %v4045
      %v4047 = vpop.f32.mrf.mxu0
      %v4048 = vpop.f32.mrf.mxu0
      %v4049 = vadd.f32 0.0, %v4048
      %v4050 = vpop.f32.mrf.mxu0
      %4051 = vmatprep.mubr.bf16.mxu0 0
      %4052 = vmatmul.mubr.bf16.gmra.mxu0 %v2458
      %v4053 = vpop.f32.mrf.mxu0
      %v4054 = vadd.f32 0.0, %v4053
      %v4055 = vpop.f32.mrf.mxu0
      %v4056 = vpop.f32.mrf.mxu0
      %v4057 = vadd.f32 0.0, %v4056
      %v4058 = vpop.f32.mrf.mxu0
      %4059 = vmatprep.mubr.bf16.mxu0 0
      %4060 = vmatmul.mubr.bf16.gmra.mxu0 %v2461
      %v4061 = vpop.f32.mrf.mxu0
      %v4062 = vadd.f32 0.0, %v4061
      %v4063 = vpop.f32.mrf.mxu0
      %v4064 = vpop.f32.mrf.mxu0
      %v4065 = vadd.f32 0.0, %v4064
      %v4066 = vpop.f32.mrf.mxu0
      %4067 = vmatprep.mubr.bf16.mxu0 0
      %4068 = vmatmul.mubr.bf16.gmra.mxu0 %v2464
      %v4069 = vpop.f32.mrf.mxu0
      %v4070 = vadd.f32 0.0, %v4069
      %v4071 = vpop.f32.mrf.mxu0
      %v4072 = vpop.f32.mrf.mxu0
      %v4073 = vadd.f32 0.0, %v4072
      %v4074 = vpop.f32.mrf.mxu0
      %4075 = vmatprep.mubr.bf16.mxu0 0
      %4076 = vmatmul.mubr.bf16.gmra.mxu0 %v2467
      %v4077 = vpop.f32.mrf.mxu0
      %v4078 = vadd.f32 0.0, %v4077
      %v4079 = vpop.f32.mrf.mxu0
      %v4080 = vpop.f32.mrf.mxu0
      %v4081 = vadd.f32 0.0, %v4080
      %v4082 = vpop.f32.mrf.mxu0
      %4083 = vmatprep.mubr.bf16.mxu0 0
      %4084 = vmatmul.mubr.bf16.gmra.mxu0 %v2470
      %v4085 = vpop.f32.mrf.mxu0
      %v4086 = vadd.f32 0.0, %v4085
      %v4087 = vpop.f32.mrf.mxu0
      %v4088 = vpop.f32.mrf.mxu0
      %v4089 = vadd.f32 0.0, %v4088
      %v4090 = vpop.f32.mrf.mxu0
      %4091 = vmatprep.mubr.bf16.mxu0 0
      %4092 = vmatmul.mubr.bf16.gmra.mxu0 %v2473
      %v4093 = vpop.f32.mrf.mxu0
      %v4094 = vadd.f32 0.0, %v4093
      %v4095 = vpop.f32.mrf.mxu0
      %v4096 = vpop.f32.mrf.mxu0
      %v4097 = vadd.f32 0.0, %v4096
      %v4098 = vpop.f32.mrf.mxu0
      %4099 = vmatprep.mubr.bf16.mxu0 0
      %4100 = vmatmul.mubr.bf16.gmra.mxu0 %v2476
      %v4101 = vpop.f32.mrf.mxu0
      %v4102 = vadd.f32 0.0, %v4101
      %v4103 = vpop.f32.mrf.mxu0
      %v4104 = vpop.f32.mrf.mxu0
      %v4105 = vadd.f32 0.0, %v4104
      %v4106 = vpop.f32.mrf.mxu0
      %4107 = vmatprep.mubr.bf16.mxu0 0
      %4108 = vmatmul.mubr.bf16.gmra.mxu0 %v2479
      %v4109 = vpop.f32.mrf.mxu0
      %v4110 = vadd.f32 0.0, %v4109
      %v4111 = vpop.f32.mrf.mxu0
      %v4112 = vpop.f32.mrf.mxu0
      %v4113 = vadd.f32 0.0, %v4112
      %v4114 = vpop.f32.mrf.mxu0
      %4115 = vmatprep.mubr.bf16.mxu0 0
      %4116 = vmatmul.mubr.bf16.gmra.mxu0 %v2482
      %v4117 = vpop.f32.mrf.mxu0
      %v4118 = vadd.f32 0.0, %v4117
      %v4119 = vpop.f32.mrf.mxu0
      %v4120 = vpop.f32.mrf.mxu0
      %v4121 = vadd.f32 0.0, %v4120
      %v4122 = vpop.f32.mrf.mxu0
      %4123 = vmatprep.mubr.bf16.mxu0 0
      %4124 = vmatmul.mubr.bf16.gmra.mxu0 %v2485
      %v4125 = vpop.f32.mrf.mxu0
      %v4126 = vadd.f32 0.0, %v4125
      %v4127 = vpop.f32.mrf.mxu0
      %v4128 = vpop.f32.mrf.mxu0
      %v4129 = vadd.f32 0.0, %v4128
      %v4130 = vpop.f32.mrf.mxu0
      %4131 = vmatprep.mubr.bf16.mxu0 0
      %4132 = vmatmul.mubr.bf16.gmra.mxu0 %v2488
      %v4133 = vpop.f32.mrf.mxu0
      %v4134 = vadd.f32 0.0, %v4133
      %v4135 = vpop.f32.mrf.mxu0
      %v4136 = vpop.f32.mrf.mxu0
      %v4137 = vadd.f32 0.0, %v4136
      %v4138 = vpop.f32.mrf.mxu0
      %4139 = vmatprep.mubr.bf16.mxu0 0
      %4140 = vmatmul.mubr.bf16.gmra.mxu0 %v2491
      %v4141 = vpop.f32.mrf.mxu0
      %v4142 = vadd.f32 0.0, %v4141
      %v4143 = vpop.f32.mrf.mxu0
      %v4144 = vpop.f32.mrf.mxu0
      %v4145 = vadd.f32 0.0, %v4144
      %v4146 = vpop.f32.mrf.mxu0
      %4147 = vmatprep.mubr.bf16.mxu0 0
      %4148 = vmatmul.mubr.bf16.gmra.mxu0 %v2494
      %v4149 = vpop.f32.mrf.mxu0
      %v4150 = vadd.f32 0.0, %v4149
      %v4151 = vpop.f32.mrf.mxu0
      %v4152 = vpop.f32.mrf.mxu0
      %v4153 = vadd.f32 0.0, %v4152
      %v4154 = vpop.f32.mrf.mxu0
      %4155 = vmatprep.mubr.bf16.mxu0 0
      %4156 = vmatmul.mubr.bf16.gmra.mxu0 %v3393
      %v4157 = vpop.f32.mrf.mxu0
      %v4158 = vadd.f32 0.0, %v4157
      %v4159 = vpop.f32.mrf.mxu0
      %v4160 = vpop.f32.mrf.mxu0
      %v4161 = vadd.f32 0.0, %v4160
      %v4162 = vpop.f32.mrf.mxu0
      %4163 = vmatprep.mubr.bf16.mxu0 0
      %4164 = vmatmul.mubr.bf16.gmra.mxu0 %v4006
      %v4165 = vpop.f32.mrf.mxu0
      %v4166 = vadd.f32 0.0, %v4165
      %v4167 = vpop.f32.mrf.mxu0
      %v4168 = vpop.f32.mrf.mxu0
      %v4169 = vadd.f32 0.0, %v4168
      %v4170 = vpop.f32.mrf.mxu0
      %4171 = vdwg.mxu0
      %v4172 = vadd.f32 %v3962, %v4046
      %v4173 = vadd.f32 %v3963, %v4049
      %v4174 = vadd.f32 %v3964, %v4054
      %v4175 = vadd.f32 %v3965, %v4057
      %v4176 = vadd.f32 %v3966, %v4062
      %v4177 = vadd.f32 %v3967, %v4065
      %v4178 = vadd.f32 %v3968, %v4070
      %v4179 = vadd.f32 %v3969, %v4073
      %v4180 = vadd.f32 %v3970, %v4078
      %v4181 = vadd.f32 %v3971, %v4081
      %v4182 = vadd.f32 %v3972, %v4086
      %v4183 = vadd.f32 %v3973, %v4089
      %v4184 = vadd.f32 %v3974, %v4094
      %v4185 = vadd.f32 %v3975, %v4097
      %v4186 = vadd.f32 %v3976, %v4102
      %v4187 = vadd.f32 %v3977, %v4105
      %v4188 = vadd.f32 %v3978, %v4110
      %v4189 = vadd.f32 %v3979, %v4113
      %v4190 = vadd.f32 %v3980, %v4118
      %v4191 = vadd.f32 %v3981, %v4121
      %v4192 = vadd.f32 %v3982, %v4126
      %v4193 = vadd.f32 %v3983, %v4129
      %v4194 = vadd.f32 %v3984, %v4134
      %v4195 = vadd.f32 %v3985, %v4137
      %v4196 = vadd.f32 %v3986, %v4142
      %v4197 = vadd.f32 %v3987, %v4145
      %v4198 = vadd.f32 %v3988, %v4150
      %v4199 = vadd.f32 %v3989, %v4153
      %v4200 = vadd.f32 %v3990, %v4158
      %v4201 = vadd.f32 %v3991, %v4161
      %v4202 = vadd.f32 %v3992, %v4166
      %v4203 = vadd.f32 %v3993, %v4169
      %v4206 = vrot.slane %v2252, 1
      %v4207 = vrot.slane %v2253, 1
      %v4208 = vsel %vm2889, %v4206, %v4207
      %v4210 = vsel %vm2447, %v4208, 0
      %v4213 = vsel %vm2496, %v590, 0
      %4215 = vmatprep.subr.bf16.mxu0 0
      %4216 = vmatpush1.bf16.msra.mxu0 0
      %4217 = vmatprep.subr.bf16.mxu0 0
      %4218 = vmatpush1.bf16.msra.mxu0 0
      %4219 = vmatprep.subr.bf16.mxu0 0
      %4220 = vmatpush1.bf16.msra.mxu0 0
      %4221 = vmatprep.subr.bf16.mxu0 0
      %4222 = vmatpush1.bf16.msra.mxu0 0
      %4223 = vmatprep.subr.bf16.mxu0 0
      %4224 = vmatpush1.bf16.msra.mxu0 0
      %4225 = vmatprep.subr.bf16.mxu0 0
      %4226 = vmatpush1.bf16.msra.mxu0 0
      %4227 = vmatprep.subr.bf16.mxu0 0
      %4228 = vmatpush1.bf16.msra.mxu0 0
      %4229 = vmatprep.subr.bf16.mxu0 0
      %4230 = vmatpush1.bf16.msra.mxu0 %v4213
      %4231 = vmatprep.subr.bf16.mxu0 0
      %4232 = vmatpush2.bf16.msra.mxu0 0
      %4233 = vmatprep.subr.bf16.mxu0 0
      %4234 = vmatpush2.bf16.msra.mxu0 0
      %4235 = vmatprep.subr.bf16.mxu0 0
      %4236 = vmatpush2.bf16.msra.mxu0 0
      %4237 = vmatprep.subr.bf16.mxu0 0
      %4238 = vmatpush2.bf16.msra.mxu0 0
      %4239 = vmatprep.subr.bf16.mxu0 0
      %4240 = vmatpush2.bf16.msra.mxu0 0
      %4241 = vmatprep.subr.bf16.mxu0 0
      %4242 = vmatpush2.bf16.msra.mxu0 0
      %4243 = vmatprep.subr.bf16.mxu0 0
      %4244 = vmatpush2.bf16.msra.mxu0 0
      %4245 = vmatprep.subr.bf16.mxu0 0
      %4246 = vmatpush2.bf16.msra.mxu0 0
      %4247 = vmatprep.mubr.bf16.mxu0 0
      %4248 = vmatmul.mubr.bf16.gmra.mxu0 %v2945
      %v4249 = vpop.f32.mrf.mxu0
      %v4250 = vadd.f32 0.0, %v4249
      %v4251 = vpop.f32.mrf.mxu0
      %v4252 = vpop.f32.mrf.mxu0
      %v4253 = vadd.f32 0.0, %v4252
      %v4254 = vpop.f32.mrf.mxu0
      %4255 = vmatprep.mubr.bf16.mxu0 0
      %4256 = vmatmul.mubr.bf16.gmra.mxu0 %v2948
      %v4257 = vpop.f32.mrf.mxu0
      %v4258 = vadd.f32 0.0, %v4257
      %v4259 = vpop.f32.mrf.mxu0
      %v4260 = vpop.f32.mrf.mxu0
      %v4261 = vadd.f32 0.0, %v4260
      %v4262 = vpop.f32.mrf.mxu0
      %4263 = vmatprep.mubr.bf16.mxu0 0
      %4264 = vmatmul.mubr.bf16.gmra.mxu0 %v2951
      %v4265 = vpop.f32.mrf.mxu0
      %v4266 = vadd.f32 0.0, %v4265
      %v4267 = vpop.f32.mrf.mxu0
      %v4268 = vpop.f32.mrf.mxu0
      %v4269 = vadd.f32 0.0, %v4268
      %v4270 = vpop.f32.mrf.mxu0
      %4271 = vmatprep.mubr.bf16.mxu0 0
      %4272 = vmatmul.mubr.bf16.gmra.mxu0 %v2954
      %v4273 = vpop.f32.mrf.mxu0
      %v4274 = vadd.f32 0.0, %v4273
      %v4275 = vpop.f32.mrf.mxu0
      %v4276 = vpop.f32.mrf.mxu0
      %v4277 = vadd.f32 0.0, %v4276
      %v4278 = vpop.f32.mrf.mxu0
      %4279 = vmatprep.mubr.bf16.mxu0 0
      %4280 = vmatmul.mubr.bf16.gmra.mxu0 %v2957
      %v4281 = vpop.f32.mrf.mxu0
      %v4282 = vadd.f32 0.0, %v4281
      %v4283 = vpop.f32.mrf.mxu0
      %v4284 = vpop.f32.mrf.mxu0
      %v4285 = vadd.f32 0.0, %v4284
      %v4286 = vpop.f32.mrf.mxu0
      %4287 = vmatprep.mubr.bf16.mxu0 0
      %4288 = vmatmul.mubr.bf16.gmra.mxu0 %v2960
      %v4289 = vpop.f32.mrf.mxu0
      %v4290 = vadd.f32 0.0, %v4289
      %v4291 = vpop.f32.mrf.mxu0
      %v4292 = vpop.f32.mrf.mxu0
      %v4293 = vadd.f32 0.0, %v4292
      %v4294 = vpop.f32.mrf.mxu0
      %4295 = vmatprep.mubr.bf16.mxu0 0
      %4296 = vmatmul.mubr.bf16.gmra.mxu0 %v2963
      %v4297 = vpop.f32.mrf.mxu0
      %v4298 = vadd.f32 0.0, %v4297
      %v4299 = vpop.f32.mrf.mxu0
      %v4300 = vpop.f32.mrf.mxu0
      %v4301 = vadd.f32 0.0, %v4300
      %v4302 = vpop.f32.mrf.mxu0
      %4303 = vmatprep.mubr.bf16.mxu0 0
      %4304 = vmatmul.mubr.bf16.gmra.mxu0 %v2966
      %v4305 = vpop.f32.mrf.mxu0
      %v4306 = vadd.f32 0.0, %v4305
      %v4307 = vpop.f32.mrf.mxu0
      %v4308 = vpop.f32.mrf.mxu0
      %v4309 = vadd.f32 0.0, %v4308
      %v4310 = vpop.f32.mrf.mxu0
      %4311 = vmatprep.mubr.bf16.mxu0 0
      %4312 = vmatmul.mubr.bf16.gmra.mxu0 %v2969
      %v4313 = vpop.f32.mrf.mxu0
      %v4314 = vadd.f32 0.0, %v4313
      %v4315 = vpop.f32.mrf.mxu0
      %v4316 = vpop.f32.mrf.mxu0
      %v4317 = vadd.f32 0.0, %v4316
      %v4318 = vpop.f32.mrf.mxu0
      %4319 = vmatprep.mubr.bf16.mxu0 0
      %4320 = vmatmul.mubr.bf16.gmra.mxu0 %v2972
      %v4321 = vpop.f32.mrf.mxu0
      %v4322 = vadd.f32 0.0, %v4321
      %v4323 = vpop.f32.mrf.mxu0
      %v4324 = vpop.f32.mrf.mxu0
      %v4325 = vadd.f32 0.0, %v4324
      %v4326 = vpop.f32.mrf.mxu0
      %4327 = vmatprep.mubr.bf16.mxu0 0
      %4328 = vmatmul.mubr.bf16.gmra.mxu0 %v2975
      %v4329 = vpop.f32.mrf.mxu0
      %v4330 = vadd.f32 0.0, %v4329
      %v4331 = vpop.f32.mrf.mxu0
      %v4332 = vpop.f32.mrf.mxu0
      %v4333 = vadd.f32 0.0, %v4332
      %v4334 = vpop.f32.mrf.mxu0
      %4335 = vmatprep.mubr.bf16.mxu0 0
      %4336 = vmatmul.mubr.bf16.gmra.mxu0 %v2978
      %v4337 = vpop.f32.mrf.mxu0
      %v4338 = vadd.f32 0.0, %v4337
      %v4339 = vpop.f32.mrf.mxu0
      %v4340 = vpop.f32.mrf.mxu0
      %v4341 = vadd.f32 0.0, %v4340
      %v4342 = vpop.f32.mrf.mxu0
      %4343 = vmatprep.mubr.bf16.mxu0 0
      %4344 = vmatmul.mubr.bf16.gmra.mxu0 %v2981
      %v4345 = vpop.f32.mrf.mxu0
      %v4346 = vadd.f32 0.0, %v4345
      %v4347 = vpop.f32.mrf.mxu0
      %v4348 = vpop.f32.mrf.mxu0
      %v4349 = vadd.f32 0.0, %v4348
      %v4350 = vpop.f32.mrf.mxu0
      %4351 = vmatprep.mubr.bf16.mxu0 0
      %4352 = vmatmul.mubr.bf16.gmra.mxu0 %v2984
      %v4353 = vpop.f32.mrf.mxu0
      %v4354 = vadd.f32 0.0, %v4353
      %v4355 = vpop.f32.mrf.mxu0
      %v4356 = vpop.f32.mrf.mxu0
      %v4357 = vadd.f32 0.0, %v4356
      %v4358 = vpop.f32.mrf.mxu0
      %4359 = vmatprep.mubr.bf16.mxu0 0
      %4360 = vmatmul.mubr.bf16.gmra.mxu0 %v3597
      %v4361 = vpop.f32.mrf.mxu0
      %v4362 = vadd.f32 0.0, %v4361
      %v4363 = vpop.f32.mrf.mxu0
      %v4364 = vpop.f32.mrf.mxu0
      %v4365 = vadd.f32 0.0, %v4364
      %v4366 = vpop.f32.mrf.mxu0
      %4367 = vmatprep.mubr.bf16.mxu0 0
      %4368 = vmatmul.mubr.bf16.gmra.mxu0 %v4210
      %v4369 = vpop.f32.mrf.mxu0
      %v4370 = vadd.f32 0.0, %v4369
      %v4371 = vpop.f32.mrf.mxu0
      %v4372 = vpop.f32.mrf.mxu0
      %v4373 = vadd.f32 0.0, %v4372
      %v4374 = vpop.f32.mrf.mxu0
      %4375 = vdwg.mxu0
      %v4376 = vadd.f32 %v4172, %v4250
      %v4377 = vadd.f32 %v4173, %v4253
      %v4378 = vadd.f32 %v4174, %v4258
      %v4379 = vadd.f32 %v4175, %v4261
      %v4380 = vadd.f32 %v4176, %v4266
      %v4381 = vadd.f32 %v4177, %v4269
      %v4382 = vadd.f32 %v4178, %v4274
      %v4383 = vadd.f32 %v4179, %v4277
      %v4384 = vadd.f32 %v4180, %v4282
      %v4385 = vadd.f32 %v4181, %v4285
      %v4386 = vadd.f32 %v4182, %v4290
      %v4387 = vadd.f32 %v4183, %v4293
      %v4388 = vadd.f32 %v4184, %v4298
      %v4389 = vadd.f32 %v4185, %v4301
      %v4390 = vadd.f32 %v4186, %v4306
      %v4391 = vadd.f32 %v4187, %v4309
      %v4392 = vadd.f32 %v4188, %v4314
      %v4393 = vadd.f32 %v4189, %v4317
      %v4394 = vadd.f32 %v4190, %v4322
      %v4395 = vadd.f32 %v4191, %v4325
      %v4396 = vadd.f32 %v4192, %v4330
      %v4397 = vadd.f32 %v4193, %v4333
      %v4398 = vadd.f32 %v4194, %v4338
      %v4399 = vadd.f32 %v4195, %v4341
      %v4400 = vadd.f32 %v4196, %v4346
      %v4401 = vadd.f32 %v4197, %v4349
      %v4402 = vadd.f32 %v4198, %v4354
      %v4403 = vadd.f32 %v4199, %v4357
      %v4404 = vadd.f32 %v4200, %v4362
      %v4405 = vadd.f32 %v4201, %v4365
      %v4406 = vadd.f32 %v4202, %v4370
      %v4407 = vadd.f32 %v4203, %v4373
      %v4409 = vlaneseq
      %v4410 = vshrl.u32 %v4409, 7
      %v4411 = vsub.s32 0, %v4410
      %v4412 = vrot.slane %v591, %v4411
      %v4414 = vmul.f32 %v4376, %v4412
      %v4415 = vmul.f32 %v4377, %v4412
      %v4416 = vmul.f32 %v4378, %v4412
      %v4417 = vmul.f32 %v4379, %v4412
      %v4418 = vmul.f32 %v4380, %v4412
      %v4419 = vmul.f32 %v4381, %v4412
      %v4420 = vmul.f32 %v4382, %v4412
      %v4421 = vmul.f32 %v4383, %v4412
      %v4422 = vmul.f32 %v4384, %v4412
      %v4423 = vmul.f32 %v4385, %v4412
      %v4424 = vmul.f32 %v4386, %v4412
      %v4425 = vmul.f32 %v4387, %v4412
      %v4426 = vmul.f32 %v4388, %v4412
      %v4427 = vmul.f32 %v4389, %v4412
      %v4428 = vmul.f32 %v4390, %v4412
      %v4429 = vmul.f32 %v4391, %v4412
      %v4430 = vmul.f32 %v4392, %v4412
      %v4431 = vmul.f32 %v4393, %v4412
      %v4432 = vmul.f32 %v4394, %v4412
      %v4433 = vmul.f32 %v4395, %v4412
      %v4434 = vmul.f32 %v4396, %v4412
      %v4435 = vmul.f32 %v4397, %v4412
      %v4436 = vmul.f32 %v4398, %v4412
      %v4437 = vmul.f32 %v4399, %v4412
      %v4438 = vmul.f32 %v4400, %v4412
      %v4439 = vmul.f32 %v4401, %v4412
      %v4440 = vmul.f32 %v4402, %v4412
      %v4441 = vmul.f32 %v4403, %v4412
      %v4442 = vmul.f32 %v4404, %v4412
      %v4443 = vmul.f32 %v4405, %v4412
      %v4444 = vmul.f32 %v4406, %v4412
      %v4445 = vmul.f32 %v4407, %v4412
      %v4447 = vlaneseq
      %v4448 = vshrl.u32 %v4447, 7
      %v4449 = vsub.s32 0, %v4448
      %v4450 = vrot.slane %v592, %v4449
      %v4452 = vadd.f32 %v4414, %v4450
      %v4453 = vadd.f32 %v4415, %v4450
      %v4454 = vadd.f32 %v4416, %v4450
      %v4455 = vadd.f32 %v4417, %v4450
      %v4456 = vadd.f32 %v4418, %v4450
      %v4457 = vadd.f32 %v4419, %v4450
      %v4458 = vadd.f32 %v4420, %v4450
      %v4459 = vadd.f32 %v4421, %v4450
      %v4460 = vadd.f32 %v4422, %v4450
      %v4461 = vadd.f32 %v4423, %v4450
      %v4462 = vadd.f32 %v4424, %v4450
      %v4463 = vadd.f32 %v4425, %v4450
      %v4464 = vadd.f32 %v4426, %v4450
      %v4465 = vadd.f32 %v4427, %v4450
      %v4466 = vadd.f32 %v4428, %v4450
      %v4467 = vadd.f32 %v4429, %v4450
      %v4468 = vadd.f32 %v4430, %v4450
      %v4469 = vadd.f32 %v4431, %v4450
      %v4470 = vadd.f32 %v4432, %v4450
      %v4471 = vadd.f32 %v4433, %v4450
      %v4472 = vadd.f32 %v4434, %v4450
      %v4473 = vadd.f32 %v4435, %v4450
      %v4474 = vadd.f32 %v4436, %v4450
      %v4475 = vadd.f32 %v4437, %v4450
      %v4476 = vadd.f32 %v4438, %v4450
      %v4477 = vadd.f32 %v4439, %v4450
      %v4478 = vadd.f32 %v4440, %v4450
      %v4479 = vadd.f32 %v4441, %v4450
      %v4480 = vadd.f32 %v4442, %v4450
      %v4481 = vadd.f32 %v4443, %v4450
      %v4482 = vadd.f32 %v4444, %v4450
      %v4483 = vadd.f32 %v4445, %v4450
      %v4484 = vmin.f32 %v4452, 20.0
      %v4485 = vmin.f32 %v4453, 20.0
      %v4486 = vmin.f32 %v4454, 20.0
      %v4487 = vmin.f32 %v4455, 20.0
      %v4488 = vmin.f32 %v4456, 20.0
      %v4489 = vmin.f32 %v4457, 20.0
      %v4490 = vmin.f32 %v4458, 20.0
      %v4491 = vmin.f32 %v4459, 20.0
      %v4492 = vmin.f32 %v4460, 20.0
      %v4493 = vmin.f32 %v4461, 20.0
      %v4494 = vmin.f32 %v4462, 20.0
      %v4495 = vmin.f32 %v4463, 20.0
      %v4496 = vmin.f32 %v4464, 20.0
      %v4497 = vmin.f32 %v4465, 20.0
      %v4498 = vmin.f32 %v4466, 20.0
      %v4499 = vmin.f32 %v4467, 20.0
      %v4500 = vmin.f32 %v4468, 20.0
      %v4501 = vmin.f32 %v4469, 20.0
      %v4502 = vmin.f32 %v4470, 20.0
      %v4503 = vmin.f32 %v4471, 20.0
      %v4504 = vmin.f32 %v4472, 20.0
      %v4505 = vmin.f32 %v4473, 20.0
      %v4506 = vmin.f32 %v4474, 20.0
      %v4507 = vmin.f32 %v4475, 20.0
      %v4508 = vmin.f32 %v4476, 20.0
      %v4509 = vmin.f32 %v4477, 20.0
      %v4510 = vmin.f32 %v4478, 20.0
      %v4511 = vmin.f32 %v4479, 20.0
      %v4512 = vmin.f32 %v4480, 20.0
      %v4513 = vmin.f32 %v4481, 20.0
      %v4514 = vmin.f32 %v4482, 20.0
      %v4515 = vmin.f32 %v4483, 20.0
      %v4516 = vmul.f32 %v4484, 1.442695
      %v4517 = vpow.pop %v4516
      %v4518 = vmul.f32 %v4485, 1.442695
      %v4519 = vpow.pop %v4518
      %v4520 = vmul.f32 %v4486, 1.442695
      %v4521 = vpow.pop %v4520
      %v4522 = vmul.f32 %v4487, 1.442695
      %v4523 = vpow.pop %v4522
      %v4524 = vmul.f32 %v4488, 1.442695
      %v4525 = vpow.pop %v4524
      %v4526 = vmul.f32 %v4489, 1.442695
      %v4527 = vpow.pop %v4526
      %v4528 = vmul.f32 %v4490, 1.442695
      %v4529 = vpow.pop %v4528
      %v4530 = vmul.f32 %v4491, 1.442695
      %v4531 = vpow.pop %v4530
      %v4532 = vmul.f32 %v4492, 1.442695
      %v4533 = vpow.pop %v4532
      %v4534 = vmul.f32 %v4493, 1.442695
      %v4535 = vpow.pop %v4534
      %v4536 = vmul.f32 %v4494, 1.442695
      %v4537 = vpow.pop %v4536
      %v4538 = vmul.f32 %v4495, 1.442695
      %v4539 = vpow.pop %v4538
      %v4540 = vmul.f32 %v4496, 1.442695
      %v4541 = vpow.pop %v4540
      %v4542 = vmul.f32 %v4497, 1.442695
      %v4543 = vpow.pop %v4542
      %v4544 = vmul.f32 %v4498, 1.442695
      %v4545 = vpow.pop %v4544
      %v4546 = vmul.f32 %v4499, 1.442695
      %v4547 = vpow.pop %v4546
      %v4548 = vmul.f32 %v4500, 1.442695
      %v4549 = vpow.pop %v4548
      %v4550 = vmul.f32 %v4501, 1.442695
      %v4551 = vpow.pop %v4550
      %v4552 = vmul.f32 %v4502, 1.442695
      %v4553 = vpow.pop %v4552
      %v4554 = vmul.f32 %v4503, 1.442695
      %v4555 = vpow.pop %v4554
      %v4556 = vmul.f32 %v4504, 1.442695
      %v4557 = vpow.pop %v4556
      %v4558 = vmul.f32 %v4505, 1.442695
      %v4559 = vpow.pop %v4558
      %v4560 = vmul.f32 %v4506, 1.442695
      %v4561 = vpow.pop %v4560
      %v4562 = vmul.f32 %v4507, 1.442695
      %v4563 = vpow.pop %v4562
      %v4564 = vmul.f32 %v4508, 1.442695
      %v4565 = vpow.pop %v4564
      %v4566 = vmul.f32 %v4509, 1.442695
      %v4567 = vpow.pop %v4566
      %v4568 = vmul.f32 %v4510, 1.442695
      %v4569 = vpow.pop %v4568
      %v4570 = vmul.f32 %v4511, 1.442695
      %v4571 = vpow.pop %v4570
      %v4572 = vmul.f32 %v4512, 1.442695
      %v4573 = vpow.pop %v4572
      %v4574 = vmul.f32 %v4513, 1.442695
      %v4575 = vpow.pop %v4574
      %v4576 = vmul.f32 %v4514, 1.442695
      %v4577 = vpow.pop %v4576
      %v4578 = vmul.f32 %v4515, 1.442695
      %v4579 = vpow.pop %v4578
      %v4580 = vadd.f32 %v4517, 2.0
      %v4581 = vadd.f32 %v4519, 2.0
      %v4582 = vadd.f32 %v4521, 2.0
      %v4583 = vadd.f32 %v4523, 2.0
      %v4584 = vadd.f32 %v4525, 2.0
      %v4585 = vadd.f32 %v4527, 2.0
      %v4586 = vadd.f32 %v4529, 2.0
      %v4587 = vadd.f32 %v4531, 2.0
      %v4588 = vadd.f32 %v4533, 2.0
      %v4589 = vadd.f32 %v4535, 2.0
      %v4590 = vadd.f32 %v4537, 2.0
      %v4591 = vadd.f32 %v4539, 2.0
      %v4592 = vadd.f32 %v4541, 2.0
      %v4593 = vadd.f32 %v4543, 2.0
      %v4594 = vadd.f32 %v4545, 2.0
      %v4595 = vadd.f32 %v4547, 2.0
      %v4596 = vadd.f32 %v4549, 2.0
      %v4597 = vadd.f32 %v4551, 2.0
      %v4598 = vadd.f32 %v4553, 2.0
      %v4599 = vadd.f32 %v4555, 2.0
      %v4600 = vadd.f32 %v4557, 2.0
      %v4601 = vadd.f32 %v4559, 2.0
      %v4602 = vadd.f32 %v4561, 2.0
      %v4603 = vadd.f32 %v4563, 2.0
      %v4604 = vadd.f32 %v4565, 2.0
      %v4605 = vadd.f32 %v4567, 2.0
      %v4606 = vadd.f32 %v4569, 2.0
      %v4607 = vadd.f32 %v4571, 2.0
      %v4608 = vadd.f32 %v4573, 2.0
      %v4609 = vadd.f32 %v4575, 2.0
      %v4610 = vadd.f32 %v4577, 2.0
      %v4611 = vadd.f32 %v4579, 2.0
      %v4612 = vmul.f32 %v4517, %v4580
      %v4613 = vmul.f32 %v4519, %v4581
      %v4614 = vmul.f32 %v4521, %v4582
      %v4615 = vmul.f32 %v4523, %v4583
      %v4616 = vmul.f32 %v4525, %v4584
      %v4617 = vmul.f32 %v4527, %v4585
      %v4618 = vmul.f32 %v4529, %v4586
      %v4619 = vmul.f32 %v4531, %v4587
      %v4620 = vmul.f32 %v4533, %v4588
      %v4621 = vmul.f32 %v4535, %v4589
      %v4622 = vmul.f32 %v4537, %v4590
      %v4623 = vmul.f32 %v4539, %v4591
      %v4624 = vmul.f32 %v4541, %v4592
      %v4625 = vmul.f32 %v4543, %v4593
      %v4626 = vmul.f32 %v4545, %v4594
      %v4627 = vmul.f32 %v4547, %v4595
      %v4628 = vmul.f32 %v4549, %v4596
      %v4629 = vmul.f32 %v4551, %v4597
      %v4630 = vmul.f32 %v4553, %v4598
      %v4631 = vmul.f32 %v4555, %v4599
      %v4632 = vmul.f32 %v4557, %v4600
      %v4633 = vmul.f32 %v4559, %v4601
      %v4634 = vmul.f32 %v4561, %v4602
      %v4635 = vmul.f32 %v4563, %v4603
      %v4636 = vmul.f32 %v4565, %v4604
      %v4637 = vmul.f32 %v4567, %v4605
      %v4638 = vmul.f32 %v4569, %v4606
      %v4639 = vmul.f32 %v4571, %v4607
      %v4640 = vmul.f32 %v4573, %v4608
      %v4641 = vmul.f32 %v4575, %v4609
      %v4642 = vmul.f32 %v4577, %v4610
      %v4643 = vmul.f32 %v4579, %v4611
      %v4644 = vadd.f32 %v4612, 2.0
      %v4645 = vadd.f32 %v4613, 2.0
      %v4646 = vadd.f32 %v4614, 2.0
      %v4647 = vadd.f32 %v4615, 2.0
      %v4648 = vadd.f32 %v4616, 2.0
      %v4649 = vadd.f32 %v4617, 2.0
      %v4650 = vadd.f32 %v4618, 2.0
      %v4651 = vadd.f32 %v4619, 2.0
      %v4652 = vadd.f32 %v4620, 2.0
      %v4653 = vadd.f32 %v4621, 2.0
      %v4654 = vadd.f32 %v4622, 2.0
      %v4655 = vadd.f32 %v4623, 2.0
      %v4656 = vadd.f32 %v4624, 2.0
      %v4657 = vadd.f32 %v4625, 2.0
      %v4658 = vadd.f32 %v4626, 2.0
      %v4659 = vadd.f32 %v4627, 2.0
      %v4660 = vadd.f32 %v4628, 2.0
      %v4661 = vadd.f32 %v4629, 2.0
      %v4662 = vadd.f32 %v4630, 2.0
      %v4663 = vadd.f32 %v4631, 2.0
      %v4664 = vadd.f32 %v4632, 2.0
      %v4665 = vadd.f32 %v4633, 2.0
      %v4666 = vadd.f32 %v4634, 2.0
      %v4667 = vadd.f32 %v4635, 2.0
      %v4668 = vadd.f32 %v4636, 2.0
      %v4669 = vadd.f32 %v4637, 2.0
      %v4670 = vadd.f32 %v4638, 2.0
      %v4671 = vadd.f32 %v4639, 2.0
      %v4672 = vadd.f32 %v4640, 2.0
      %v4673 = vadd.f32 %v4641, 2.0
      %v4674 = vadd.f32 %v4642, 2.0
      %v4675 = vadd.f32 %v4643, 2.0
      %v4676 = vrcp.pop %v4644
      %v4677 = vrcp.pop %v4645
      %v4678 = vrcp.pop %v4646
      %v4679 = vrcp.pop %v4647
      %v4680 = vrcp.pop %v4648
      %v4681 = vrcp.pop %v4649
      %v4682 = vrcp.pop %v4650
      %v4683 = vrcp.pop %v4651
      %v4684 = vrcp.pop %v4652
      %v4685 = vrcp.pop %v4653
      %v4686 = vrcp.pop %v4654
      %v4687 = vrcp.pop %v4655
      %v4688 = vrcp.pop %v4656
      %v4689 = vrcp.pop %v4657
      %v4690 = vrcp.pop %v4658
      %v4691 = vrcp.pop %v4659
      %v4692 = vrcp.pop %v4660
      %v4693 = vrcp.pop %v4661
      %v4694 = vrcp.pop %v4662
      %v4695 = vrcp.pop %v4663
      %v4696 = vrcp.pop %v4664
      %v4697 = vrcp.pop %v4665
      %v4698 = vrcp.pop %v4666
      %v4699 = vrcp.pop %v4667
      %v4700 = vrcp.pop %v4668
      %v4701 = vrcp.pop %v4669
      %v4702 = vrcp.pop %v4670
      %v4703 = vrcp.pop %v4671
      %v4704 = vrcp.pop %v4672
      %v4705 = vrcp.pop %v4673
      %v4706 = vrcp.pop %v4674
      %v4707 = vrcp.pop %v4675
      %v4708 = vmul.f32 %v4612, %v4676
      %v4709 = vmul.f32 %v4613, %v4677
      %v4710 = vmul.f32 %v4614, %v4678
      %v4711 = vmul.f32 %v4615, %v4679
      %v4712 = vmul.f32 %v4616, %v4680
      %v4713 = vmul.f32 %v4617, %v4681
      %v4714 = vmul.f32 %v4618, %v4682
      %v4715 = vmul.f32 %v4619, %v4683
      %v4716 = vmul.f32 %v4620, %v4684
      %v4717 = vmul.f32 %v4621, %v4685
      %v4718 = vmul.f32 %v4622, %v4686
      %v4719 = vmul.f32 %v4623, %v4687
      %v4720 = vmul.f32 %v4624, %v4688
      %v4721 = vmul.f32 %v4625, %v4689
      %v4722 = vmul.f32 %v4626, %v4690
      %v4723 = vmul.f32 %v4627, %v4691
      %v4724 = vmul.f32 %v4628, %v4692
      %v4725 = vmul.f32 %v4629, %v4693
      %v4726 = vmul.f32 %v4630, %v4694
      %v4727 = vmul.f32 %v4631, %v4695
      %v4728 = vmul.f32 %v4632, %v4696
      %v4729 = vmul.f32 %v4633, %v4697
      %v4730 = vmul.f32 %v4634, %v4698
      %v4731 = vmul.f32 %v4635, %v4699
      %v4732 = vmul.f32 %v4636, %v4700
      %v4733 = vmul.f32 %v4637, %v4701
      %v4734 = vmul.f32 %v4638, %v4702
      %v4735 = vmul.f32 %v4639, %v4703
      %v4736 = vmul.f32 %v4640, %v4704
      %v4737 = vmul.f32 %v4641, %v4705
      %v4738 = vmul.f32 %v4642, %v4706
      %v4739 = vmul.f32 %v4643, %v4707
      %vm4740 = vcmp.gt.f32.partialorder %v4452, 20.0
      %vm4741 = vcmp.gt.f32.partialorder %v4453, 20.0
      %vm4742 = vcmp.gt.f32.partialorder %v4454, 20.0
      %vm4743 = vcmp.gt.f32.partialorder %v4455, 20.0
      %vm4744 = vcmp.gt.f32.partialorder %v4456, 20.0
      %vm4745 = vcmp.gt.f32.partialorder %v4457, 20.0
      %vm4746 = vcmp.gt.f32.partialorder %v4458, 20.0
      %vm4747 = vcmp.gt.f32.partialorder %v4459, 20.0
      %vm4748 = vcmp.gt.f32.partialorder %v4460, 20.0
      %vm4749 = vcmp.gt.f32.partialorder %v4461, 20.0
      %vm4750 = vcmp.gt.f32.partialorder %v4462, 20.0
      %vm4751 = vcmp.gt.f32.partialorder %v4463, 20.0
      %vm4752 = vcmp.gt.f32.partialorder %v4464, 20.0
      %vm4753 = vcmp.gt.f32.partialorder %v4465, 20.0
      %vm4754 = vcmp.gt.f32.partialorder %v4466, 20.0
      %vm4755 = vcmp.gt.f32.partialorder %v4467, 20.0
      %vm4756 = vcmp.gt.f32.partialorder %v4468, 20.0
      %vm4757 = vcmp.gt.f32.partialorder %v4469, 20.0
      %vm4758 = vcmp.gt.f32.partialorder %v4470, 20.0
      %vm4759 = vcmp.gt.f32.partialorder %v4471, 20.0
      %vm4760 = vcmp.gt.f32.partialorder %v4472, 20.0
      %vm4761 = vcmp.gt.f32.partialorder %v4473, 20.0
      %vm4762 = vcmp.gt.f32.partialorder %v4474, 20.0
      %vm4763 = vcmp.gt.f32.partialorder %v4475, 20.0
      %vm4764 = vcmp.gt.f32.partialorder %v4476, 20.0
      %vm4765 = vcmp.gt.f32.partialorder %v4477, 20.0
      %vm4766 = vcmp.gt.f32.partialorder %v4478, 20.0
      %vm4767 = vcmp.gt.f32.partialorder %v4479, 20.0
      %vm4768 = vcmp.gt.f32.partialorder %v4480, 20.0
      %vm4769 = vcmp.gt.f32.partialorder %v4481, 20.0
      %vm4770 = vcmp.gt.f32.partialorder %v4482, 20.0
      %vm4771 = vcmp.gt.f32.partialorder %v4483, 20.0
      %v4772 = vsel %vm4740, 1.0, %v4708
      %v4773 = vsel %vm4741, 1.0, %v4709
      %v4774 = vsel %vm4742, 1.0, %v4710
      %v4775 = vsel %vm4743, 1.0, %v4711
      %v4776 = vsel %vm4744, 1.0, %v4712
      %v4777 = vsel %vm4745, 1.0, %v4713
      %v4778 = vsel %vm4746, 1.0, %v4714
      %v4779 = vsel %vm4747, 1.0, %v4715
      %v4780 = vsel %vm4748, 1.0, %v4716
      %v4781 = vsel %vm4749, 1.0, %v4717
      %v4782 = vsel %vm4750, 1.0, %v4718
      %v4783 = vsel %vm4751, 1.0, %v4719
      %v4784 = vsel %vm4752, 1.0, %v4720
      %v4785 = vsel %vm4753, 1.0, %v4721
      %v4786 = vsel %vm4754, 1.0, %v4722
      %v4787 = vsel %vm4755, 1.0, %v4723
      %v4788 = vsel %vm4756, 1.0, %v4724
      %v4789 = vsel %vm4757, 1.0, %v4725
      %v4790 = vsel %vm4758, 1.0, %v4726
      %v4791 = vsel %vm4759, 1.0, %v4727
      %v4792 = vsel %vm4760, 1.0, %v4728
      %v4793 = vsel %vm4761, 1.0, %v4729
      %v4794 = vsel %vm4762, 1.0, %v4730
      %v4795 = vsel %vm4763, 1.0, %v4731
      %v4796 = vsel %vm4764, 1.0, %v4732
      %v4797 = vsel %vm4765, 1.0, %v4733
      %v4798 = vsel %vm4766, 1.0, %v4734
      %v4799 = vsel %vm4767, 1.0, %v4735
      %v4800 = vsel %vm4768, 1.0, %v4736
      %v4801 = vsel %vm4769, 1.0, %v4737
      %v4802 = vsel %vm4770, 1.0, %v4738
      %v4803 = vsel %vm4771, 1.0, %v4739
      %v4804 = vmul.f32 %v4452, %v4772
      %v4805 = vmul.f32 %v4453, %v4773
      %v4806 = vmul.f32 %v4454, %v4774
      %v4807 = vmul.f32 %v4455, %v4775
      %v4808 = vmul.f32 %v4456, %v4776
      %v4809 = vmul.f32 %v4457, %v4777
      %v4810 = vmul.f32 %v4458, %v4778
      %v4811 = vmul.f32 %v4459, %v4779
      %v4812 = vmul.f32 %v4460, %v4780
      %v4813 = vmul.f32 %v4461, %v4781
      %v4814 = vmul.f32 %v4462, %v4782
      %v4815 = vmul.f32 %v4463, %v4783
      %v4816 = vmul.f32 %v4464, %v4784
      %v4817 = vmul.f32 %v4465, %v4785
      %v4818 = vmul.f32 %v4466, %v4786
      %v4819 = vmul.f32 %v4467, %v4787
      %v4820 = vmul.f32 %v4468, %v4788
      %v4821 = vmul.f32 %v4469, %v4789
      %v4822 = vmul.f32 %v4470, %v4790
      %v4823 = vmul.f32 %v4471, %v4791
      %v4824 = vmul.f32 %v4472, %v4792
      %v4825 = vmul.f32 %v4473, %v4793
      %v4826 = vmul.f32 %v4474, %v4794
      %v4827 = vmul.f32 %v4475, %v4795
      %v4828 = vmul.f32 %v4476, %v4796
      %v4829 = vmul.f32 %v4477, %v4797
      %v4830 = vmul.f32 %v4478, %v4798
      %v4831 = vmul.f32 %v4479, %v4799
      %v4832 = vmul.f32 %v4480, %v4800
      %v4833 = vmul.f32 %v4481, %v4801
      %v4834 = vmul.f32 %v4482, %v4802
      %v4835 = vmul.f32 %v4483, %v4803
      %v4836 = vld [vmem:[%s565] sm:$0xff]
      %v4837 = vld [vmem:[%s565 + $0x8] sm:$0xff]
      %v4838 = vld [vmem:[%s565 + $0x10] sm:$0xff]
      %v4839 = vld [vmem:[%s565 + $0x18] sm:$0xff]
      %v4840 = vld [vmem:[%s565 + $0x20] sm:$0xff]
      %v4841 = vld [vmem:[%s565 + $0x28] sm:$0xff]
      %v4842 = vld [vmem:[%s565 + $0x30] sm:$0xff]
      %v4843 = vld [vmem:[%s565 + $0x38] sm:$0xff]
      %v4844 = vld [vmem:[%s565 + $0x40] sm:$0xff]
      %v4845 = vld [vmem:[%s565 + $0x48] sm:$0xff]
      %v4846 = vld [vmem:[%s565 + $0x50] sm:$0xff]
      %v4847 = vld [vmem:[%s565 + $0x58] sm:$0xff]
      %v4848 = vld [vmem:[%s565 + $0x60] sm:$0xff]
      %v4849 = vld [vmem:[%s565 + $0x68] sm:$0xff]
      %v4850 = vld [vmem:[%s565 + $0x70] sm:$0xff]
      %v4851 = vld [vmem:[%s565 + $0x78] sm:$0xff]
      %v4852 = vld [vmem:[%s565 + $0x80] sm:$0xff]
      %v4853 = vld [vmem:[%s565 + $0x88] sm:$0xff]
      %v4854 = vld [vmem:[%s565 + $0x90] sm:$0xff]
      %v4855 = vld [vmem:[%s565 + $0x98] sm:$0xff]
      %v4856 = vld [vmem:[%s565 + $0xa0] sm:$0xff]
      %v4857 = vld [vmem:[%s565 + $0xa8] sm:$0xff]
      %v4858 = vld [vmem:[%s565 + $0xb0] sm:$0xff]
      %v4859 = vld [vmem:[%s565 + $0xb8] sm:$0xff]
      %v4860 = vld [vmem:[%s565 + $0xc0] sm:$0xff]
      %v4861 = vld [vmem:[%s565 + $0xc8] sm:$0xff]
      %v4862 = vld [vmem:[%s565 + $0xd0] sm:$0xff]
      %v4863 = vld [vmem:[%s565 + $0xd8] sm:$0xff]
      %v4864 = vld [vmem:[%s565 + $0xe0] sm:$0xff]
      %v4865 = vld [vmem:[%s565 + $0xe8] sm:$0xff]
      %v4866 = vld [vmem:[%s565 + $0xf0] sm:$0xff]
      %v4867 = vld [vmem:[%s565 + $0xf8] sm:$0xff]
      %v4868 = vadd.f32 %v4836, %v4804
      %v4869 = vadd.f32 %v4837, %v4805
      %v4870 = vadd.f32 %v4838, %v4806
      %v4871 = vadd.f32 %v4839, %v4807
      %v4872 = vadd.f32 %v4840, %v4808
      %v4873 = vadd.f32 %v4841, %v4809
      %v4874 = vadd.f32 %v4842, %v4810
      %v4875 = vadd.f32 %v4843, %v4811
      %v4876 = vadd.f32 %v4844, %v4812
      %v4877 = vadd.f32 %v4845, %v4813
      %v4878 = vadd.f32 %v4846, %v4814
      %v4879 = vadd.f32 %v4847, %v4815
      %v4880 = vadd.f32 %v4848, %v4816
      %v4881 = vadd.f32 %v4849, %v4817
      %v4882 = vadd.f32 %v4850, %v4818
      %v4883 = vadd.f32 %v4851, %v4819
      %v4884 = vadd.f32 %v4852, %v4820
      %v4885 = vadd.f32 %v4853, %v4821
      %v4886 = vadd.f32 %v4854, %v4822
      %v4887 = vadd.f32 %v4855, %v4823
      %v4888 = vadd.f32 %v4856, %v4824
      %v4889 = vadd.f32 %v4857, %v4825
      %v4890 = vadd.f32 %v4858, %v4826
      %v4891 = vadd.f32 %v4859, %v4827
      %v4892 = vadd.f32 %v4860, %v4828
      %v4893 = vadd.f32 %v4861, %v4829
      %v4894 = vadd.f32 %v4862, %v4830
      %v4895 = vadd.f32 %v4863, %v4831
      %v4896 = vadd.f32 %v4864, %v4832
      %v4897 = vadd.f32 %v4865, %v4833
      %v4898 = vadd.f32 %v4866, %v4834
      %v4899 = vadd.f32 %v4867, %v4835
      %4900 = vst.msk [vmem:[%s576] sm:$0xff] %vm636, %v4868
      %4901 = vst.msk [vmem:[%s576 + $0x8] sm:$0xff] %vm636, %v4869
      %4902 = vst.msk [vmem:[%s576 + $0x10] sm:$0xff] %vm636, %v4870
      %4903 = vst.msk [vmem:[%s576 + $0x18] sm:$0xff] %vm636, %v4871
      %4904 = vst.msk [vmem:[%s576 + $0x20] sm:$0xff] %vm636, %v4872
      %4905 = vst.msk [vmem:[%s576 + $0x28] sm:$0xff] %vm636, %v4873
      %4906 = vst.msk [vmem:[%s576 + $0x30] sm:$0xff] %vm636, %v4874
      %4907 = vst.msk [vmem:[%s576 + $0x38] sm:$0xff] %vm636, %v4875
      %4908 = vst.msk [vmem:[%s576 + $0x40] sm:$0xff] %vm636, %v4876
      %4909 = vst.msk [vmem:[%s576 + $0x48] sm:$0xff] %vm636, %v4877
      %4910 = vst.msk [vmem:[%s576 + $0x50] sm:$0xff] %vm636, %v4878
      %4911 = vst.msk [vmem:[%s576 + $0x58] sm:$0xff] %vm636, %v4879
      %4912 = vst.msk [vmem:[%s576 + $0x60] sm:$0xff] %vm636, %v4880
      %4913 = vst.msk [vmem:[%s576 + $0x68] sm:$0xff] %vm636, %v4881
      %4914 = vst.msk [vmem:[%s576 + $0x70] sm:$0xff] %vm636, %v4882
      %4915 = vst.msk [vmem:[%s576 + $0x78] sm:$0xff] %vm636, %v4883
      %4916 = vst.msk [vmem:[%s576 + $0x80] sm:$0xff] %vm636, %v4884
      %4917 = vst.msk [vmem:[%s576 + $0x88] sm:$0xff] %vm636, %v4885
      %4918 = vst.msk [vmem:[%s576 + $0x90] sm:$0xff] %vm636, %v4886
      %4919 = vst.msk [vmem:[%s576 + $0x98] sm:$0xff] %vm636, %v4887
      %4920 = vst.msk [vmem:[%s576 + $0xa0] sm:$0xff] %vm636, %v4888
      %4921 = vst.msk [vmem:[%s576 + $0xa8] sm:$0xff] %vm636, %v4889
      %4922 = vst.msk [vmem:[%s576 + $0xb0] sm:$0xff] %vm636, %v4890
      %4923 = vst.msk [vmem:[%s576 + $0xb8] sm:$0xff] %vm636, %v4891
      %4924 = vst.msk [vmem:[%s576 + $0xc0] sm:$0xff] %vm636, %v4892
      %4925 = vst.msk [vmem:[%s576 + $0xc8] sm:$0xff] %vm636, %v4893
      %4926 = vst.msk [vmem:[%s576 + $0xd0] sm:$0xff] %vm636, %v4894
      %4927 = vst.msk [vmem:[%s576 + $0xd8] sm:$0xff] %vm636, %v4895
      %4928 = vst.msk [vmem:[%s576 + $0xe0] sm:$0xff] %vm636, %v4896
      %4929 = vst.msk [vmem:[%s576 + $0xe8] sm:$0xff] %vm636, %v4897
      %4930 = vst.msk [vmem:[%s576 + $0xf0] sm:$0xff] %vm636, %v4898
      %4931 = vst.msk [vmem:[%s576 + $0xf8] sm:$0xff] %vm636, %v4899
      %s4932 = smul.u32 16, %s26
      %p4933 = scmp.lt.s32.totalorder %s25, 1
      %s4934 = scalar_select %p4933, %s25, 1
      %p4935 = scmp.lt.s32.totalorder %s4932, 15
      %s4936 = scalar_select %p4935, %s4932, 15
      %s4937 = smul.addr %s4936, 2
      %s4938 = smul.addr %s4934, 32
      %s4939 = sadd.s32 %s4937, %s4938
      %s4940 = smul.addr %s4939, 8
      %s4941 = scalar_lea.vmem %s10, %s4940
      // Predicated region
      $region61: #{tpu_custom_call.1} parent=59 // pred_check
        %p4942 = pneg %p303
      $region62: #{tpu_custom_call.1} parent=59 // pred_check_branch
        %4944 = sbr.rel (%p4942) target = $region64
      $region63: #{tpu_custom_call.1} parent=59 // pred_region
        %s4945 = smul.u32 16, %s26
      $region64: #{tpu_custom_call.1} parent=59 // pred_fallthru
        _
    $region60: #{tpu_custom_call.1} parent=5 // pred_fallthru
      _
    %p4946 = scmp.le.s32.totalorder 2, %s16
    // Predicated region
    $region65: #{tpu_custom_call.1} parent=5 // pred_check
      %p4947 = pneg %p4946
    $region66: #{tpu_custom_call.1} parent=5 // pred_check_branch
      %4949 = sbr.rel (%p4947) target = $region68
    $region67: #{tpu_custom_call.1} parent=5 // pred_region
      %s4950 = ssub.s32 %s16, 2
      // Predicated region
      $region69: #{tpu_custom_call.1} parent=67 // pred_check
        %p4951 = pneg %p309
      $region70: #{tpu_custom_call.1} parent=67 // pred_check_branch
        %4953 = sbr.rel (%p4951) target = $region72
      $region71: #{tpu_custom_call.1} parent=67 // pred_region
        %s4954 = smul.u32 16, %s28
        %p4955 = scmp.lt.s32.totalorder %s27, 1
        %s4956 = scalar_select %p4955, %s27, 1
        %p4957 = scmp.lt.s32.totalorder %s4954, 15
        %s4958 = scalar_select %p4957, %s4954, 15
        %s4959 = smul.addr %s4958, 2
        %s4960 = smul.addr %s4956, 32
        %s4961 = sadd.s32 %s4959, %s4960
        %s4962 = smul.addr %s4961, 8
        %s4963 = scalar_lea.vmem %s10, %s4962
      $region72: #{tpu_custom_call.1} parent=67 // pred_fallthru
        _
    $region68: #{tpu_custom_call.1} parent=5 // pred_fallthru
      _
  $region6: #{tpu_custom_call.1} parent=0 // loop_footer
    %s20 = sadd.s32 1, %s16
  $region7: #{tpu_custom_call.1} parent=0 // loop_footer_branch
    %15 = sbr.rel target = $region3
  $region8: #{tpu_custom_call.1} parent=0 // loop_exit
    _

</llo_original>
